<compile_context>
chip_gen: v7x
topology: tpu7x:2x2x1
jax: 0.10.0
libtpu: 0.0.40
codegen_flags: <defaults>
</compile_context>

<pallas_src>
import functools

import jax
import jax.numpy as jnp
from jax import lax
from jax.experimental import pallas as pl
from jax.experimental.pallas import tpu as pltpu

ENTROPY_WEIGHT = 2.0
_LANES = 128
_SUBLANES = 8
_TARGET_BLOCK_BYTES = 2 * 1024 * 1024   # ~2 MiB (f32-equivalent) per input block
_MAX_TILE_ROWS = 4096
_VMEM_LIMIT_BYTES = 40 * 1024 * 1024    # safe on v7x (64 MiB phys) and v5e/v6e


def _round_up(x, m):
    return ((x + m - 1) // m) * m


def _pick_pack_factor(b, n):
    """Largest k with k*n <= 128 lanes and k | b (k == 1 -> no lane packing)."""
    kmax = max(1, _LANES // n)
    for k in range(kmax, 0, -1):
        if b % k == 0:
            return k
    return 1


def _scan_loss_kernel(*refs, n, k, num_rows, tile_rows, tiles_per_core):
    if k > 1:
        a_ref, nb_ref, m_ref, cons_ref, prob_ref = refs
    else:
        a_ref, nb_ref, cons_ref, prob_ref = refs

    pid_t = pl.program_id(1)

    @pl.when(pid_t == 0)
    def _init():
        cons_ref[...] = jnp.zeros_like(cons_ref)
        prob_ref[...] = jnp.zeros_like(prob_ref)

    # Un-clamped tile id (the index_map clamps OOB tiles to the last block; the
    # mask below uses the raw id so those duplicated rows contribute nothing).
    blk = pl.program_id(0) * tiles_per_core + pid_t
    row = lax.broadcasted_iota(jnp.int32, (tile_rows, 1), 0)
    valid = (blk * tile_rows + row) < num_rows                 # [tile_rows, 1]

    # Mask invalid rows to 0 logits so OOB/padded garbage never produces inf/NaN.
    a = jnp.where(valid, a_ref[...].astype(jnp.float32), 0.0)
    nb = jnp.where(valid, nb_ref[...].astype(jnp.float32), 0.0)

    # Row-max softmax stabilizer (exact per-sample max when k == 1).
    a_exp = jnp.exp(a - jnp.max(a, axis=-1, keepdims=True))
    n_exp = jnp.exp(nb - jnp.max(nb, axis=-1, keepdims=True))

    if k > 1:
        # Segmented (per-sample) sums via one MXU matmul each with the
        # block-diagonal ones matrix; results are broadcast across each segment.
        m = m_ref[...]
        dot = functools.partial(jnp.dot, preferred_element_type=jnp.float32,
                                precision=lax.Precision.HIGHEST)
        a_sum = dot(a_exp, m)
        n_sum = dot(n_exp, m)
        a_sum = jnp.maximum(a_sum, 1e-30)
        n_sum = jnp.maximum(n_sum, 1e-30)
        a_prob = a_exp / a_sum
        sim = dot(a_prob * n_exp, m)
    else:
        a_sum = jnp.maximum(jnp.sum(a_exp, axis=-1, keepdims=True), 1e-30)
        n_sum = jnp.maximum(jnp.sum(n_exp, axis=-1, keepdims=True), 1e-30)
        a_prob = a_exp / a_sum
        sim = jnp.sum(a_prob * n_exp, axis=-1, keepdims=True)

    # BCE(sim, 1) with PyTorch's log clamp at -100; the neighbor softmax
    # denominator is folded into the log (never materialize n_prob).
    log_sim = jnp.maximum(jnp.log(sim) - jnp.log(n_sum), -100.0)
    log_sim = jnp.where(valid, log_sim, 0.0)
    a_prob = jnp.where(valid, a_prob, 0.0)

    def fold_rows(x):
        # (tile_rows, W) -> (8, W): leading-dim split + sum = pure vreg adds.
        return jnp.sum(
            x.reshape(tile_rows // _SUBLANES, _SUBLANES, x.shape[-1]), axis=0)

    cons_ref[...] += fold_rows(log_sim)
    prob_ref[...] += fold_rows(a_prob)


def scan_loss(anchors, neighbors, *, entropy_weight=ENTROPY_WEIGHT,
              tile_rows=None, num_cores=2):
    """Returns (total_loss, consistency_loss, entropy_loss) as f32 scalars."""
    b, n = anchors.shape
    assert neighbors.shape == (b, n)

    k = _pick_pack_factor(b, n)          # samples packed per lane row
    w = k * n
    num_rows = b // k
    # Free row-major reshape: pack k samples side by side along lanes.
    a_p = anchors.reshape(num_rows, w)
    n_p = neighbors.reshape(num_rows, w)

    sub = 16                              # sublane multiple safe for bf16 & f32
    if tile_rows is None:
        lanes_padded = _round_up(w, _LANES)
        tile_rows = _TARGET_BLOCK_BYTES // (lanes_padded * 4)
    tile_rows = max(sub, min(_round_up(int(tile_rows), sub),
                             _round_up(num_rows, sub), _MAX_TILE_ROWS))

    num_blocks = pl.cdiv(num_rows, tile_rows)
    num_cores = max(1, int(num_cores))
    tiles_per_core = pl.cdiv(num_blocks, num_cores)
    last_blk = num_blocks - 1

    def data_map(c, t):
        return (jnp.minimum(c * tiles_per_core + t, last_blk), 0)

    in_specs = [pl.BlockSpec((tile_rows, w), data_map),
                pl.BlockSpec((tile_rows, w), data_map)]
    operands = [a_p, n_p]
    if k > 1:
        grp = jnp.arange(w, dtype=jnp.int32) // n
        seg_ones = (grp[:, None] == grp[None, :]).astype(jnp.float32)  # (w, w)
        in_specs.append(pl.BlockSpec((w, w), lambda c, t: (0, 0)))
        operands.append(seg_ones)

    cons_w = w if k > 1 else 1
    out_shape = (
        jax.ShapeDtypeStruct((num_cores, _SUBLANES, cons_w), jnp.float32),
        jax.ShapeDtypeStruct((num_cores, _SUBLANES, w), jnp.float32),
    )
    out_specs = (
        pl.BlockSpec((None, _SUBLANES, cons_w), lambda c, t: (c, 0, 0)),
        pl.BlockSpec((None, _SUBLANES, w), lambda c, t: (c, 0, 0)),
    )

    kernel = functools.partial(_scan_loss_kernel, n=n, k=k, num_rows=num_rows,
                               tile_rows=tile_rows, tiles_per_core=tiles_per_core)

    itemsize = jnp.dtype(anchors.dtype).itemsize
    cost = pl.CostEstimate(
        flops=int(6 * num_rows * w * w + 20 * b * n),
        transcendentals=int(2 * b * n + 4 * b),
        bytes_accessed=int(2 * b * n * itemsize),
    )

    cons_part, prob_part = pl.pallas_call(
        kernel,
        out_shape=out_shape,
        grid=(num_cores, tiles_per_core),
        in_specs=in_specs,
        out_specs=out_specs,
        compiler_params=pltpu.CompilerParams(
            dimension_semantics=("parallel", "arbitrary"),
            vmem_limit_bytes=_VMEM_LIMIT_BYTES),
        cost_estimate=cost,
    )(*operands)

    # Tiny finalize in plain JAX (also combines the per-core partials).
    inv_b = 1.0 / b
    rep = float(n) if k > 1 else 1.0   # log_sim replicated over each segment's lanes
    consistency = -(jnp.sum(cons_part) / rep) * inv_b
    per_class = jnp.sum(prob_part.reshape(num_cores * _SUBLANES, k, n), axis=(0, 1))
    p = jnp.maximum(per_class * inv_b, 1e-8)
    ent = -jnp.sum(p * jnp.log(p))
    total = consistency - entropy_weight * ent
    return total, consistency, ent


def scan_loss_ref(anchors, neighbors, entropy_weight=ENTROPY_WEIGHT):
    """Pure-JAX reference matching the PyTorch SCANLoss module."""
    a_prob = jax.nn.softmax(anchors.astype(jnp.float32), axis=1)
    n_prob = jax.nn.softmax(neighbors.astype(jnp.float32), axis=1)
    sim = jnp.sum(a_prob * n_prob, axis=1)
    consistency = -jnp.mean(jnp.maximum(jnp.log(sim), -100.0))
    p = jnp.maximum(jnp.mean(a_prob, axis=0), 1e-8)
    ent = -jnp.sum(p * jnp.log(p))
    total = consistency - entropy_weight * ent
    return total, consistency, ent


if __name__ == "__main__":
    key = jax.random.PRNGKey(0)
    k1, k2, k3, k4, k5, k6 = jax.random.split(key, 6)

    def check(got, want):
        for g, r in zip(got, want):
            assert jnp.allclose(g, r, atol=2e-4, rtol=1e-4), (g, r)

    # Config 1: packed path (n=32 -> 4 samples per 128-lane row), multi-tile
    # grid, 2-way core split, clamped OOB tiles, masked partial tail tile.
    b1, n1 = 532, 32
    a1 = jax.random.normal(k1, (b1, n1), dtype=jnp.float32)
    nb1 = jax.random.normal(k2, (b1, n1), dtype=jnp.float32)
    out1 = scan_loss(a1, nb1, tile_rows=64, num_cores=2)
    jax.block_until_ready(out1)
    check(out1, scan_loss_ref(a1, nb1))

    # Config 2: bf16 inputs stay bf16 in HBM (kernel upcasts per tile), 1 core.
    b2, n2 = 16, 32
    a2 = jax.random.normal(k3, (b2, n2), dtype=jnp.bfloat16)
    nb2 = jax.random.normal(k4, (b2, n2), dtype=jnp.bfloat16)
    out2 = scan_loss(a2, nb2, num_cores=1)
    jax.block_until_ready(out2)
    check(out2, scan_loss_ref(a2, nb2))

    # Config 3: num_classes >= 128 -> unpacked fallback path (k == 1).
    b3, n3 = 24, 160
    a3 = jax.random.normal(k5, (b3, n3), dtype=jnp.float32)
    nb3 = jax.random.normal(k6, (b3, n3), dtype=jnp.float32)
    out3 = scan_loss(a3, nb3, num_cores=2)
    jax.block_until_ready(out3)
    check(out3, scan_loss_ref(a3, nb3))

    print("KERNEL_OK")
</pallas_src>

<mosaic_0001>
module attributes {stable_mosaic.version = 11 : i64} {
  func.func @_scan_loss_kernel(%arg0: i32, %arg1: i32, %arg2: memref<64x128xf32, #tpu.memory_space<vmem>>, %arg3: memref<64x128xf32, #tpu.memory_space<vmem>>, %arg4: memref<128x128xf32, #tpu.memory_space<vmem>>, %arg5: memref<1x8x128xf32, #tpu.memory_space<vmem>>, %arg6: memref<1x8x128xf32, #tpu.memory_space<vmem>>) attributes {dimension_semantics = [#tpu.dimension_semantics<parallel>, #tpu.dimension_semantics<arbitrary>], iteration_bounds = array<i64: 2, 2>, scalar_prefetch = 0 : i64, scratch_operands = 0 : i64, tpu.core_type = #tpu.core_type<tc>, window_params = [{transform_indices = @transform_0, window_bounds = array<i64: 64, 128>}, {transform_indices = @transform_1, window_bounds = array<i64: 64, 128>}, {pipeline_mode = #tpu.pipeline_mode<synchronous>, transform_indices = @transform_2, window_bounds = array<i64: 128, 128>}, {transform_indices = @transform_3, window_bounds = array<i64: 1, 8, 128>}, {transform_indices = @transform_4, window_bounds = array<i64: 1, 8, 128>}]} {
    %c0_i32 = arith.constant 0 : i32
    %0 = arith.cmpi eq, %arg1, %c0_i32 : i32
    %1 = arith.extui %0 : i1 to i32
    %c0_i32_0 = arith.constant 0 : i32
    %2 = arith.cmpi ne, %1, %c0_i32_0 : i32
    scf.if %2 {
      %cst_31 = arith.constant 0.000000e+00 : f32
      %70 = vector.broadcast %cst_31 : f32 to vector<8x128xf32>
      %c0_32 = arith.constant 0 : index
      %c0_33 = arith.constant 0 : index
      %c0_34 = arith.constant 0 : index
      %71 = vector.load %arg5[%c0_32, %c0_33, %c0_34] : memref<1x8x128xf32, #tpu.memory_space<vmem>>, vector<1x8x128xf32>
      %72 = vector.shape_cast %71 : vector<1x8x128xf32> to vector<8x128xf32>
      %73 = vector.shape_cast %70 : vector<8x128xf32> to vector<1x8x128xf32>
      tpu.vector_store %arg5[%c0_32, %c0_33, %c0_34], %73 {strides = array<i32>} : memref<1x8x128xf32, #tpu.memory_space<vmem>>, vector<1x8x128xf32>,
      %cst_35 = arith.constant 0.000000e+00 : f32
      %74 = vector.broadcast %cst_35 : f32 to vector<8x128xf32>
      %c0_36 = arith.constant 0 : index
      %c0_37 = arith.constant 0 : index
      %c0_38 = arith.constant 0 : index
      %75 = vector.load %arg6[%c0_36, %c0_37, %c0_38] : memref<1x8x128xf32, #tpu.memory_space<vmem>>, vector<1x8x128xf32>
      %76 = vector.shape_cast %75 : vector<1x8x128xf32> to vector<8x128xf32>
      %77 = vector.shape_cast %74 : vector<8x128xf32> to vector<1x8x128xf32>
      tpu.vector_store %arg6[%c0_36, %c0_37, %c0_38], %77 {strides = array<i32>} : memref<1x8x128xf32, #tpu.memory_space<vmem>>, vector<1x8x128xf32>,
    } else {
    }
    %c2_i32 = arith.constant 2 : i32
    %3 = arith.muli %arg0, %c2_i32 : i32
    %4 = arith.addi %3, %arg1 : i32
    %5 = tpu.iota {dimensions = array<i32: 0>} : vector<64x1xi32>
    %c64_i32 = arith.constant 64 : i32
    %6 = arith.muli %4, %c64_i32 : i32
    %7 = vector.broadcast %6 : i32 to vector<64x1xi32>
    %8 = arith.addi %7, %5 : vector<64x1xi32>
    %c133_i32 = arith.constant 133 : i32
    %9 = vector.broadcast %c133_i32 : i32 to vector<64x1xi32>
    %10 = arith.cmpi slt, %8, %9 : vector<64x1xi32>
    %c0 = arith.constant 0 : index
    %c0_1 = arith.constant 0 : index
    %11 = vector.load %arg2[%c0, %c0_1] : memref<64x128xf32, #tpu.memory_space<vmem>>, vector<64x128xf32>
    %cst = arith.constant 0.000000e+00 : f32
    %12 = vector.shape_cast %10 : vector<64x1xi1> to vector<64x1xi1>
    %13 = vector.broadcast %12 : vector<64x1xi1> to vector<64x128xi1>
    %14 = vector.broadcast %cst : f32 to vector<64x128xf32>
    %15 = arith.select %13, %11, %14 : vector<64x128xi1>, vector<64x128xf32>
    %c0_2 = arith.constant 0 : index
    %c0_3 = arith.constant 0 : index
    %16 = vector.load %arg3[%c0_2, %c0_3] : memref<64x128xf32, #tpu.memory_space<vmem>>, vector<64x128xf32>
    %cst_4 = arith.constant 0.000000e+00 : f32
    %17 = vector.shape_cast %10 : vector<64x1xi1> to vector<64x1xi1>
    %18 = vector.broadcast %17 : vector<64x1xi1> to vector<64x128xi1>
    %19 = vector.broadcast %cst_4 : f32 to vector<64x128xf32>
    %20 = arith.select %18, %16, %19 : vector<64x128xi1>, vector<64x128xf32>
    %cst_5 = arith.constant dense<0xFF800000> : vector<64xf32>
    %21 = vector.multi_reduction <maximumf>, %15, %cst_5 [1] : vector<64x128xf32> to vector<64xf32>
    %22 = vector.shape_cast %21 : vector<64xf32> to vector<64x1xf32>
    %23 = vector.broadcast %22 : vector<64x1xf32> to vector<64x128xf32>
    %24 = arith.subf %15, %23 : vector<64x128xf32>
    %25 = math.exp %24 : vector<64x128xf32>
    %cst_6 = arith.constant dense<0xFF800000> : vector<64xf32>
    %26 = vector.multi_reduction <maximumf>, %20, %cst_6 [1] : vector<64x128xf32> to vector<64xf32>
    %27 = vector.shape_cast %26 : vector<64xf32> to vector<64x1xf32>
    %28 = vector.broadcast %27 : vector<64x1xf32> to vector<64x128xf32>
    %29 = arith.subf %20, %28 : vector<64x128xf32>
    %30 = math.exp %29 : vector<64x128xf32>
    %c0_7 = arith.constant 0 : index
    %c0_8 = arith.constant 0 : index
    %31 = vector.load %arg4[%c0_7, %c0_8] : memref<128x128xf32, #tpu.memory_space<vmem>>, vector<128x128xf32>
    %cst_9 = arith.constant dense<0.000000e+00> : vector<64x128xf32>
    %32 = tpu.matmul %25, %31, %cst_9 {dimension_numbers = #tpu.dot_dimension_numbers<[1], [0], [0], [1], [0, 0, 1, 1], [], []>, precision = #tpu.contract_precision<fp32>} : vector<64x128xf32>, vector<128x128xf32>, vector<64x128xf32> -> vector<64x128xf32>
    %cst_10 = arith.constant dense<0.000000e+00> : vector<64x128xf32>
    %33 = tpu.matmul %30, %31, %cst_10 {dimension_numbers = #tpu.dot_dimension_numbers<[1], [0], [0], [1], [0, 0, 1, 1], [], []>, precision = #tpu.contract_precision<fp32>} : vector<64x128xf32>, vector<128x128xf32>, vector<64x128xf32> -> vector<64x128xf32>
    %cst_11 = arith.constant 1.000000e-30 : f32
    %34 = vector.broadcast %cst_11 : f32 to vector<64x128xf32>
    %35 = arith.maximumf %32, %34 : vector<64x128xf32>
    %cst_12 = arith.constant 1.000000e-30 : f32
    %36 = vector.broadcast %cst_12 : f32 to vector<64x128xf32>
    %37 = arith.maximumf %33, %36 : vector<64x128xf32>
    %38 = arith.divf %25, %35 : vector<64x128xf32>
    %39 = arith.mulf %38, %30 : vector<64x128xf32>
    %cst_13 = arith.constant dense<0.000000e+00> : vector<64x128xf32>
    %40 = tpu.matmul %39, %31, %cst_13 {dimension_numbers = #tpu.dot_dimension_numbers<[1], [0], [0], [1], [0, 0, 1, 1], [], []>, precision = #tpu.contract_precision<fp32>} : vector<64x128xf32>, vector<128x128xf32>, vector<64x128xf32> -> vector<64x128xf32>
    %41 = math.log %40 : vector<64x128xf32>
    %42 = math.log %37 : vector<64x128xf32>
    %43 = arith.subf %41, %42 : vector<64x128xf32>
    %cst_14 = arith.constant -1.000000e+02 : f32
    %44 = vector.broadcast %cst_14 : f32 to vector<64x128xf32>
    %45 = arith.maximumf %43, %44 : vector<64x128xf32>
    %cst_15 = arith.constant 0.000000e+00 : f32
    %46 = vector.shape_cast %10 : vector<64x1xi1> to vector<64x1xi1>
    %47 = vector.broadcast %46 : vector<64x1xi1> to vector<64x128xi1>
    %48 = vector.broadcast %cst_15 : f32 to vector<64x128xf32>
    %49 = arith.select %47, %45, %48 : vector<64x128xi1>, vector<64x128xf32>
    %cst_16 = arith.constant 0.000000e+00 : f32
    %50 = vector.shape_cast %10 : vector<64x1xi1> to vector<64x1xi1>
    %51 = vector.broadcast %50 : vector<64x1xi1> to vector<64x128xi1>
    %52 = vector.broadcast %cst_16 : f32 to vector<64x128xf32>
    %53 = arith.select %51, %38, %52 : vector<64x128xi1>, vector<64x128xf32>
    %c0_17 = arith.constant 0 : index
    %c0_18 = arith.constant 0 : index
    %c0_19 = arith.constant 0 : index
    %54 = vector.load %arg5[%c0_17, %c0_18, %c0_19] : memref<1x8x128xf32, #tpu.memory_space<vmem>>, vector<1x8x128xf32>
    %55 = vector.shape_cast %54 : vector<1x8x128xf32> to vector<8x128xf32>
    %56 = vector.shape_cast %49 : vector<64x128xf32> to vector<8x8x128xf32>
    %cst_20 = arith.constant dense<0.000000e+00> : vector<8x128xf32>
    %57 = vector.multi_reduction <add>, %56, %cst_20 [0] : vector<8x8x128xf32> to vector<8x128xf32>
    %58 = arith.addf %55, %57 : vector<8x128xf32>
    %c0_21 = arith.constant 0 : index
    %c0_22 = arith.constant 0 : index
    %c0_23 = arith.constant 0 : index
    %59 = vector.load %arg5[%c0_21, %c0_22, %c0_23] : memref<1x8x128xf32, #tpu.memory_space<vmem>>, vector<1x8x128xf32>
    %60 = vector.shape_cast %59 : vector<1x8x128xf32> to vector<8x128xf32>
    %61 = vector.shape_cast %58 : vector<8x128xf32> to vector<1x8x128xf32>
    tpu.vector_store %arg5[%c0_21, %c0_22, %c0_23], %61 {strides = array<i32>} : memref<1x8x128xf32, #tpu.memory_space<vmem>>, vector<1x8x128xf32>,
    %c0_24 = arith.constant 0 : index
    %c0_25 = arith.constant 0 : index
    %c0_26 = arith.constant 0 : index
    %62 = vector.load %arg6[%c0_24, %c0_25, %c0_26] : memref<1x8x128xf32, #tpu.memory_space<vmem>>, vector<1x8x128xf32>
    %63 = vector.shape_cast %62 : vector<1x8x128xf32> to vector<8x128xf32>
    %64 = vector.shape_cast %53 : vector<64x128xf32> to vector<8x8x128xf32>
    %cst_27 = arith.constant dense<0.000000e+00> : vector<8x128xf32>
    %65 = vector.multi_reduction <add>, %64, %cst_27 [0] : vector<8x8x128xf32> to vector<8x128xf32>
    %66 = arith.addf %63, %65 : vector<8x128xf32>
    %c0_28 = arith.constant 0 : index
    %c0_29 = arith.constant 0 : index
    %c0_30 = arith.constant 0 : index
    %67 = vector.load %arg6[%c0_28, %c0_29, %c0_30] : memref<1x8x128xf32, #tpu.memory_space<vmem>>, vector<1x8x128xf32>
    %68 = vector.shape_cast %67 : vector<1x8x128xf32> to vector<8x128xf32>
    %69 = vector.shape_cast %66 : vector<8x128xf32> to vector<1x8x128xf32>
    tpu.vector_store %arg6[%c0_28, %c0_29, %c0_30], %69 {strides = array<i32>} : memref<1x8x128xf32, #tpu.memory_space<vmem>>, vector<1x8x128xf32>,
    return
  }
  func.func @transform_0(%arg0: i32, %arg1: i32) -> (i32, i32) {
    %c2_i32 = arith.constant 2 : i32
    %0 = arith.muli %arg0, %c2_i32 : i32
    %1 = arith.addi %0, %arg1 : i32
    %c2_i32_0 = arith.constant 2 : i32
    %2 = arith.minsi %1, %c2_i32_0 : i32
    %c0_i32 = arith.constant 0 : i32
    %c0_i32_1 = arith.constant 0 : i32
    return %2, %c0_i32 : i32, i32
  }
  func.func @transform_1(%arg0: i32, %arg1: i32) -> (i32, i32) {
    %c2_i32 = arith.constant 2 : i32
    %0 = arith.muli %arg0, %c2_i32 : i32
    %1 = arith.addi %0, %arg1 : i32
    %c2_i32_0 = arith.constant 2 : i32
    %2 = arith.minsi %1, %c2_i32_0 : i32
    %c0_i32 = arith.constant 0 : i32
    %c0_i32_1 = arith.constant 0 : i32
    return %2, %c0_i32 : i32, i32
  }
  func.func @transform_2(%arg0: i32, %arg1: i32) -> (i32, i32) {
    %c0_i32 = arith.constant 0 : i32
    %c0_i32_0 = arith.constant 0 : i32
    %c0_i32_1 = arith.constant 0 : i32
    return %c0_i32, %c0_i32_0 : i32, i32
  }
  func.func @transform_3(%arg0: i32, %arg1: i32) -> (i32, i32, i32) {
    %c0_i32 = arith.constant 0 : i32
    %c0_i32_0 = arith.constant 0 : i32
    %c0_i32_1 = arith.constant 0 : i32
    return %arg0, %c0_i32, %c0_i32_0 : i32, i32, i32
  }
  func.func @transform_4(%arg0: i32, %arg1: i32) -> (i32, i32, i32) {
    %c0_i32 = arith.constant 0 : i32
    %c0_i32_0 = arith.constant 0 : i32
    %c0_i32_1 = arith.constant 0 : i32
    return %arg0, %c0_i32, %c0_i32_0 : i32, i32, i32
  }
}

</mosaic_0001>

<llo_original>
// kernel: tpu_custom_call.1
$region0: #{tpu_custom_call.1}
  #allocation0 [shape = 'u32[]', space=smem, size = 0x4, offset = 0x4, fixed_abs, tag = 'smem constant byte address 0x4 - core index']
  #allocation1 [shape = 'u32[144,128]{1,0:T(1,128)}', space=vmem, size = 0x12000, scoped, tag = 'internal scratch']
  %s0 = inlined_call_operand.hbm [shape: f32[133,128], index: 0, kind: input, shape index: {}]
  %s1 = inlined_call_operand.hbm [shape: f32[133,128], index: 1, kind: input, shape index: {}]
  %s2 = inlined_call_operand.hbm [shape: f32[128,128], index: 2, kind: input, shape index: {}]
  %s3 = inlined_call_operand.hbm [shape: f32[2,8,128], index: 3, kind: output, shape index: {0}]
  %s4 = inlined_call_operand.hbm [shape: f32[2,8,128], index: 4, kind: output, shape index: {1}]
  %5 = xla_tuple %s3, %s4
  %s6 = sld [smem:[#allocation0]]
  $region69: #{tpu_custom_call.1} parent=0
    _
  %s8 = ssub.s32 1, %s6
  %s9 = scalar_select 0, %s8, %s6
  $region1: #{tpu_custom_call.1} parent=0
    #allocation2 [shape = 'u8[65536]{0}', space=vmem, size = 0x10000, scoped, tag = 'input window, operand 0']
    #allocation3 [shape = 's32[2]{0}', space=sflag, size = 0x8, scoped, tag = 'scoped memory for tpu_custom_call.1']
    #allocation4 [shape = 's32[2]{0}', space=sflag, size = 0x8, scoped, tag = 'scoped memory for tpu_custom_call.1']
    #allocation5 [shape = 'u8[65536]{0}', space=vmem, size = 0x10000, scoped, tag = 'input window, operand 1']
    #allocation6 [shape = 's32[2]{0}', space=sflag, size = 0x8, scoped, tag = 'scoped memory for tpu_custom_call.1']
    #allocation7 [shape = 'u8[65536]{0}', space=vmem, size = 0x10000, scoped, tag = 'input window, operand 2, single buffered']
    #allocation8 [shape = 'u8[8192]{0}', space=vmem, size = 0x2000, scoped, tag = 'output window, operand 0']
    #allocation9 [shape = 'u8[8192]{0}', space=vmem, size = 0x2000, scoped, tag = 'output window, operand 1']
    #allocation10 [shape = 's32[2]{0}', space=sflag, size = 0x8, scoped, tag = 'scoped memory for tpu_custom_call.1']
    %10 = vsyncpa [#allocation3], 0
    %s11 = scalar_lea.sflag [#allocation3], 1
    %12 = vsyncpa %s11, 0
    %13 = vsyncpa [#allocation6], 0
    %s14 = scalar_lea.sflag [#allocation6], 1
    %15 = vsyncpa %s14, 0
    %16 = vsyncpa [#allocation4], 0
    %s17 = scalar_lea.sflag [#allocation4], 1
    %18 = vsyncpa %s17, 0
    %19 = vsyncpa [#allocation10], 0
    %s20 = scalar_lea.sflag [#allocation10], 1
    %21 = vsyncpa %s20, 0
    loop: start=0, step=1, limit=6
    $region2: #{tpu_custom_call.1} parent=1 // loop_pre_header
      _
    $region3: #{tpu_custom_call.1} parent=1 // loop_header
      %s23 = sphi 0, %s27
      %p24 = scmp.ge.s32.totalorder %s23, 6
      %s30 = sphi 0, %s42
      %s31 = sphi 0, %s38
      %s32 = sphi 0, %s30
      %s33 = sphi 0, %s31
      %s34 = sphi 0, %s32
      %s35 = sphi 0, %s33
      %s53 = sphi 0, %s55
      %s56 = sphi 0, %s53
      %s57 = sphi 0, %s56
      %s73 = sphi 0, %s57
      %s87 = sphi 0, %s89
      %s90 = sphi 0, %s87
      %s91 = sphi 0, %s90
      %s107 = sphi 0, %s91
      %s111 = sphi 0, %s111
      %s113 = sphi 0, %s111
      %s114 = sphi 0, %s113
      %s128 = sphi 0, %s114
      %s134 = sphi 0, %s136
      %s137 = sphi 0, %s134
      %s138 = sphi 0, %s137
      %s154 = sphi 0, %s138
      %s160 = sphi 0, %s162
      %s163 = sphi 0, %s160
      %s164 = sphi 0, %s163
      %s180 = sphi 0, %s164
    $region4: #{tpu_custom_call.1} parent=1 // loop_header_branch
      %26 = sbr.rel (%p24) target = $region8
    $region5: #{tpu_custom_call.1} parent=1 // loop_body
      %s28 = ssub.s32 %s23, 1
      %s29 = ssub.s32 %s23, 2
      %s36 = sadd.s32 1, %s31
      %p37 = scmp.ge.s32.totalorder %s36, 2
      %s38 = scalar_select %p37, 0, %s36
      %s39 = sadd.s32 1, %s30
      %s40 = scalar_select %p37, %s39, %s30
      %p41 = scmp.ge.s32.totalorder %s40, 2
      %s42 = scalar_select %p41, 0, %s40
      %s43 = smul.u32 %s30, 2
      %s44 = sadd.s32 %s43, %s31
      %p45 = scmp.lt.s32.totalorder %s44, 2
      %s46 = scalar_select %p45, %s44, 2
      %s47 = smul.u32 %s42, 2
      %s48 = sadd.s32 %s47, %s38
      %p49 = scmp.lt.s32.totalorder %s48, 2
      %s50 = scalar_select %p49, %s48, 2
      %s51 = ssub.s32 %s46, %s50
      %p52 = scmp.eq.s32.totalorder %s51, 0
      %s54 = sadd.s32 %s53, 1
      %s55 = scalar_select %p52, %s53, %s54
      %p58 = pneg %p52
      %p59 = scmp.eq.s32.totalorder %s23, 3
      %p60 = por %p58, %p59
      %p61 = scmp.ne.s32.totalorder %s53, %s56
      %p62 = scmp.eq.s32.totalorder %s23, 0
      %p63 = por %p61, %p62
      %p64 = scmp.ne.s32.totalorder %s53, %s56
      %p65 = scmp.eq.s32.totalorder %s28, 3
      %p66 = por %p64, %p65
      %p67 = scmp.ne.s32.totalorder %s56, %s57
      %p68 = scmp.eq.s32.totalorder %s28, 0
      %p69 = por %p67, %p68
      %p70 = scmp.ne.s32.totalorder %s56, %s57
      %p71 = scmp.eq.s32.totalorder %s29, 3
      %p72 = por %p70, %p71
      %p74 = scmp.ne.s32.totalorder %s57, %s73
      %p75 = scmp.eq.s32.totalorder %s29, 0
      %p76 = por %p74, %p75
      %s77 = smul.u32 %s30, 2
      %s78 = sadd.s32 %s77, %s31
      %p79 = scmp.lt.s32.totalorder %s78, 2
      %s80 = scalar_select %p79, %s78, 2
      %s81 = smul.u32 %s42, 2
      %s82 = sadd.s32 %s81, %s38
      %p83 = scmp.lt.s32.totalorder %s82, 2
      %s84 = scalar_select %p83, %s82, 2
      %s85 = ssub.s32 %s80, %s84
      %p86 = scmp.eq.s32.totalorder %s85, 0
      %s88 = sadd.s32 %s87, 1
      %s89 = scalar_select %p86, %s87, %s88
      %p92 = pneg %p86
      %p93 = scmp.eq.s32.totalorder %s23, 3
      %p94 = por %p92, %p93
      %p95 = scmp.ne.s32.totalorder %s87, %s90
      %p96 = scmp.eq.s32.totalorder %s23, 0
      %p97 = por %p95, %p96
      %p98 = scmp.ne.s32.totalorder %s87, %s90
      %p99 = scmp.eq.s32.totalorder %s28, 3
      %p100 = por %p98, %p99
      %p101 = scmp.ne.s32.totalorder %s90, %s91
      %p102 = scmp.eq.s32.totalorder %s28, 0
      %p103 = por %p101, %p102
      %p104 = scmp.ne.s32.totalorder %s90, %s91
      %p105 = scmp.eq.s32.totalorder %s29, 3
      %p106 = por %p104, %p105
      %p108 = scmp.ne.s32.totalorder %s91, %s107
      %p109 = scmp.eq.s32.totalorder %s29, 0
      %p110 = por %p108, %p109
      %s112 = sadd.s32 %s111, 1
      %p115 = scmp.eq.s32.totalorder %s23, 3
      %p116 = scmp.ne.s32.totalorder %s111, %s113
      %p117 = scmp.eq.s32.totalorder %s23, 0
      %p118 = por %p116, %p117
      %p119 = scmp.ne.s32.totalorder %s111, %s113
      %p120 = scmp.eq.s32.totalorder %s28, 3
      %p121 = por %p119, %p120
      %p122 = scmp.ne.s32.totalorder %s113, %s114
      %p123 = scmp.eq.s32.totalorder %s28, 0
      %p124 = por %p122, %p123
      %p125 = scmp.ne.s32.totalorder %s113, %s114
      %p126 = scmp.eq.s32.totalorder %s29, 3
      %p127 = por %p125, %p126
      %p129 = scmp.ne.s32.totalorder %s114, %s128
      %p130 = scmp.eq.s32.totalorder %s29, 0
      %p131 = por %p129, %p130
      %s132 = ssub.s32 %s30, %s42
      %p133 = scmp.eq.s32.totalorder %s132, 0
      %s135 = sadd.s32 %s134, 1
      %s136 = scalar_select %p133, %s134, %s135
      %p139 = pneg %p133
      %p140 = scmp.eq.s32.totalorder %s23, 3
      %p141 = por %p139, %p140
      %p142 = scmp.ne.s32.totalorder %s134, %s137
      %p143 = scmp.eq.s32.totalorder %s23, 0
      %p144 = por %p142, %p143
      %p145 = scmp.ne.s32.totalorder %s134, %s137
      %p146 = scmp.eq.s32.totalorder %s28, 3
      %p147 = por %p145, %p146
      %p148 = scmp.ne.s32.totalorder %s137, %s138
      %p149 = scmp.eq.s32.totalorder %s28, 0
      %p150 = por %p148, %p149
      %p151 = scmp.ne.s32.totalorder %s137, %s138
      %p152 = scmp.eq.s32.totalorder %s29, 3
      %p153 = por %p151, %p152
      %p155 = scmp.ne.s32.totalorder %s138, %s154
      %p156 = scmp.eq.s32.totalorder %s29, 0
      %p157 = por %p155, %p156
      %s158 = ssub.s32 %s30, %s42
      %p159 = scmp.eq.s32.totalorder %s158, 0
      %s161 = sadd.s32 %s160, 1
      %s162 = scalar_select %p159, %s160, %s161
      %p165 = pneg %p159
      %p166 = scmp.eq.s32.totalorder %s23, 3
      %p167 = por %p165, %p166
      %p168 = scmp.ne.s32.totalorder %s160, %s163
      %p169 = scmp.eq.s32.totalorder %s23, 0
      %p170 = por %p168, %p169
      %p171 = scmp.ne.s32.totalorder %s160, %s163
      %p172 = scmp.eq.s32.totalorder %s28, 3
      %p173 = por %p171, %p172
      %p174 = scmp.ne.s32.totalorder %s163, %s164
      %p175 = scmp.eq.s32.totalorder %s28, 0
      %p176 = por %p174, %p175
      %p177 = scmp.ne.s32.totalorder %s163, %s164
      %p178 = scmp.eq.s32.totalorder %s29, 3
      %p179 = por %p177, %p178
      %p181 = scmp.ne.s32.totalorder %s164, %s180
      %p182 = scmp.eq.s32.totalorder %s29, 0
      %p183 = por %p181, %p182
      %p184 = scmp.le.s32.totalorder 1, %s23
      %p185 = scmp.lt.s32.totalorder %s23, 5
      %p186 = pnand %p184, %p185
      %p187 = pneg %p186
      // Predicated region
      $region9: #{tpu_custom_call.1} parent=5 // pred_check
        _
      $region10: #{tpu_custom_call.1} parent=5 // pred_check_branch
        %189 = sbr.rel (%p186) target = $region12
      $region11: #{tpu_custom_call.1} parent=5 // pred_region
        %s190 = ssub.s32 %s23, 1
        // Predicated region
        $region13: #{tpu_custom_call.1} parent=11 // pred_check
          %p191 = pneg %p124
        $region14: #{tpu_custom_call.1} parent=11 // pred_check_branch
          %193 = sbr.rel (%p191) target = $region16
        $region15: #{tpu_custom_call.1} parent=11 // pred_region
          %s195 = ssub.s32 2048, 2048
          %196 = vsyncadd [#allocation6], %s195
          %s197 = sshll.u32 [#allocation7], 4
          %s198 = int_to_ptr.vmem [resolvable:$true] %s197
          %203 = dma.hbm_to_vmem [thread:$0]  %s2, 2048, %s198, [#allocation6], 128, 128, 8
        $region16: #{tpu_custom_call.1} parent=11 // pred_fallthru
          _
      $region12: #{tpu_custom_call.1} parent=5 // pred_fallthru
        _
      %p204 = scmp.lt.s32.totalorder %s23, 4
      // Predicated region
      $region17: #{tpu_custom_call.1} parent=5 // pred_check
        %p205 = pneg %p204
      $region18: #{tpu_custom_call.1} parent=5 // pred_check_branch
        %207 = sbr.rel (%p205) target = $region20
      $region19: #{tpu_custom_call.1} parent=5 // pred_region
        // Predicated region
        $region21: #{tpu_custom_call.1} parent=19 // pred_check
          %p208 = pneg %p63
        $region22: #{tpu_custom_call.1} parent=19 // pred_check_branch
          %210 = sbr.rel (%p208) target = $region24
        $region23: #{tpu_custom_call.1} parent=19 // pred_region
          %s211 = sand.u32 %s53, 1
          %s212 = scalar_lea.sflag [#allocation3], %s211
          %s213 = sand.u32 %s53, 1
          %s214 = smul.addr %s213, 64
          %s215 = scalar_lea.vmem [#allocation2], %s214
          %s216 = smul.u32 %s30, 2
          %s217 = sadd.s32 %s216, %s31
          %p218 = scmp.lt.s32.totalorder %s217, 2
          %s219 = scalar_select %p218, %s217, 2
          %s220 = smul.u32 8, %s219
          %s221 = ssub.s32 17, %s220
          %p222 = scmp.lt.s32.totalorder %s221, 8
          %s223 = scalar_select %p222, %s221, 8
          %s224 = smul.u32 128, %s223
          %s226 = ssub.s32 1024, %s224
          %227 = vsyncadd %s212, %s226
          %p228 = scmp.ne.s32.totalorder 0, %s224
          %s229 = smul.addr %s220, 128
          %s230 = scalar_lea.hbm %s0, %s229
          %s231 = smul.u32 8, %s223
          %s232 = sshll.u32 %s215, 4
          %s233 = int_to_ptr.vmem [resolvable:$true] %s232
          %s234 = sshll.u32 %s231, 4
          %238 = dma.hbm_to_vmem [thread:$0]  (%p228), %s230, %s234, %s233, %s212, 128, 128, 8
        $region24: #{tpu_custom_call.1} parent=19 // pred_fallthru
          _
        // Predicated region
        $region25: #{tpu_custom_call.1} parent=19 // pred_check
          %p239 = pneg %p97
        $region26: #{tpu_custom_call.1} parent=19 // pred_check_branch
          %241 = sbr.rel (%p239) target = $region28
        $region27: #{tpu_custom_call.1} parent=19 // pred_region
          %s242 = sand.u32 %s23, 1
          %s243 = scalar_lea.sflag [#allocation6], %s242
          %s244 = sand.u32 %s87, 1
          %s245 = smul.addr %s244, 64
          %s246 = scalar_lea.vmem [#allocation5], %s245
          %s247 = smul.u32 %s30, 2
          %s248 = sadd.s32 %s247, %s31
          %p249 = scmp.lt.s32.totalorder %s248, 2
          %s250 = scalar_select %p249, %s248, 2
          %s251 = smul.u32 8, %s250
          %s252 = ssub.s32 17, %s251
          %p253 = scmp.lt.s32.totalorder %s252, 8
          %s254 = scalar_select %p253, %s252, 8
          %s255 = smul.u32 128, %s254
          %s257 = ssub.s32 1024, %s255
          %258 = vsyncadd %s243, %s257
          %p259 = scmp.ne.s32.totalorder 0, %s255
          %s260 = smul.addr %s251, 128
          %s261 = scalar_lea.hbm %s1, %s260
          %s262 = smul.u32 8, %s254
          %s263 = sshll.u32 %s246, 4
          %s264 = int_to_ptr.vmem [resolvable:$true] %s263
          %s265 = sshll.u32 %s262, 4
          %269 = dma.hbm_to_vmem [thread:$0]  (%p259), %s261, %s265, %s264, %s243, 128, 128, 8
        $region28: #{tpu_custom_call.1} parent=19 // pred_fallthru
          _
      $region20: #{tpu_custom_call.1} parent=5 // pred_fallthru
        _
      %p270 = scmp.le.s32.totalorder 1, %s23
      %p271 = scmp.lt.s32.totalorder %s23, 5
      %p272 = pnand %p270, %p271
      %p273 = pneg %p272
      // Predicated region
      $region29: #{tpu_custom_call.1} parent=5 // pred_check
        _
      $region30: #{tpu_custom_call.1} parent=5 // pred_check_branch
        %275 = sbr.rel (%p272) target = $region32
      $region31: #{tpu_custom_call.1} parent=5 // pred_region
        %s276 = ssub.s32 %s23, 1
        %s277 = sand.u32 %s56, 1
        %s278 = scalar_lea.sflag [#allocation3], %s277
        %s279 = sand.u32 %s56, 1
        %s280 = smul.addr %s279, 64
        %s281 = scalar_lea.vmem [#allocation2], %s280
        // Predicated region
        $region33: #{tpu_custom_call.1} parent=31 // pred_check
          %p282 = pneg %p69
        $region34: #{tpu_custom_call.1} parent=31 // pred_check_branch
          %284 = sbr.rel (%p282) target = $region36
        $region35: #{tpu_custom_call.1} parent=31 // pred_region
          %285 = dma.done %s278, 1024
        $region36: #{tpu_custom_call.1} parent=31 // pred_fallthru
          _
        %s286 = sand.u32 %s28, 1
        %s287 = scalar_lea.sflag [#allocation6], %s286
        %s288 = sand.u32 %s90, 1
        %s289 = smul.addr %s288, 64
        %s290 = scalar_lea.vmem [#allocation5], %s289
        // Predicated region
        $region37: #{tpu_custom_call.1} parent=31 // pred_check
          %p291 = pneg %p103
        $region38: #{tpu_custom_call.1} parent=31 // pred_check_branch
          %293 = sbr.rel (%p291) target = $region40
        $region39: #{tpu_custom_call.1} parent=31 // pred_region
          %294 = dma.done %s287, 1024
        $region40: #{tpu_custom_call.1} parent=31 // pred_fallthru
          _
        // Predicated region
        $region41: #{tpu_custom_call.1} parent=31 // pred_check
          %p295 = pneg %p124
        $region42: #{tpu_custom_call.1} parent=31 // pred_check_branch
          %297 = sbr.rel (%p295) target = $region44
        $region43: #{tpu_custom_call.1} parent=31 // pred_region
          %298 = dma.done [#allocation6], 2048
        $region44: #{tpu_custom_call.1} parent=31 // pred_fallthru
          _
        %s299 = sand.u32 %s56, 1
        %s300 = scalar_lea.sflag [#allocation3], %s299
        %s301 = sand.u32 %s56, 1
        %s302 = smul.addr %s301, 64
        %s303 = scalar_lea.vmem [#allocation2], %s302
        %p304 = pneg %p69
        %p305 = pneg %p66
        %s306 = sand.u32 %s28, 1
        %s307 = scalar_lea.sflag [#allocation6], %s306
        %s308 = sand.u32 %s90, 1
        %s309 = smul.addr %s308, 64
        %s310 = scalar_lea.vmem [#allocation5], %s309
        %p311 = pneg %p103
        %p312 = pneg %p100
        %p313 = pneg %p124
        %p314 = pneg %p121
        %p315 = pneg %p150
        %p316 = pneg %p147
        %s317 = sand.u32 %s137, 1
        %s318 = scalar_lea.sflag [#allocation4], %s317
        %s319 = sand.u32 %s137, 1
        %s320 = smul.addr %s319, 8
        %s321 = scalar_lea.vmem [#allocation8], %s320
        %p322 = pneg %p176
        %p323 = pneg %p173
        %s324 = sand.u32 %s163, 1
        %s325 = scalar_lea.sflag [#allocation10], %s324
        %s326 = sand.u32 %s163, 1
        %s327 = smul.addr %s326, 8
        %s328 = scalar_lea.vmem [#allocation9], %s327
        %s329 = smul.u32 %s32, 2
        %s330 = sadd.s32 %s329, %s33
        %p331 = scmp.lt.s32.totalorder %s330, 2
        %s332 = scalar_select %p331, %s330, 2
        %s333 = smul.u32 8, %s332
        %s334 = ssub.s32 17, %s333
        %p335 = scmp.lt.s32.totalorder %s334, 8
        %s336 = scalar_select %p335, %s334, 8
        %s337 = smul.u32 128, %s336
        %s338 = smul.u32 %s32, 2
        %s339 = sadd.s32 %s338, %s33
        %p340 = scmp.lt.s32.totalorder %s339, 2
        %s341 = scalar_select %p340, %s339, 2
        %s342 = smul.u32 8, %s341
        %s343 = ssub.s32 17, %s342
        %p344 = scmp.lt.s32.totalorder %s343, 8
        %s345 = scalar_select %p344, %s343, 8
        %s346 = smul.u32 128, %s345
        %p347 = scmp.eq.s32.totalorder %s33, 0
        // Predicated region
        $region45: #{tpu_custom_call.1} parent=31 // pred_check
          %p348 = pneg %p347
        $region46: #{tpu_custom_call.1} parent=31 // pred_check_branch
          %350 = sbr.rel (%p348) target = $region48
        $region47: #{tpu_custom_call.1} parent=31 // pred_region
          %351 = vst [vmem:[%s321] sm:$0xff] 0.0
          %352 = vst [vmem:[%s328] sm:$0xff] 0.0
        $region48: #{tpu_custom_call.1} parent=31 // pred_fallthru
          _
        %s353 = smul.u32 %s32, 2
        %s354 = sadd.s32 %s353, %s33
        %v355 = vlaneseq
        %v356 = vshrl.u32 %v355, 7
        %v357 = vadd.s32 %v356, 8
        %v358 = vadd.s32 %v356, 16
        %v359 = vadd.s32 %v356, 24
        %v360 = vadd.s32 %v356, 32
        %v361 = vadd.s32 %v356, 40
        %v362 = vadd.s32 %v356, 48
        %v363 = vadd.s32 %v356, 56
        %s364 = smul.u32 %s354, 64
        %v365 = vstv %s364
        %v366 = vadd.s32 %v365, %v356
        %v367 = vadd.s32 %v365, %v357
        %v368 = vadd.s32 %v365, %v358
        %v369 = vadd.s32 %v365, %v359
        %v370 = vadd.s32 %v365, %v360
        %v371 = vadd.s32 %v365, %v361
        %v372 = vadd.s32 %v365, %v362
        %v373 = vadd.s32 %v365, %v363
        %vm374 = vcmp.lt.s32.totalorder %v366, 133
        %vm375 = vcmp.lt.s32.totalorder %v367, 133
        %vm376 = vcmp.lt.s32.totalorder %v368, 133
        %vm377 = vcmp.lt.s32.totalorder %v369, 133
        %vm378 = vcmp.lt.s32.totalorder %v370, 133
        %vm379 = vcmp.lt.s32.totalorder %v371, 133
        %vm380 = vcmp.lt.s32.totalorder %v372, 133
        %vm381 = vcmp.lt.s32.totalorder %v373, 133
        %v382 = vld [vmem:[%s281] sm:$0xff]
        %v383 = vld [vmem:[%s281 + $0x8] sm:$0xff]
        %v384 = vld [vmem:[%s281 + $0x10] sm:$0xff]
        %v385 = vld [vmem:[%s281 + $0x18] sm:$0xff]
        %v386 = vld [vmem:[%s281 + $0x20] sm:$0xff]
        %v387 = vld [vmem:[%s281 + $0x28] sm:$0xff]
        %v388 = vld [vmem:[%s281 + $0x30] sm:$0xff]
        %v389 = vld [vmem:[%s281 + $0x38] sm:$0xff]
        %v390 = vsel %vm374, 1, 0
        %v391 = vsel %vm375, 1, 0
        %v392 = vsel %vm376, 1, 0
        %v393 = vsel %vm377, 1, 0
        %v394 = vsel %vm378, 1, 0
        %v395 = vsel %vm379, 1, 0
        %v396 = vsel %vm380, 1, 0
        %v397 = vsel %vm381, 1, 0
        %vm398 = vcmp.eq.s32.totalorder %v390, 1
        %vm399 = vcmp.eq.s32.totalorder %v391, 1
        %vm400 = vcmp.eq.s32.totalorder %v392, 1
        %vm401 = vcmp.eq.s32.totalorder %v393, 1
        %vm402 = vcmp.eq.s32.totalorder %v394, 1
        %vm403 = vcmp.eq.s32.totalorder %v395, 1
        %vm404 = vcmp.eq.s32.totalorder %v396, 1
        %vm405 = vcmp.eq.s32.totalorder %v397, 1
        %v406 = vsel %vm398, %v382, 0.0
        %v407 = vsel %vm399, %v383, 0.0
        %v408 = vsel %vm400, %v384, 0.0
        %v409 = vsel %vm401, %v385, 0.0
        %v410 = vsel %vm402, %v386, 0.0
        %v411 = vsel %vm403, %v387, 0.0
        %v412 = vsel %vm404, %v388, 0.0
        %v413 = vsel %vm405, %v389, 0.0
        %v414 = vld [vmem:[%s290] sm:$0xff]
        %v415 = vld [vmem:[%s290 + $0x8] sm:$0xff]
        %v416 = vld [vmem:[%s290 + $0x10] sm:$0xff]
        %v417 = vld [vmem:[%s290 + $0x18] sm:$0xff]
        %v418 = vld [vmem:[%s290 + $0x20] sm:$0xff]
        %v419 = vld [vmem:[%s290 + $0x28] sm:$0xff]
        %v420 = vld [vmem:[%s290 + $0x30] sm:$0xff]
        %v421 = vld [vmem:[%s290 + $0x38] sm:$0xff]
        %v422 = vsel %vm398, %v414, 0.0
        %v423 = vsel %vm399, %v415, 0.0
        %v424 = vsel %vm400, %v416, 0.0
        %v425 = vsel %vm401, %v417, 0.0
        %v426 = vsel %vm402, %v418, 0.0
        %v427 = vsel %vm403, %v419, 0.0
        %v428 = vsel %vm404, %v420, 0.0
        %v429 = vsel %vm405, %v421, 0.0
        %430 = vmax.xlane.f32.xlu0 %v406
        %v431 = vpop.xlane.xlu0 %430
        %432 = vmax.xlane.f32.xlu0 %v407
        %v433 = vpop.xlane.xlu0 %432
        %434 = vmax.xlane.f32.xlu0 %v408
        %v435 = vpop.xlane.xlu0 %434
        %436 = vmax.xlane.f32.xlu0 %v409
        %v437 = vpop.xlane.xlu0 %436
        %438 = vmax.xlane.f32.xlu0 %v410
        %v439 = vpop.xlane.xlu0 %438
        %440 = vmax.xlane.f32.xlu0 %v411
        %v441 = vpop.xlane.xlu0 %440
        %442 = vmax.xlane.f32.xlu0 %v412
        %v443 = vpop.xlane.xlu0 %442
        %444 = vmax.xlane.f32.xlu0 %v413
        %v445 = vpop.xlane.xlu0 %444
        %v446 = vsub.f32 %v406, %v431
        %v447 = vsub.f32 %v407, %v433
        %v448 = vsub.f32 %v408, %v435
        %v449 = vsub.f32 %v409, %v437
        %v450 = vsub.f32 %v410, %v439
        %v451 = vsub.f32 %v411, %v441
        %v452 = vsub.f32 %v412, %v443
        %v453 = vsub.f32 %v413, %v445
        %v454 = vmul.f32 %v446, 1.442695
        %v455 = vpow.pop %v454
        %v456 = vmul.f32 %v447, 1.442695
        %v457 = vpow.pop %v456
        %v458 = vmul.f32 %v448, 1.442695
        %v459 = vpow.pop %v458
        %v460 = vmul.f32 %v449, 1.442695
        %v461 = vpow.pop %v460
        %v462 = vmul.f32 %v450, 1.442695
        %v463 = vpow.pop %v462
        %v464 = vmul.f32 %v451, 1.442695
        %v465 = vpow.pop %v464
        %v466 = vmul.f32 %v452, 1.442695
        %v467 = vpow.pop %v466
        %v468 = vmul.f32 %v453, 1.442695
        %v469 = vpow.pop %v468
        %470 = vmax.xlane.f32.xlu0 %v422
        %v471 = vpop.xlane.xlu0 %470
        %472 = vmax.xlane.f32.xlu0 %v423
        %v473 = vpop.xlane.xlu0 %472
        %474 = vmax.xlane.f32.xlu0 %v424
        %v475 = vpop.xlane.xlu0 %474
        %476 = vmax.xlane.f32.xlu0 %v425
        %v477 = vpop.xlane.xlu0 %476
        %478 = vmax.xlane.f32.xlu0 %v426
        %v479 = vpop.xlane.xlu0 %478
        %480 = vmax.xlane.f32.xlu0 %v427
        %v481 = vpop.xlane.xlu0 %480
        %482 = vmax.xlane.f32.xlu0 %v428
        %v483 = vpop.xlane.xlu0 %482
        %484 = vmax.xlane.f32.xlu0 %v429
        %v485 = vpop.xlane.xlu0 %484
        %v486 = vsub.f32 %v422, %v471
        %v487 = vsub.f32 %v423, %v473
        %v488 = vsub.f32 %v424, %v475
        %v489 = vsub.f32 %v425, %v477
        %v490 = vsub.f32 %v426, %v479
        %v491 = vsub.f32 %v427, %v481
        %v492 = vsub.f32 %v428, %v483
        %v493 = vsub.f32 %v429, %v485
        %v494 = vmul.f32 %v486, 1.442695
        %v495 = vpow.pop %v494
        %v496 = vmul.f32 %v487, 1.442695
        %v497 = vpow.pop %v496
        %v498 = vmul.f32 %v488, 1.442695
        %v499 = vpow.pop %v498
        %v500 = vmul.f32 %v489, 1.442695
        %v501 = vpow.pop %v500
        %v502 = vmul.f32 %v490, 1.442695
        %v503 = vpow.pop %v502
        %v504 = vmul.f32 %v491, 1.442695
        %v505 = vpow.pop %v504
        %v506 = vmul.f32 %v492, 1.442695
        %v507 = vpow.pop %v506
        %v508 = vmul.f32 %v493, 1.442695
        %v509 = vpow.pop %v508
        %v510 = vld [vmem:[#allocation7] sm:$0xff]
        %v511 = vld [vmem:[#allocation7 + $0x8] sm:$0xff]
        %v512 = vld [vmem:[#allocation7 + $0x10] sm:$0xff]
        %v513 = vld [vmem:[#allocation7 + $0x18] sm:$0xff]
        %v514 = vld [vmem:[#allocation7 + $0x20] sm:$0xff]
        %v515 = vld [vmem:[#allocation7 + $0x28] sm:$0xff]
        %v516 = vld [vmem:[#allocation7 + $0x30] sm:$0xff]
        %v517 = vld [vmem:[#allocation7 + $0x38] sm:$0xff]
        %v518 = vld [vmem:[#allocation7 + $0x40] sm:$0xff]
        %v519 = vld [vmem:[#allocation7 + $0x48] sm:$0xff]
        %v520 = vld [vmem:[#allocation7 + $0x50] sm:$0xff]
        %v521 = vld [vmem:[#allocation7 + $0x58] sm:$0xff]
        %v522 = vld [vmem:[#allocation7 + $0x60] sm:$0xff]
        %v523 = vld [vmem:[#allocation7 + $0x68] sm:$0xff]
        %v524 = vld [vmem:[#allocation7 + $0x70] sm:$0xff]
        %v525 = vld [vmem:[#allocation7 + $0x78] sm:$0xff]
        %526 = vmatprep.subr.mxu0 0.0
        %v527 = vand.u32 %v510, 4294901760
        %528 = vmatpush1.msra.mxu0 %v527
        %529 = vmatprep.subr.mxu0 0.0
        %v530 = vand.u32 %v511, 4294901760
        %531 = vmatpush1.msra.mxu0 %v530
        %532 = vmatprep.subr.mxu0 0.0
        %v533 = vand.u32 %v512, 4294901760
        %534 = vmatpush1.msra.mxu0 %v533
        %535 = vmatprep.subr.mxu0 0.0
        %v536 = vand.u32 %v513, 4294901760
        %537 = vmatpush1.msra.mxu0 %v536
        %538 = vmatprep.subr.mxu0 0.0
        %v539 = vand.u32 %v514, 4294901760
        %540 = vmatpush1.msra.mxu0 %v539
        %541 = vmatprep.subr.mxu0 0.0
        %v542 = vand.u32 %v515, 4294901760
        %543 = vmatpush1.msra.mxu0 %v542
        %544 = vmatprep.subr.mxu0 0.0
        %v545 = vand.u32 %v516, 4294901760
        %546 = vmatpush1.msra.mxu0 %v545
        %547 = vmatprep.subr.mxu0 0.0
        %v548 = vand.u32 %v517, 4294901760
        %549 = vmatpush1.msra.mxu0 %v548
        %550 = vmatprep.subr.mxu0 0.0
        %v551 = vand.u32 %v518, 4294901760
        %552 = vmatpush1.msra.mxu0 %v551
        %553 = vmatprep.subr.mxu0 0.0
        %v554 = vand.u32 %v519, 4294901760
        %555 = vmatpush1.msra.mxu0 %v554
        %556 = vmatprep.subr.mxu0 0.0
        %v557 = vand.u32 %v520, 4294901760
        %558 = vmatpush1.msra.mxu0 %v557
        %559 = vmatprep.subr.mxu0 0.0
        %v560 = vand.u32 %v521, 4294901760
        %561 = vmatpush1.msra.mxu0 %v560
        %562 = vmatprep.subr.mxu0 0.0
        %v563 = vand.u32 %v522, 4294901760
        %564 = vmatpush1.msra.mxu0 %v563
        %565 = vmatprep.subr.mxu0 0.0
        %v566 = vand.u32 %v523, 4294901760
        %567 = vmatpush1.msra.mxu0 %v566
        %568 = vmatprep.subr.mxu0 0.0
        %v569 = vand.u32 %v524, 4294901760
        %570 = vmatpush1.msra.mxu0 %v569
        %571 = vmatprep.subr.mxu0 0.0
        %v572 = vand.u32 %v525, 4294901760
        %573 = vmatpush1.msra.mxu0 %v572
        %574 = vmatprep.subr.mxu0 0.0
        %575 = vmatpush1.msra.mxu0 0.0
        %576 = vmatprep.subr.mxu0 0.0
        %577 = vmatpush1.msra.mxu0 0.0
        %578 = vmatprep.subr.mxu0 0.0
        %579 = vmatpush1.msra.mxu0 0.0
        %580 = vmatprep.subr.mxu0 0.0
        %581 = vmatpush1.msra.mxu0 0.0
        %582 = vmatprep.subr.mxu0 0.0
        %583 = vmatpush1.msra.mxu0 0.0
        %584 = vmatprep.subr.mxu0 0.0
        %585 = vmatpush1.msra.mxu0 0.0
        %586 = vmatprep.subr.mxu0 0.0
        %587 = vmatpush1.msra.mxu0 0.0
        %588 = vmatprep.subr.mxu0 0.0
        %589 = vmatpush1.msra.mxu0 0.0
        %590 = vmatprep.subr.mxu0 0.0
        %591 = vmatpush1.msra.mxu0 0.0
        %592 = vmatprep.subr.mxu0 0.0
        %593 = vmatpush1.msra.mxu0 0.0
        %594 = vmatprep.subr.mxu0 0.0
        %595 = vmatpush1.msra.mxu0 0.0
        %596 = vmatprep.subr.mxu0 0.0
        %597 = vmatpush1.msra.mxu0 0.0
        %598 = vmatprep.subr.mxu0 0.0
        %599 = vmatpush1.msra.mxu0 0.0
        %600 = vmatprep.subr.mxu0 0.0
        %601 = vmatpush1.msra.mxu0 0.0
        %602 = vmatprep.subr.mxu0 0.0
        %603 = vmatpush1.msra.mxu0 0.0
        %604 = vmatprep.subr.mxu0 0.0
        %605 = vmatpush1.msra.mxu0 0.0
        %606 = vmatprep.mubr.f32.mxu0 0.0
        %v607 = vand.u32 %v455, 4294901760
        %v608 = vsub.f32 %v455, %v607
        %v609 = vand.u32 %v608, 4294901760
        %v610 = vsub.f32 %v608, %v609
        %v611 = vand.u32 %v610, 4294901760
        %612 = vmatmul.mubr.f32.gmra.mrb[0].mxu0 %v611
        %v613 = vpop.f32.mrb[0].mxu0
        %v614 = vadd.f32 0.0, %v613
        %v615 = vpop.f32.mrb[0].mxu0
        %616 = vmatprep.mubr.f32.mxu0 0.0
        %v617 = vand.u32 %v457, 4294901760
        %v618 = vsub.f32 %v457, %v617
        %v619 = vand.u32 %v618, 4294901760
        %v620 = vsub.f32 %v618, %v619
        %v621 = vand.u32 %v620, 4294901760
        %622 = vmatmul.mubr.f32.gmra.mrb[0].mxu0 %v621
        %v623 = vpop.f32.mrb[0].mxu0
        %v624 = vadd.f32 0.0, %v623
        %v625 = vpop.f32.mrb[0].mxu0
        %626 = vmatprep.mubr.f32.mxu0 0.0
        %v627 = vand.u32 %v459, 4294901760
        %v628 = vsub.f32 %v459, %v627
        %v629 = vand.u32 %v628, 4294901760
        %v630 = vsub.f32 %v628, %v629
        %v631 = vand.u32 %v630, 4294901760
        %632 = vmatmul.mubr.f32.gmra.mrb[0].mxu0 %v631
        %v633 = vpop.f32.mrb[0].mxu0
        %v634 = vadd.f32 0.0, %v633
        %v635 = vpop.f32.mrb[0].mxu0
        %636 = vmatprep.mubr.f32.mxu0 0.0
        %v637 = vand.u32 %v461, 4294901760
        %v638 = vsub.f32 %v461, %v637
        %v639 = vand.u32 %v638, 4294901760
        %v640 = vsub.f32 %v638, %v639
        %v641 = vand.u32 %v640, 4294901760
        %642 = vmatmul.mubr.f32.gmra.mrb[0].mxu0 %v641
        %v643 = vpop.f32.mrb[0].mxu0
        %v644 = vadd.f32 0.0, %v643
        %v645 = vpop.f32.mrb[0].mxu0
        %646 = vmatprep.mubr.f32.mxu0 0.0
        %v647 = vand.u32 %v463, 4294901760
        %v648 = vsub.f32 %v463, %v647
        %v649 = vand.u32 %v648, 4294901760
        %v650 = vsub.f32 %v648, %v649
        %v651 = vand.u32 %v650, 4294901760
        %652 = vmatmul.mubr.f32.gmra.mrb[0].mxu0 %v651
        %v653 = vpop.f32.mrb[0].mxu0
        %v654 = vadd.f32 0.0, %v653
        %v655 = vpop.f32.mrb[0].mxu0
        %656 = vmatprep.mubr.f32.mxu0 0.0
        %v657 = vand.u32 %v465, 4294901760
        %v658 = vsub.f32 %v465, %v657
        %v659 = vand.u32 %v658, 4294901760
        %v660 = vsub.f32 %v658, %v659
        %v661 = vand.u32 %v660, 4294901760
        %662 = vmatmul.mubr.f32.gmra.mrb[0].mxu0 %v661
        %v663 = vpop.f32.mrb[0].mxu0
        %v664 = vadd.f32 0.0, %v663
        %v665 = vpop.f32.mrb[0].mxu0
        %666 = vmatprep.mubr.f32.mxu0 0.0
        %v667 = vand.u32 %v467, 4294901760
        %v668 = vsub.f32 %v467, %v667
        %v669 = vand.u32 %v668, 4294901760
        %v670 = vsub.f32 %v668, %v669
        %v671 = vand.u32 %v670, 4294901760
        %672 = vmatmul.mubr.f32.gmra.mrb[0].mxu0 %v671
        %v673 = vpop.f32.mrb[0].mxu0
        %v674 = vadd.f32 0.0, %v673
        %v675 = vpop.f32.mrb[0].mxu0
        %676 = vmatprep.mubr.f32.mxu0 0.0
        %v677 = vand.u32 %v469, 4294901760
        %v678 = vsub.f32 %v469, %v677
        %v679 = vand.u32 %v678, 4294901760
        %v680 = vsub.f32 %v678, %v679
        %v681 = vand.u32 %v680, 4294901760
        %682 = vmatmul.mubr.f32.gmra.mrb[0].mxu0 %v681
        %v683 = vpop.f32.mrb[0].mxu0
        %v684 = vadd.f32 0.0, %v683
        %v685 = vpop.f32.mrb[0].mxu0
        %686 = vdwg.mxu0
        %687 = vmatprep.subr.mxu0 0.0
        %v688 = vand.u32 %v510, 4294901760
        %v689 = vsub.f32 %v510, %v688
        %v690 = vand.u32 %v689, 4294901760
        %v691 = vsub.f32 %v689, %v690
        %v692 = vand.u32 %v691, 4294901760
        %693 = vmatpush1.msra.mxu0 %v692
        %694 = vmatprep.subr.mxu0 0.0
        %v695 = vand.u32 %v511, 4294901760
        %v696 = vsub.f32 %v511, %v695
        %v697 = vand.u32 %v696, 4294901760
        %v698 = vsub.f32 %v696, %v697
        %v699 = vand.u32 %v698, 4294901760
        %700 = vmatpush1.msra.mxu0 %v699
        %701 = vmatprep.subr.mxu0 0.0
        %v702 = vand.u32 %v512, 4294901760
        %v703 = vsub.f32 %v512, %v702
        %v704 = vand.u32 %v703, 4294901760
        %v705 = vsub.f32 %v703, %v704
        %v706 = vand.u32 %v705, 4294901760
        %707 = vmatpush1.msra.mxu0 %v706
        %708 = vmatprep.subr.mxu0 0.0
        %v709 = vand.u32 %v513, 4294901760
        %v710 = vsub.f32 %v513, %v709
        %v711 = vand.u32 %v710, 4294901760
        %v712 = vsub.f32 %v710, %v711
        %v713 = vand.u32 %v712, 4294901760
        %714 = vmatpush1.msra.mxu0 %v713
        %715 = vmatprep.subr.mxu0 0.0
        %v716 = vand.u32 %v514, 4294901760
        %v717 = vsub.f32 %v514, %v716
        %v718 = vand.u32 %v717, 4294901760
        %v719 = vsub.f32 %v717, %v718
        %v720 = vand.u32 %v719, 4294901760
        %721 = vmatpush1.msra.mxu0 %v720
        %722 = vmatprep.subr.mxu0 0.0
        %v723 = vand.u32 %v515, 4294901760
        %v724 = vsub.f32 %v515, %v723
        %v725 = vand.u32 %v724, 4294901760
        %v726 = vsub.f32 %v724, %v725
        %v727 = vand.u32 %v726, 4294901760
        %728 = vmatpush1.msra.mxu0 %v727
        %729 = vmatprep.subr.mxu0 0.0
        %v730 = vand.u32 %v516, 4294901760
        %v731 = vsub.f32 %v516, %v730
        %v732 = vand.u32 %v731, 4294901760
        %v733 = vsub.f32 %v731, %v732
        %v734 = vand.u32 %v733, 4294901760
        %735 = vmatpush1.msra.mxu0 %v734
        %736 = vmatprep.subr.mxu0 0.0
        %v737 = vand.u32 %v517, 4294901760
        %v738 = vsub.f32 %v517, %v737
        %v739 = vand.u32 %v738, 4294901760
        %v740 = vsub.f32 %v738, %v739
        %v741 = vand.u32 %v740, 4294901760
        %742 = vmatpush1.msra.mxu0 %v741
        %743 = vmatprep.subr.mxu0 0.0
        %v744 = vand.u32 %v518, 4294901760
        %v745 = vsub.f32 %v518, %v744
        %v746 = vand.u32 %v745, 4294901760
        %v747 = vsub.f32 %v745, %v746
        %v748 = vand.u32 %v747, 4294901760
        %749 = vmatpush1.msra.mxu0 %v748
        %750 = vmatprep.subr.mxu0 0.0
        %v751 = vand.u32 %v519, 4294901760
        %v752 = vsub.f32 %v519, %v751
        %v753 = vand.u32 %v752, 4294901760
        %v754 = vsub.f32 %v752, %v753
        %v755 = vand.u32 %v754, 4294901760
        %756 = vmatpush1.msra.mxu0 %v755
        %757 = vmatprep.subr.mxu0 0.0
        %v758 = vand.u32 %v520, 4294901760
        %v759 = vsub.f32 %v520, %v758
        %v760 = vand.u32 %v759, 4294901760
        %v761 = vsub.f32 %v759, %v760
        %v762 = vand.u32 %v761, 4294901760
        %763 = vmatpush1.msra.mxu0 %v762
        %764 = vmatprep.subr.mxu0 0.0
        %v765 = vand.u32 %v521, 4294901760
        %v766 = vsub.f32 %v521, %v765
        %v767 = vand.u32 %v766, 4294901760
        %v768 = vsub.f32 %v766, %v767
        %v769 = vand.u32 %v768, 4294901760
        %770 = vmatpush1.msra.mxu0 %v769
        %771 = vmatprep.subr.mxu0 0.0
        %v772 = vand.u32 %v522, 4294901760
        %v773 = vsub.f32 %v522, %v772
        %v774 = vand.u32 %v773, 4294901760
        %v775 = vsub.f32 %v773, %v774
        %v776 = vand.u32 %v775, 4294901760
        %777 = vmatpush1.msra.mxu0 %v776
        %778 = vmatprep.subr.mxu0 0.0
        %v779 = vand.u32 %v523, 4294901760
        %v780 = vsub.f32 %v523, %v779
        %v781 = vand.u32 %v780, 4294901760
        %v782 = vsub.f32 %v780, %v781
        %v783 = vand.u32 %v782, 4294901760
        %784 = vmatpush1.msra.mxu0 %v783
        %785 = vmatprep.subr.mxu0 0.0
        %v786 = vand.u32 %v524, 4294901760
        %v787 = vsub.f32 %v524, %v786
        %v788 = vand.u32 %v787, 4294901760
        %v789 = vsub.f32 %v787, %v788
        %v790 = vand.u32 %v789, 4294901760
        %791 = vmatpush1.msra.mxu0 %v790
        %792 = vmatprep.subr.mxu0 0.0
        %v793 = vand.u32 %v525, 4294901760
        %v794 = vsub.f32 %v525, %v793
        %v795 = vand.u32 %v794, 4294901760
        %v796 = vsub.f32 %v794, %v795
        %v797 = vand.u32 %v796, 4294901760
        %798 = vmatpush1.msra.mxu0 %v797
        %799 = vmatprep.subr.mxu0 0.0
        %800 = vmatpush1.msra.mxu0 0.0
        %801 = vmatprep.subr.mxu0 0.0
        %802 = vmatpush1.msra.mxu0 0.0
        %803 = vmatprep.subr.mxu0 0.0
        %804 = vmatpush1.msra.mxu0 0.0
        %805 = vmatprep.subr.mxu0 0.0
        %806 = vmatpush1.msra.mxu0 0.0
        %807 = vmatprep.subr.mxu0 0.0
        %808 = vmatpush1.msra.mxu0 0.0
        %809 = vmatprep.subr.mxu0 0.0
        %810 = vmatpush1.msra.mxu0 0.0
        %811 = vmatprep.subr.mxu0 0.0
        %812 = vmatpush1.msra.mxu0 0.0
        %813 = vmatprep.subr.mxu0 0.0
        %814 = vmatpush1.msra.mxu0 0.0
        %815 = vmatprep.subr.mxu0 0.0
        %816 = vmatpush1.msra.mxu0 0.0
        %817 = vmatprep.subr.mxu0 0.0
        %818 = vmatpush1.msra.mxu0 0.0
        %819 = vmatprep.subr.mxu0 0.0
        %820 = vmatpush1.msra.mxu0 0.0
        %821 = vmatprep.subr.mxu0 0.0
        %822 = vmatpush1.msra.mxu0 0.0
        %823 = vmatprep.subr.mxu0 0.0
        %824 = vmatpush1.msra.mxu0 0.0
        %825 = vmatprep.subr.mxu0 0.0
        %826 = vmatpush1.msra.mxu0 0.0
        %827 = vmatprep.subr.mxu0 0.0
        %828 = vmatpush1.msra.mxu0 0.0
        %829 = vmatprep.subr.mxu0 0.0
        %830 = vmatpush1.msra.mxu0 0.0
        %831 = vmatprep.mubr.f32.mxu0 0.0
        %v832 = vand.u32 %v455, 4294901760
        %833 = vmatmul.mubr.f32.gmra.mrb[0].mxu0 %v832
        %v834 = vpop.f32.mrb[0].mxu0
        %v835 = vadd.f32 %v614, %v834
        %v836 = vpop.f32.mrb[0].mxu0
        %837 = vmatprep.mubr.f32.mxu0 0.0
        %v838 = vand.u32 %v457, 4294901760
        %839 = vmatmul.mubr.f32.gmra.mrb[0].mxu0 %v838
        %v840 = vpop.f32.mrb[0].mxu0
        %v841 = vadd.f32 %v624, %v840
        %v842 = vpop.f32.mrb[0].mxu0
        %843 = vmatprep.mubr.f32.mxu0 0.0
        %v844 = vand.u32 %v459, 4294901760
        %845 = vmatmul.mubr.f32.gmra.mrb[0].mxu0 %v844
        %v846 = vpop.f32.mrb[0].mxu0
        %v847 = vadd.f32 %v634, %v846
        %v848 = vpop.f32.mrb[0].mxu0
        %849 = vmatprep.mubr.f32.mxu0 0.0
        %v850 = vand.u32 %v461, 4294901760
        %851 = vmatmul.mubr.f32.gmra.mrb[0].mxu0 %v850
        %v852 = vpop.f32.mrb[0].mxu0
        %v853 = vadd.f32 %v644, %v852
        %v854 = vpop.f32.mrb[0].mxu0
        %855 = vmatprep.mubr.f32.mxu0 0.0
        %v856 = vand.u32 %v463, 4294901760
        %857 = vmatmul.mubr.f32.gmra.mrb[0].mxu0 %v856
        %v858 = vpop.f32.mrb[0].mxu0
        %v859 = vadd.f32 %v654, %v858
        %v860 = vpop.f32.mrb[0].mxu0
        %861 = vmatprep.mubr.f32.mxu0 0.0
        %v862 = vand.u32 %v465, 4294901760
        %863 = vmatmul.mubr.f32.gmra.mrb[0].mxu0 %v862
        %v864 = vpop.f32.mrb[0].mxu0
        %v865 = vadd.f32 %v664, %v864
        %v866 = vpop.f32.mrb[0].mxu0
        %867 = vmatprep.mubr.f32.mxu0 0.0
        %v868 = vand.u32 %v467, 4294901760
        %869 = vmatmul.mubr.f32.gmra.mrb[0].mxu0 %v868
        %v870 = vpop.f32.mrb[0].mxu0
        %v871 = vadd.f32 %v674, %v870
        %v872 = vpop.f32.mrb[0].mxu0
        %873 = vmatprep.mubr.f32.mxu0 0.0
        %v874 = vand.u32 %v469, 4294901760
        %875 = vmatmul.mubr.f32.gmra.mrb[0].mxu0 %v874
        %v876 = vpop.f32.mrb[0].mxu0
        %v877 = vadd.f32 %v684, %v876
        %v878 = vpop.f32.mrb[0].mxu0
        %879 = vdwg.mxu0
        %880 = vmatprep.subr.mxu0 0.0
        %v881 = vand.u32 %v510, 4294901760
        %v882 = vsub.f32 %v510, %v881
        %883 = vmatpush1.msra.mxu0 %v882
        %884 = vmatprep.subr.mxu0 0.0
        %v885 = vand.u32 %v511, 4294901760
        %v886 = vsub.f32 %v511, %v885
        %887 = vmatpush1.msra.mxu0 %v886
        %888 = vmatprep.subr.mxu0 0.0
        %v889 = vand.u32 %v512, 4294901760
        %v890 = vsub.f32 %v512, %v889
        %891 = vmatpush1.msra.mxu0 %v890
        %892 = vmatprep.subr.mxu0 0.0
        %v893 = vand.u32 %v513, 4294901760
        %v894 = vsub.f32 %v513, %v893
        %895 = vmatpush1.msra.mxu0 %v894
        %896 = vmatprep.subr.mxu0 0.0
        %v897 = vand.u32 %v514, 4294901760
        %v898 = vsub.f32 %v514, %v897
        %899 = vmatpush1.msra.mxu0 %v898
        %900 = vmatprep.subr.mxu0 0.0
        %v901 = vand.u32 %v515, 4294901760
        %v902 = vsub.f32 %v515, %v901
        %903 = vmatpush1.msra.mxu0 %v902
        %904 = vmatprep.subr.mxu0 0.0
        %v905 = vand.u32 %v516, 4294901760
        %v906 = vsub.f32 %v516, %v905
        %907 = vmatpush1.msra.mxu0 %v906
        %908 = vmatprep.subr.mxu0 0.0
        %v909 = vand.u32 %v517, 4294901760
        %v910 = vsub.f32 %v517, %v909
        %911 = vmatpush1.msra.mxu0 %v910
        %912 = vmatprep.subr.mxu0 0.0
        %v913 = vand.u32 %v518, 4294901760
        %v914 = vsub.f32 %v518, %v913
        %915 = vmatpush1.msra.mxu0 %v914
        %916 = vmatprep.subr.mxu0 0.0
        %v917 = vand.u32 %v519, 4294901760
        %v918 = vsub.f32 %v519, %v917
        %919 = vmatpush1.msra.mxu0 %v918
        %920 = vmatprep.subr.mxu0 0.0
        %v921 = vand.u32 %v520, 4294901760
        %v922 = vsub.f32 %v520, %v921
        %923 = vmatpush1.msra.mxu0 %v922
        %924 = vmatprep.subr.mxu0 0.0
        %v925 = vand.u32 %v521, 4294901760
        %v926 = vsub.f32 %v521, %v925
        %927 = vmatpush1.msra.mxu0 %v926
        %928 = vmatprep.subr.mxu0 0.0
        %v929 = vand.u32 %v522, 4294901760
        %v930 = vsub.f32 %v522, %v929
        %931 = vmatpush1.msra.mxu0 %v930
        %932 = vmatprep.subr.mxu0 0.0
        %v933 = vand.u32 %v523, 4294901760
        %v934 = vsub.f32 %v523, %v933
        %935 = vmatpush1.msra.mxu0 %v934
        %936 = vmatprep.subr.mxu0 0.0
        %v937 = vand.u32 %v524, 4294901760
        %v938 = vsub.f32 %v524, %v937
        %939 = vmatpush1.msra.mxu0 %v938
        %940 = vmatprep.subr.mxu0 0.0
        %v941 = vand.u32 %v525, 4294901760
        %v942 = vsub.f32 %v525, %v941
        %943 = vmatpush1.msra.mxu0 %v942
        %944 = vmatprep.subr.mxu0 0.0
        %945 = vmatpush1.msra.mxu0 0.0
        %946 = vmatprep.subr.mxu0 0.0
        %947 = vmatpush1.msra.mxu0 0.0
        %948 = vmatprep.subr.mxu0 0.0
        %949 = vmatpush1.msra.mxu0 0.0
        %950 = vmatprep.subr.mxu0 0.0
        %951 = vmatpush1.msra.mxu0 0.0
        %952 = vmatprep.subr.mxu0 0.0
        %953 = vmatpush1.msra.mxu0 0.0
        %954 = vmatprep.subr.mxu0 0.0
        %955 = vmatpush1.msra.mxu0 0.0
        %956 = vmatprep.subr.mxu0 0.0
        %957 = vmatpush1.msra.mxu0 0.0
        %958 = vmatprep.subr.mxu0 0.0
        %959 = vmatpush1.msra.mxu0 0.0
        %960 = vmatprep.subr.mxu0 0.0
        %961 = vmatpush1.msra.mxu0 0.0
        %962 = vmatprep.subr.mxu0 0.0
        %963 = vmatpush1.msra.mxu0 0.0
        %964 = vmatprep.subr.mxu0 0.0
        %965 = vmatpush1.msra.mxu0 0.0
        %966 = vmatprep.subr.mxu0 0.0
        %967 = vmatpush1.msra.mxu0 0.0
        %968 = vmatprep.subr.mxu0 0.0
        %969 = vmatpush1.msra.mxu0 0.0
        %970 = vmatprep.subr.mxu0 0.0
        %971 = vmatpush1.msra.mxu0 0.0
        %972 = vmatprep.subr.mxu0 0.0
        %973 = vmatpush1.msra.mxu0 0.0
        %974 = vmatprep.subr.mxu0 0.0
        %975 = vmatpush1.msra.mxu0 0.0
        %976 = vmatprep.mubr.f32.mxu0 0.0
        %v977 = vand.u32 %v455, 4294901760
        %v978 = vsub.f32 %v455, %v977
        %979 = vmatmul.mubr.f32.gmra.mrb[0].mxu0 %v978
        %v980 = vpop.f32.mrb[0].mxu0
        %v981 = vadd.f32 %v835, %v980
        %v982 = vpop.f32.mrb[0].mxu0
        %983 = vmatprep.mubr.f32.mxu0 0.0
        %v984 = vand.u32 %v457, 4294901760
        %v985 = vsub.f32 %v457, %v984
        %986 = vmatmul.mubr.f32.gmra.mrb[0].mxu0 %v985
        %v987 = vpop.f32.mrb[0].mxu0
        %v988 = vadd.f32 %v841, %v987
        %v989 = vpop.f32.mrb[0].mxu0
        %990 = vmatprep.mubr.f32.mxu0 0.0
        %v991 = vand.u32 %v459, 4294901760
        %v992 = vsub.f32 %v459, %v991
        %993 = vmatmul.mubr.f32.gmra.mrb[0].mxu0 %v992
        %v994 = vpop.f32.mrb[0].mxu0
        %v995 = vadd.f32 %v847, %v994
        %v996 = vpop.f32.mrb[0].mxu0
        %997 = vmatprep.mubr.f32.mxu0 0.0
        %v998 = vand.u32 %v461, 4294901760
        %v999 = vsub.f32 %v461, %v998
        %1000 = vmatmul.mubr.f32.gmra.mrb[0].mxu0 %v999
        %v1001 = vpop.f32.mrb[0].mxu0
        %v1002 = vadd.f32 %v853, %v1001
        %v1003 = vpop.f32.mrb[0].mxu0
        %1004 = vmatprep.mubr.f32.mxu0 0.0
        %v1005 = vand.u32 %v463, 4294901760
        %v1006 = vsub.f32 %v463, %v1005
        %1007 = vmatmul.mubr.f32.gmra.mrb[0].mxu0 %v1006
        %v1008 = vpop.f32.mrb[0].mxu0
        %v1009 = vadd.f32 %v859, %v1008
        %v1010 = vpop.f32.mrb[0].mxu0
        %1011 = vmatprep.mubr.f32.mxu0 0.0
        %v1012 = vand.u32 %v465, 4294901760
        %v1013 = vsub.f32 %v465, %v1012
        %1014 = vmatmul.mubr.f32.gmra.mrb[0].mxu0 %v1013
        %v1015 = vpop.f32.mrb[0].mxu0
        %v1016 = vadd.f32 %v865, %v1015
        %v1017 = vpop.f32.mrb[0].mxu0
        %1018 = vmatprep.mubr.f32.mxu0 0.0
        %v1019 = vand.u32 %v467, 4294901760
        %v1020 = vsub.f32 %v467, %v1019
        %1021 = vmatmul.mubr.f32.gmra.mrb[0].mxu0 %v1020
        %v1022 = vpop.f32.mrb[0].mxu0
        %v1023 = vadd.f32 %v871, %v1022
        %v1024 = vpop.f32.mrb[0].mxu0
        %1025 = vmatprep.mubr.f32.mxu0 0.0
        %v1026 = vand.u32 %v469, 4294901760
        %v1027 = vsub.f32 %v469, %v1026
        %1028 = vmatmul.mubr.f32.gmra.mrb[0].mxu0 %v1027
        %v1029 = vpop.f32.mrb[0].mxu0
        %v1030 = vadd.f32 %v877, %v1029
        %v1031 = vpop.f32.mrb[0].mxu0
        %1032 = vdwg.mxu0
        %1033 = vmatprep.subr.mxu0 0.0
        %v1034 = vand.u32 %v510, 4294901760
        %1035 = vmatpush1.msra.mxu0 %v1034
        %1036 = vmatprep.subr.mxu0 0.0
        %v1037 = vand.u32 %v511, 4294901760
        %1038 = vmatpush1.msra.mxu0 %v1037
        %1039 = vmatprep.subr.mxu0 0.0
        %v1040 = vand.u32 %v512, 4294901760
        %1041 = vmatpush1.msra.mxu0 %v1040
        %1042 = vmatprep.subr.mxu0 0.0
        %v1043 = vand.u32 %v513, 4294901760
        %1044 = vmatpush1.msra.mxu0 %v1043
        %1045 = vmatprep.subr.mxu0 0.0
        %v1046 = vand.u32 %v514, 4294901760
        %1047 = vmatpush1.msra.mxu0 %v1046
        %1048 = vmatprep.subr.mxu0 0.0
        %v1049 = vand.u32 %v515, 4294901760
        %1050 = vmatpush1.msra.mxu0 %v1049
        %1051 = vmatprep.subr.mxu0 0.0
        %v1052 = vand.u32 %v516, 4294901760
        %1053 = vmatpush1.msra.mxu0 %v1052
        %1054 = vmatprep.subr.mxu0 0.0
        %v1055 = vand.u32 %v517, 4294901760
        %1056 = vmatpush1.msra.mxu0 %v1055
        %1057 = vmatprep.subr.mxu0 0.0
        %v1058 = vand.u32 %v518, 4294901760
        %1059 = vmatpush1.msra.mxu0 %v1058
        %1060 = vmatprep.subr.mxu0 0.0
        %v1061 = vand.u32 %v519, 4294901760
        %1062 = vmatpush1.msra.mxu0 %v1061
        %1063 = vmatprep.subr.mxu0 0.0
        %v1064 = vand.u32 %v520, 4294901760
        %1065 = vmatpush1.msra.mxu0 %v1064
        %1066 = vmatprep.subr.mxu0 0.0
        %v1067 = vand.u32 %v521, 4294901760
        %1068 = vmatpush1.msra.mxu0 %v1067
        %1069 = vmatprep.subr.mxu0 0.0
        %v1070 = vand.u32 %v522, 4294901760
        %1071 = vmatpush1.msra.mxu0 %v1070
        %1072 = vmatprep.subr.mxu0 0.0
        %v1073 = vand.u32 %v523, 4294901760
        %1074 = vmatpush1.msra.mxu0 %v1073
        %1075 = vmatprep.subr.mxu0 0.0
        %v1076 = vand.u32 %v524, 4294901760
        %1077 = vmatpush1.msra.mxu0 %v1076
        %1078 = vmatprep.subr.mxu0 0.0
        %v1079 = vand.u32 %v525, 4294901760
        %1080 = vmatpush1.msra.mxu0 %v1079
        %1081 = vmatprep.subr.mxu0 0.0
        %1082 = vmatpush1.msra.mxu0 0.0
        %1083 = vmatprep.subr.mxu0 0.0
        %1084 = vmatpush1.msra.mxu0 0.0
        %1085 = vmatprep.subr.mxu0 0.0
        %1086 = vmatpush1.msra.mxu0 0.0
        %1087 = vmatprep.subr.mxu0 0.0
        %1088 = vmatpush1.msra.mxu0 0.0
        %1089 = vmatprep.subr.mxu0 0.0
        %1090 = vmatpush1.msra.mxu0 0.0
        %1091 = vmatprep.subr.mxu0 0.0
        %1092 = vmatpush1.msra.mxu0 0.0
        %1093 = vmatprep.subr.mxu0 0.0
        %1094 = vmatpush1.msra.mxu0 0.0
        %1095 = vmatprep.subr.mxu0 0.0
        %1096 = vmatpush1.msra.mxu0 0.0
        %1097 = vmatprep.subr.mxu0 0.0
        %1098 = vmatpush1.msra.mxu0 0.0
        %1099 = vmatprep.subr.mxu0 0.0
        %1100 = vmatpush1.msra.mxu0 0.0
        %1101 = vmatprep.subr.mxu0 0.0
        %1102 = vmatpush1.msra.mxu0 0.0
        %1103 = vmatprep.subr.mxu0 0.0
        %1104 = vmatpush1.msra.mxu0 0.0
        %1105 = vmatprep.subr.mxu0 0.0
        %1106 = vmatpush1.msra.mxu0 0.0
        %1107 = vmatprep.subr.mxu0 0.0
        %1108 = vmatpush1.msra.mxu0 0.0
        %1109 = vmatprep.subr.mxu0 0.0
        %1110 = vmatpush1.msra.mxu0 0.0
        %1111 = vmatprep.subr.mxu0 0.0
        %1112 = vmatpush1.msra.mxu0 0.0
        %1113 = vmatprep.mubr.f32.mxu0 0.0
        %v1114 = vand.u32 %v455, 4294901760
        %v1115 = vsub.f32 %v455, %v1114
        %v1116 = vand.u32 %v1115, 4294901760
        %1117 = vmatmul.mubr.f32.gmra.mrb[0].mxu0 %v1116
        %v1118 = vpop.f32.mrb[0].mxu0
        %v1119 = vadd.f32 %v981, %v1118
        %v1120 = vpop.f32.mrb[0].mxu0
        %1121 = vmatprep.mubr.f32.mxu0 0.0
        %v1122 = vand.u32 %v457, 4294901760
        %v1123 = vsub.f32 %v457, %v1122
        %v1124 = vand.u32 %v1123, 4294901760
        %1125 = vmatmul.mubr.f32.gmra.mrb[0].mxu0 %v1124
        %v1126 = vpop.f32.mrb[0].mxu0
        %v1127 = vadd.f32 %v988, %v1126
        %v1128 = vpop.f32.mrb[0].mxu0
        %1129 = vmatprep.mubr.f32.mxu0 0.0
        %v1130 = vand.u32 %v459, 4294901760
        %v1131 = vsub.f32 %v459, %v1130
        %v1132 = vand.u32 %v1131, 4294901760
        %1133 = vmatmul.mubr.f32.gmra.mrb[0].mxu0 %v1132
        %v1134 = vpop.f32.mrb[0].mxu0
        %v1135 = vadd.f32 %v995, %v1134
        %v1136 = vpop.f32.mrb[0].mxu0
        %1137 = vmatprep.mubr.f32.mxu0 0.0
        %v1138 = vand.u32 %v461, 4294901760
        %v1139 = vsub.f32 %v461, %v1138
        %v1140 = vand.u32 %v1139, 4294901760
        %1141 = vmatmul.mubr.f32.gmra.mrb[0].mxu0 %v1140
        %v1142 = vpop.f32.mrb[0].mxu0
        %v1143 = vadd.f32 %v1002, %v1142
        %v1144 = vpop.f32.mrb[0].mxu0
        %1145 = vmatprep.mubr.f32.mxu0 0.0
        %v1146 = vand.u32 %v463, 4294901760
        %v1147 = vsub.f32 %v463, %v1146
        %v1148 = vand.u32 %v1147, 4294901760
        %1149 = vmatmul.mubr.f32.gmra.mrb[0].mxu0 %v1148
        %v1150 = vpop.f32.mrb[0].mxu0
        %v1151 = vadd.f32 %v1009, %v1150
        %v1152 = vpop.f32.mrb[0].mxu0
        %1153 = vmatprep.mubr.f32.mxu0 0.0
        %v1154 = vand.u32 %v465, 4294901760
        %v1155 = vsub.f32 %v465, %v1154
        %v1156 = vand.u32 %v1155, 4294901760
        %1157 = vmatmul.mubr.f32.gmra.mrb[0].mxu0 %v1156
        %v1158 = vpop.f32.mrb[0].mxu0
        %v1159 = vadd.f32 %v1016, %v1158
        %v1160 = vpop.f32.mrb[0].mxu0
        %1161 = vmatprep.mubr.f32.mxu0 0.0
        %v1162 = vand.u32 %v467, 4294901760
        %v1163 = vsub.f32 %v467, %v1162
        %v1164 = vand.u32 %v1163, 4294901760
        %1165 = vmatmul.mubr.f32.gmra.mrb[0].mxu0 %v1164
        %v1166 = vpop.f32.mrb[0].mxu0
        %v1167 = vadd.f32 %v1023, %v1166
        %v1168 = vpop.f32.mrb[0].mxu0
        %1169 = vmatprep.mubr.f32.mxu0 0.0
        %v1170 = vand.u32 %v469, 4294901760
        %v1171 = vsub.f32 %v469, %v1170
        %v1172 = vand.u32 %v1171, 4294901760
        %1173 = vmatmul.mubr.f32.gmra.mrb[0].mxu0 %v1172
        %v1174 = vpop.f32.mrb[0].mxu0
        %v1175 = vadd.f32 %v1030, %v1174
        %v1176 = vpop.f32.mrb[0].mxu0
        %1177 = vdwg.mxu0
        %1178 = vmatprep.subr.mxu0 0.0
        %v1179 = vand.u32 %v510, 4294901760
        %v1180 = vsub.f32 %v510, %v1179
        %v1181 = vand.u32 %v1180, 4294901760
        %1182 = vmatpush1.msra.mxu0 %v1181
        %1183 = vmatprep.subr.mxu0 0.0
        %v1184 = vand.u32 %v511, 4294901760
        %v1185 = vsub.f32 %v511, %v1184
        %v1186 = vand.u32 %v1185, 4294901760
        %1187 = vmatpush1.msra.mxu0 %v1186
        %1188 = vmatprep.subr.mxu0 0.0
        %v1189 = vand.u32 %v512, 4294901760
        %v1190 = vsub.f32 %v512, %v1189
        %v1191 = vand.u32 %v1190, 4294901760
        %1192 = vmatpush1.msra.mxu0 %v1191
        %1193 = vmatprep.subr.mxu0 0.0
        %v1194 = vand.u32 %v513, 4294901760
        %v1195 = vsub.f32 %v513, %v1194
        %v1196 = vand.u32 %v1195, 4294901760
        %1197 = vmatpush1.msra.mxu0 %v1196
        %1198 = vmatprep.subr.mxu0 0.0
        %v1199 = vand.u32 %v514, 4294901760
        %v1200 = vsub.f32 %v514, %v1199
        %v1201 = vand.u32 %v1200, 4294901760
        %1202 = vmatpush1.msra.mxu0 %v1201
        %1203 = vmatprep.subr.mxu0 0.0
        %v1204 = vand.u32 %v515, 4294901760
        %v1205 = vsub.f32 %v515, %v1204
        %v1206 = vand.u32 %v1205, 4294901760
        %1207 = vmatpush1.msra.mxu0 %v1206
        %1208 = vmatprep.subr.mxu0 0.0
        %v1209 = vand.u32 %v516, 4294901760
        %v1210 = vsub.f32 %v516, %v1209
        %v1211 = vand.u32 %v1210, 4294901760
        %1212 = vmatpush1.msra.mxu0 %v1211
        %1213 = vmatprep.subr.mxu0 0.0
        %v1214 = vand.u32 %v517, 4294901760
        %v1215 = vsub.f32 %v517, %v1214
        %v1216 = vand.u32 %v1215, 4294901760
        %1217 = vmatpush1.msra.mxu0 %v1216
        %1218 = vmatprep.subr.mxu0 0.0
        %v1219 = vand.u32 %v518, 4294901760
        %v1220 = vsub.f32 %v518, %v1219
        %v1221 = vand.u32 %v1220, 4294901760
        %1222 = vmatpush1.msra.mxu0 %v1221
        %1223 = vmatprep.subr.mxu0 0.0
        %v1224 = vand.u32 %v519, 4294901760
        %v1225 = vsub.f32 %v519, %v1224
        %v1226 = vand.u32 %v1225, 4294901760
        %1227 = vmatpush1.msra.mxu0 %v1226
        %1228 = vmatprep.subr.mxu0 0.0
        %v1229 = vand.u32 %v520, 4294901760
        %v1230 = vsub.f32 %v520, %v1229
        %v1231 = vand.u32 %v1230, 4294901760
        %1232 = vmatpush1.msra.mxu0 %v1231
        %1233 = vmatprep.subr.mxu0 0.0
        %v1234 = vand.u32 %v521, 4294901760
        %v1235 = vsub.f32 %v521, %v1234
        %v1236 = vand.u32 %v1235, 4294901760
        %1237 = vmatpush1.msra.mxu0 %v1236
        %1238 = vmatprep.subr.mxu0 0.0
        %v1239 = vand.u32 %v522, 4294901760
        %v1240 = vsub.f32 %v522, %v1239
        %v1241 = vand.u32 %v1240, 4294901760
        %1242 = vmatpush1.msra.mxu0 %v1241
        %1243 = vmatprep.subr.mxu0 0.0
        %v1244 = vand.u32 %v523, 4294901760
        %v1245 = vsub.f32 %v523, %v1244
        %v1246 = vand.u32 %v1245, 4294901760
        %1247 = vmatpush1.msra.mxu0 %v1246
        %1248 = vmatprep.subr.mxu0 0.0
        %v1249 = vand.u32 %v524, 4294901760
        %v1250 = vsub.f32 %v524, %v1249
        %v1251 = vand.u32 %v1250, 4294901760
        %1252 = vmatpush1.msra.mxu0 %v1251
        %1253 = vmatprep.subr.mxu0 0.0
        %v1254 = vand.u32 %v525, 4294901760
        %v1255 = vsub.f32 %v525, %v1254
        %v1256 = vand.u32 %v1255, 4294901760
        %1257 = vmatpush1.msra.mxu0 %v1256
        %1258 = vmatprep.subr.mxu0 0.0
        %1259 = vmatpush1.msra.mxu0 0.0
        %1260 = vmatprep.subr.mxu0 0.0
        %1261 = vmatpush1.msra.mxu0 0.0
        %1262 = vmatprep.subr.mxu0 0.0
        %1263 = vmatpush1.msra.mxu0 0.0
        %1264 = vmatprep.subr.mxu0 0.0
        %1265 = vmatpush1.msra.mxu0 0.0
        %1266 = vmatprep.subr.mxu0 0.0
        %1267 = vmatpush1.msra.mxu0 0.0
        %1268 = vmatprep.subr.mxu0 0.0
        %1269 = vmatpush1.msra.mxu0 0.0
        %1270 = vmatprep.subr.mxu0 0.0
        %1271 = vmatpush1.msra.mxu0 0.0
        %1272 = vmatprep.subr.mxu0 0.0
        %1273 = vmatpush1.msra.mxu0 0.0
        %1274 = vmatprep.subr.mxu0 0.0
        %1275 = vmatpush1.msra.mxu0 0.0
        %1276 = vmatprep.subr.mxu0 0.0
        %1277 = vmatpush1.msra.mxu0 0.0
        %1278 = vmatprep.subr.mxu0 0.0
        %1279 = vmatpush1.msra.mxu0 0.0
        %1280 = vmatprep.subr.mxu0 0.0
        %1281 = vmatpush1.msra.mxu0 0.0
        %1282 = vmatprep.subr.mxu0 0.0
        %1283 = vmatpush1.msra.mxu0 0.0
        %1284 = vmatprep.subr.mxu0 0.0
        %1285 = vmatpush1.msra.mxu0 0.0
        %1286 = vmatprep.subr.mxu0 0.0
        %1287 = vmatpush1.msra.mxu0 0.0
        %1288 = vmatprep.subr.mxu0 0.0
        %1289 = vmatpush1.msra.mxu0 0.0
        %1290 = vmatprep.mubr.f32.mxu0 0.0
        %v1291 = vand.u32 %v455, 4294901760
        %1292 = vmatmul.mubr.f32.gmra.mrb[0].mxu0 %v1291
        %v1293 = vpop.f32.mrb[0].mxu0
        %v1294 = vadd.f32 %v1119, %v1293
        %v1295 = vpop.f32.mrb[0].mxu0
        %1296 = vmatprep.mubr.f32.mxu0 0.0
        %v1297 = vand.u32 %v457, 4294901760
        %1298 = vmatmul.mubr.f32.gmra.mrb[0].mxu0 %v1297
        %v1299 = vpop.f32.mrb[0].mxu0
        %v1300 = vadd.f32 %v1127, %v1299
        %v1301 = vpop.f32.mrb[0].mxu0
        %1302 = vmatprep.mubr.f32.mxu0 0.0
        %v1303 = vand.u32 %v459, 4294901760
        %1304 = vmatmul.mubr.f32.gmra.mrb[0].mxu0 %v1303
        %v1305 = vpop.f32.mrb[0].mxu0
        %v1306 = vadd.f32 %v1135, %v1305
        %v1307 = vpop.f32.mrb[0].mxu0
        %1308 = vmatprep.mubr.f32.mxu0 0.0
        %v1309 = vand.u32 %v461, 4294901760
        %1310 = vmatmul.mubr.f32.gmra.mrb[0].mxu0 %v1309
        %v1311 = vpop.f32.mrb[0].mxu0
        %v1312 = vadd.f32 %v1143, %v1311
        %v1313 = vpop.f32.mrb[0].mxu0
        %1314 = vmatprep.mubr.f32.mxu0 0.0
        %v1315 = vand.u32 %v463, 4294901760
        %1316 = vmatmul.mubr.f32.gmra.mrb[0].mxu0 %v1315
        %v1317 = vpop.f32.mrb[0].mxu0
        %v1318 = vadd.f32 %v1151, %v1317
        %v1319 = vpop.f32.mrb[0].mxu0
        %1320 = vmatprep.mubr.f32.mxu0 0.0
        %v1321 = vand.u32 %v465, 4294901760
        %1322 = vmatmul.mubr.f32.gmra.mrb[0].mxu0 %v1321
        %v1323 = vpop.f32.mrb[0].mxu0
        %v1324 = vadd.f32 %v1159, %v1323
        %v1325 = vpop.f32.mrb[0].mxu0
        %1326 = vmatprep.mubr.f32.mxu0 0.0
        %v1327 = vand.u32 %v467, 4294901760
        %1328 = vmatmul.mubr.f32.gmra.mrb[0].mxu0 %v1327
        %v1329 = vpop.f32.mrb[0].mxu0
        %v1330 = vadd.f32 %v1167, %v1329
        %v1331 = vpop.f32.mrb[0].mxu0
        %1332 = vmatprep.mubr.f32.mxu0 0.0
        %v1333 = vand.u32 %v469, 4294901760
        %1334 = vmatmul.mubr.f32.gmra.mrb[0].mxu0 %v1333
        %v1335 = vpop.f32.mrb[0].mxu0
        %v1336 = vadd.f32 %v1175, %v1335
        %v1337 = vpop.f32.mrb[0].mxu0
        %1338 = vdwg.mxu0
        %1339 = vmatprep.subr.mxu0 0.0
        %v1340 = vand.u32 %v510, 4294901760
        %1341 = vmatpush1.msra.mxu0 %v1340
        %1342 = vmatprep.subr.mxu0 0.0
        %v1343 = vand.u32 %v511, 4294901760
        %1344 = vmatpush1.msra.mxu0 %v1343
        %1345 = vmatprep.subr.mxu0 0.0
        %v1346 = vand.u32 %v512, 4294901760
        %1347 = vmatpush1.msra.mxu0 %v1346
        %1348 = vmatprep.subr.mxu0 0.0
        %v1349 = vand.u32 %v513, 4294901760
        %1350 = vmatpush1.msra.mxu0 %v1349
        %1351 = vmatprep.subr.mxu0 0.0
        %v1352 = vand.u32 %v514, 4294901760
        %1353 = vmatpush1.msra.mxu0 %v1352
        %1354 = vmatprep.subr.mxu0 0.0
        %v1355 = vand.u32 %v515, 4294901760
        %1356 = vmatpush1.msra.mxu0 %v1355
        %1357 = vmatprep.subr.mxu0 0.0
        %v1358 = vand.u32 %v516, 4294901760
        %1359 = vmatpush1.msra.mxu0 %v1358
        %1360 = vmatprep.subr.mxu0 0.0
        %v1361 = vand.u32 %v517, 4294901760
        %1362 = vmatpush1.msra.mxu0 %v1361
        %1363 = vmatprep.subr.mxu0 0.0
        %v1364 = vand.u32 %v518, 4294901760
        %1365 = vmatpush1.msra.mxu0 %v1364
        %1366 = vmatprep.subr.mxu0 0.0
        %v1367 = vand.u32 %v519, 4294901760
        %1368 = vmatpush1.msra.mxu0 %v1367
        %1369 = vmatprep.subr.mxu0 0.0
        %v1370 = vand.u32 %v520, 4294901760
        %1371 = vmatpush1.msra.mxu0 %v1370
        %1372 = vmatprep.subr.mxu0 0.0
        %v1373 = vand.u32 %v521, 4294901760
        %1374 = vmatpush1.msra.mxu0 %v1373
        %1375 = vmatprep.subr.mxu0 0.0
        %v1376 = vand.u32 %v522, 4294901760
        %1377 = vmatpush1.msra.mxu0 %v1376
        %1378 = vmatprep.subr.mxu0 0.0
        %v1379 = vand.u32 %v523, 4294901760
        %1380 = vmatpush1.msra.mxu0 %v1379
        %1381 = vmatprep.subr.mxu0 0.0
        %v1382 = vand.u32 %v524, 4294901760
        %1383 = vmatpush1.msra.mxu0 %v1382
        %1384 = vmatprep.subr.mxu0 0.0
        %v1385 = vand.u32 %v525, 4294901760
        %1386 = vmatpush1.msra.mxu0 %v1385
        %1387 = vmatprep.subr.mxu0 0.0
        %1388 = vmatpush1.msra.mxu0 0.0
        %1389 = vmatprep.subr.mxu0 0.0
        %1390 = vmatpush1.msra.mxu0 0.0
        %1391 = vmatprep.subr.mxu0 0.0
        %1392 = vmatpush1.msra.mxu0 0.0
        %1393 = vmatprep.subr.mxu0 0.0
        %1394 = vmatpush1.msra.mxu0 0.0
        %1395 = vmatprep.subr.mxu0 0.0
        %1396 = vmatpush1.msra.mxu0 0.0
        %1397 = vmatprep.subr.mxu0 0.0
        %1398 = vmatpush1.msra.mxu0 0.0
        %1399 = vmatprep.subr.mxu0 0.0
        %1400 = vmatpush1.msra.mxu0 0.0
        %1401 = vmatprep.subr.mxu0 0.0
        %1402 = vmatpush1.msra.mxu0 0.0
        %1403 = vmatprep.subr.mxu0 0.0
        %1404 = vmatpush1.msra.mxu0 0.0
        %1405 = vmatprep.subr.mxu0 0.0
        %1406 = vmatpush1.msra.mxu0 0.0
        %1407 = vmatprep.subr.mxu0 0.0
        %1408 = vmatpush1.msra.mxu0 0.0
        %1409 = vmatprep.subr.mxu0 0.0
        %1410 = vmatpush1.msra.mxu0 0.0
        %1411 = vmatprep.subr.mxu0 0.0
        %1412 = vmatpush1.msra.mxu0 0.0
        %1413 = vmatprep.subr.mxu0 0.0
        %1414 = vmatpush1.msra.mxu0 0.0
        %1415 = vmatprep.subr.mxu0 0.0
        %1416 = vmatpush1.msra.mxu0 0.0
        %1417 = vmatprep.subr.mxu0 0.0
        %1418 = vmatpush1.msra.mxu0 0.0
        %1419 = vmatprep.mubr.f32.mxu0 0.0
        %v1420 = vand.u32 %v455, 4294901760
        %1421 = vmatmul.mubr.f32.gmra.mrb[0].mxu0 %v1420
        %v1422 = vpop.f32.mrb[0].mxu0
        %v1423 = vadd.f32 %v1294, %v1422
        %v1424 = vpop.f32.mrb[0].mxu0
        %1425 = vmatprep.mubr.f32.mxu0 0.0
        %v1426 = vand.u32 %v457, 4294901760
        %1427 = vmatmul.mubr.f32.gmra.mrb[0].mxu0 %v1426
        %v1428 = vpop.f32.mrb[0].mxu0
        %v1429 = vadd.f32 %v1300, %v1428
        %v1430 = vpop.f32.mrb[0].mxu0
        %1431 = vmatprep.mubr.f32.mxu0 0.0
        %v1432 = vand.u32 %v459, 4294901760
        %1433 = vmatmul.mubr.f32.gmra.mrb[0].mxu0 %v1432
        %v1434 = vpop.f32.mrb[0].mxu0
        %v1435 = vadd.f32 %v1306, %v1434
        %v1436 = vpop.f32.mrb[0].mxu0
        %1437 = vmatprep.mubr.f32.mxu0 0.0
        %v1438 = vand.u32 %v461, 4294901760
        %1439 = vmatmul.mubr.f32.gmra.mrb[0].mxu0 %v1438
        %v1440 = vpop.f32.mrb[0].mxu0
        %v1441 = vadd.f32 %v1312, %v1440
        %v1442 = vpop.f32.mrb[0].mxu0
        %1443 = vmatprep.mubr.f32.mxu0 0.0
        %v1444 = vand.u32 %v463, 4294901760
        %1445 = vmatmul.mubr.f32.gmra.mrb[0].mxu0 %v1444
        %v1446 = vpop.f32.mrb[0].mxu0
        %v1447 = vadd.f32 %v1318, %v1446
        %v1448 = vpop.f32.mrb[0].mxu0
        %1449 = vmatprep.mubr.f32.mxu0 0.0
        %v1450 = vand.u32 %v465, 4294901760
        %1451 = vmatmul.mubr.f32.gmra.mrb[0].mxu0 %v1450
        %v1452 = vpop.f32.mrb[0].mxu0
        %v1453 = vadd.f32 %v1324, %v1452
        %v1454 = vpop.f32.mrb[0].mxu0
        %1455 = vmatprep.mubr.f32.mxu0 0.0
        %v1456 = vand.u32 %v467, 4294901760
        %1457 = vmatmul.mubr.f32.gmra.mrb[0].mxu0 %v1456
        %v1458 = vpop.f32.mrb[0].mxu0
        %v1459 = vadd.f32 %v1330, %v1458
        %v1460 = vpop.f32.mrb[0].mxu0
        %1461 = vmatprep.mubr.f32.mxu0 0.0
        %v1462 = vand.u32 %v469, 4294901760
        %1463 = vmatmul.mubr.f32.gmra.mrb[0].mxu0 %v1462
        %v1464 = vpop.f32.mrb[0].mxu0
        %v1465 = vadd.f32 %v1336, %v1464
        %v1466 = vpop.f32.mrb[0].mxu0
        %1467 = vdwg.mxu0
        %1468 = vmatprep.subr.mxu0 0.0
        %v1469 = vand.u32 %v510, 4294901760
        %1470 = vmatpush1.msra.mxu0 %v1469
        %1471 = vmatprep.subr.mxu0 0.0
        %v1472 = vand.u32 %v511, 4294901760
        %1473 = vmatpush1.msra.mxu0 %v1472
        %1474 = vmatprep.subr.mxu0 0.0
        %v1475 = vand.u32 %v512, 4294901760
        %1476 = vmatpush1.msra.mxu0 %v1475
        %1477 = vmatprep.subr.mxu0 0.0
        %v1478 = vand.u32 %v513, 4294901760
        %1479 = vmatpush1.msra.mxu0 %v1478
        %1480 = vmatprep.subr.mxu0 0.0
        %v1481 = vand.u32 %v514, 4294901760
        %1482 = vmatpush1.msra.mxu0 %v1481
        %1483 = vmatprep.subr.mxu0 0.0
        %v1484 = vand.u32 %v515, 4294901760
        %1485 = vmatpush1.msra.mxu0 %v1484
        %1486 = vmatprep.subr.mxu0 0.0
        %v1487 = vand.u32 %v516, 4294901760
        %1488 = vmatpush1.msra.mxu0 %v1487
        %1489 = vmatprep.subr.mxu0 0.0
        %v1490 = vand.u32 %v517, 4294901760
        %1491 = vmatpush1.msra.mxu0 %v1490
        %1492 = vmatprep.subr.mxu0 0.0
        %v1493 = vand.u32 %v518, 4294901760
        %1494 = vmatpush1.msra.mxu0 %v1493
        %1495 = vmatprep.subr.mxu0 0.0
        %v1496 = vand.u32 %v519, 4294901760
        %1497 = vmatpush1.msra.mxu0 %v1496
        %1498 = vmatprep.subr.mxu0 0.0
        %v1499 = vand.u32 %v520, 4294901760
        %1500 = vmatpush1.msra.mxu0 %v1499
        %1501 = vmatprep.subr.mxu0 0.0
        %v1502 = vand.u32 %v521, 4294901760
        %1503 = vmatpush1.msra.mxu0 %v1502
        %1504 = vmatprep.subr.mxu0 0.0
        %v1505 = vand.u32 %v522, 4294901760
        %1506 = vmatpush1.msra.mxu0 %v1505
        %1507 = vmatprep.subr.mxu0 0.0
        %v1508 = vand.u32 %v523, 4294901760
        %1509 = vmatpush1.msra.mxu0 %v1508
        %1510 = vmatprep.subr.mxu0 0.0
        %v1511 = vand.u32 %v524, 4294901760
        %1512 = vmatpush1.msra.mxu0 %v1511
        %1513 = vmatprep.subr.mxu0 0.0
        %v1514 = vand.u32 %v525, 4294901760
        %1515 = vmatpush1.msra.mxu0 %v1514
        %1516 = vmatprep.subr.mxu0 0.0
        %1517 = vmatpush1.msra.mxu0 0.0
        %1518 = vmatprep.subr.mxu0 0.0
        %1519 = vmatpush1.msra.mxu0 0.0
        %1520 = vmatprep.subr.mxu0 0.0
        %1521 = vmatpush1.msra.mxu0 0.0
        %1522 = vmatprep.subr.mxu0 0.0
        %1523 = vmatpush1.msra.mxu0 0.0
        %1524 = vmatprep.subr.mxu0 0.0
        %1525 = vmatpush1.msra.mxu0 0.0
        %1526 = vmatprep.subr.mxu0 0.0
        %1527 = vmatpush1.msra.mxu0 0.0
        %1528 = vmatprep.subr.mxu0 0.0
        %1529 = vmatpush1.msra.mxu0 0.0
        %1530 = vmatprep.subr.mxu0 0.0
        %1531 = vmatpush1.msra.mxu0 0.0
        %1532 = vmatprep.subr.mxu0 0.0
        %1533 = vmatpush1.msra.mxu0 0.0
        %1534 = vmatprep.subr.mxu0 0.0
        %1535 = vmatpush1.msra.mxu0 0.0
        %1536 = vmatprep.subr.mxu0 0.0
        %1537 = vmatpush1.msra.mxu0 0.0
        %1538 = vmatprep.subr.mxu0 0.0
        %1539 = vmatpush1.msra.mxu0 0.0
        %1540 = vmatprep.subr.mxu0 0.0
        %1541 = vmatpush1.msra.mxu0 0.0
        %1542 = vmatprep.subr.mxu0 0.0
        %1543 = vmatpush1.msra.mxu0 0.0
        %1544 = vmatprep.subr.mxu0 0.0
        %1545 = vmatpush1.msra.mxu0 0.0
        %1546 = vmatprep.subr.mxu0 0.0
        %1547 = vmatpush1.msra.mxu0 0.0
        %1548 = vmatprep.mubr.f32.mxu0 0.0
        %v1549 = vand.u32 %v495, 4294901760
        %v1550 = vsub.f32 %v495, %v1549
        %v1551 = vand.u32 %v1550, 4294901760
        %v1552 = vsub.f32 %v1550, %v1551
        %v1553 = vand.u32 %v1552, 4294901760
        %1554 = vmatmul.mubr.f32.gmra.mrb[0].mxu0 %v1553
        %v1555 = vpop.f32.mrb[0].mxu0
        %v1556 = vadd.f32 0.0, %v1555
        %v1557 = vpop.f32.mrb[0].mxu0
        %1558 = vmatprep.mubr.f32.mxu0 0.0
        %v1559 = vand.u32 %v497, 4294901760
        %v1560 = vsub.f32 %v497, %v1559
        %v1561 = vand.u32 %v1560, 4294901760
        %v1562 = vsub.f32 %v1560, %v1561
        %v1563 = vand.u32 %v1562, 4294901760
        %1564 = vmatmul.mubr.f32.gmra.mrb[0].mxu0 %v1563
        %v1565 = vpop.f32.mrb[0].mxu0
        %v1566 = vadd.f32 0.0, %v1565
        %v1567 = vpop.f32.mrb[0].mxu0
        %1568 = vmatprep.mubr.f32.mxu0 0.0
        %v1569 = vand.u32 %v499, 4294901760
        %v1570 = vsub.f32 %v499, %v1569
        %v1571 = vand.u32 %v1570, 4294901760
        %v1572 = vsub.f32 %v1570, %v1571
        %v1573 = vand.u32 %v1572, 4294901760
        %1574 = vmatmul.mubr.f32.gmra.mrb[0].mxu0 %v1573
        %v1575 = vpop.f32.mrb[0].mxu0
        %v1576 = vadd.f32 0.0, %v1575
        %v1577 = vpop.f32.mrb[0].mxu0
        %1578 = vmatprep.mubr.f32.mxu0 0.0
        %v1579 = vand.u32 %v501, 4294901760
        %v1580 = vsub.f32 %v501, %v1579
        %v1581 = vand.u32 %v1580, 4294901760
        %v1582 = vsub.f32 %v1580, %v1581
        %v1583 = vand.u32 %v1582, 4294901760
        %1584 = vmatmul.mubr.f32.gmra.mrb[0].mxu0 %v1583
        %v1585 = vpop.f32.mrb[0].mxu0
        %v1586 = vadd.f32 0.0, %v1585
        %v1587 = vpop.f32.mrb[0].mxu0
        %1588 = vmatprep.mubr.f32.mxu0 0.0
        %v1589 = vand.u32 %v503, 4294901760
        %v1590 = vsub.f32 %v503, %v1589
        %v1591 = vand.u32 %v1590, 4294901760
        %v1592 = vsub.f32 %v1590, %v1591
        %v1593 = vand.u32 %v1592, 4294901760
        %1594 = vmatmul.mubr.f32.gmra.mrb[0].mxu0 %v1593
        %v1595 = vpop.f32.mrb[0].mxu0
        %v1596 = vadd.f32 0.0, %v1595
        %v1597 = vpop.f32.mrb[0].mxu0
        %1598 = vmatprep.mubr.f32.mxu0 0.0
        %v1599 = vand.u32 %v505, 4294901760
        %v1600 = vsub.f32 %v505, %v1599
        %v1601 = vand.u32 %v1600, 4294901760
        %v1602 = vsub.f32 %v1600, %v1601
        %v1603 = vand.u32 %v1602, 4294901760
        %1604 = vmatmul.mubr.f32.gmra.mrb[0].mxu0 %v1603
        %v1605 = vpop.f32.mrb[0].mxu0
        %v1606 = vadd.f32 0.0, %v1605
        %v1607 = vpop.f32.mrb[0].mxu0
        %1608 = vmatprep.mubr.f32.mxu0 0.0
        %v1609 = vand.u32 %v507, 4294901760
        %v1610 = vsub.f32 %v507, %v1609
        %v1611 = vand.u32 %v1610, 4294901760
        %v1612 = vsub.f32 %v1610, %v1611
        %v1613 = vand.u32 %v1612, 4294901760
        %1614 = vmatmul.mubr.f32.gmra.mrb[0].mxu0 %v1613
        %v1615 = vpop.f32.mrb[0].mxu0
        %v1616 = vadd.f32 0.0, %v1615
        %v1617 = vpop.f32.mrb[0].mxu0
        %1618 = vmatprep.mubr.f32.mxu0 0.0
        %v1619 = vand.u32 %v509, 4294901760
        %v1620 = vsub.f32 %v509, %v1619
        %v1621 = vand.u32 %v1620, 4294901760
        %v1622 = vsub.f32 %v1620, %v1621
        %v1623 = vand.u32 %v1622, 4294901760
        %1624 = vmatmul.mubr.f32.gmra.mrb[0].mxu0 %v1623
        %v1625 = vpop.f32.mrb[0].mxu0
        %v1626 = vadd.f32 0.0, %v1625
        %v1627 = vpop.f32.mrb[0].mxu0
        %1628 = vdwg.mxu0
        %1629 = vmatprep.subr.mxu0 0.0
        %v1630 = vand.u32 %v510, 4294901760
        %v1631 = vsub.f32 %v510, %v1630
        %v1632 = vand.u32 %v1631, 4294901760
        %v1633 = vsub.f32 %v1631, %v1632
        %v1634 = vand.u32 %v1633, 4294901760
        %1635 = vmatpush1.msra.mxu0 %v1634
        %1636 = vmatprep.subr.mxu0 0.0
        %v1637 = vand.u32 %v511, 4294901760
        %v1638 = vsub.f32 %v511, %v1637
        %v1639 = vand.u32 %v1638, 4294901760
        %v1640 = vsub.f32 %v1638, %v1639
        %v1641 = vand.u32 %v1640, 4294901760
        %1642 = vmatpush1.msra.mxu0 %v1641
        %1643 = vmatprep.subr.mxu0 0.0
        %v1644 = vand.u32 %v512, 4294901760
        %v1645 = vsub.f32 %v512, %v1644
        %v1646 = vand.u32 %v1645, 4294901760
        %v1647 = vsub.f32 %v1645, %v1646
        %v1648 = vand.u32 %v1647, 4294901760
        %1649 = vmatpush1.msra.mxu0 %v1648
        %1650 = vmatprep.subr.mxu0 0.0
        %v1651 = vand.u32 %v513, 4294901760
        %v1652 = vsub.f32 %v513, %v1651
        %v1653 = vand.u32 %v1652, 4294901760
        %v1654 = vsub.f32 %v1652, %v1653
        %v1655 = vand.u32 %v1654, 4294901760
        %1656 = vmatpush1.msra.mxu0 %v1655
        %1657 = vmatprep.subr.mxu0 0.0
        %v1658 = vand.u32 %v514, 4294901760
        %v1659 = vsub.f32 %v514, %v1658
        %v1660 = vand.u32 %v1659, 4294901760
        %v1661 = vsub.f32 %v1659, %v1660
        %v1662 = vand.u32 %v1661, 4294901760
        %1663 = vmatpush1.msra.mxu0 %v1662
        %1664 = vmatprep.subr.mxu0 0.0
        %v1665 = vand.u32 %v515, 4294901760
        %v1666 = vsub.f32 %v515, %v1665
        %v1667 = vand.u32 %v1666, 4294901760
        %v1668 = vsub.f32 %v1666, %v1667
        %v1669 = vand.u32 %v1668, 4294901760
        %1670 = vmatpush1.msra.mxu0 %v1669
        %1671 = vmatprep.subr.mxu0 0.0
        %v1672 = vand.u32 %v516, 4294901760
        %v1673 = vsub.f32 %v516, %v1672
        %v1674 = vand.u32 %v1673, 4294901760
        %v1675 = vsub.f32 %v1673, %v1674
        %v1676 = vand.u32 %v1675, 4294901760
        %1677 = vmatpush1.msra.mxu0 %v1676
        %1678 = vmatprep.subr.mxu0 0.0
        %v1679 = vand.u32 %v517, 4294901760
        %v1680 = vsub.f32 %v517, %v1679
        %v1681 = vand.u32 %v1680, 4294901760
        %v1682 = vsub.f32 %v1680, %v1681
        %v1683 = vand.u32 %v1682, 4294901760
        %1684 = vmatpush1.msra.mxu0 %v1683
        %1685 = vmatprep.subr.mxu0 0.0
        %v1686 = vand.u32 %v518, 4294901760
        %v1687 = vsub.f32 %v518, %v1686
        %v1688 = vand.u32 %v1687, 4294901760
        %v1689 = vsub.f32 %v1687, %v1688
        %v1690 = vand.u32 %v1689, 4294901760
        %1691 = vmatpush1.msra.mxu0 %v1690
        %1692 = vmatprep.subr.mxu0 0.0
        %v1693 = vand.u32 %v519, 4294901760
        %v1694 = vsub.f32 %v519, %v1693
        %v1695 = vand.u32 %v1694, 4294901760
        %v1696 = vsub.f32 %v1694, %v1695
        %v1697 = vand.u32 %v1696, 4294901760
        %1698 = vmatpush1.msra.mxu0 %v1697
        %1699 = vmatprep.subr.mxu0 0.0
        %v1700 = vand.u32 %v520, 4294901760
        %v1701 = vsub.f32 %v520, %v1700
        %v1702 = vand.u32 %v1701, 4294901760
        %v1703 = vsub.f32 %v1701, %v1702
        %v1704 = vand.u32 %v1703, 4294901760
        %1705 = vmatpush1.msra.mxu0 %v1704
        %1706 = vmatprep.subr.mxu0 0.0
        %v1707 = vand.u32 %v521, 4294901760
        %v1708 = vsub.f32 %v521, %v1707
        %v1709 = vand.u32 %v1708, 4294901760
        %v1710 = vsub.f32 %v1708, %v1709
        %v1711 = vand.u32 %v1710, 4294901760
        %1712 = vmatpush1.msra.mxu0 %v1711
        %1713 = vmatprep.subr.mxu0 0.0
        %v1714 = vand.u32 %v522, 4294901760
        %v1715 = vsub.f32 %v522, %v1714
        %v1716 = vand.u32 %v1715, 4294901760
        %v1717 = vsub.f32 %v1715, %v1716
        %v1718 = vand.u32 %v1717, 4294901760
        %1719 = vmatpush1.msra.mxu0 %v1718
        %1720 = vmatprep.subr.mxu0 0.0
        %v1721 = vand.u32 %v523, 4294901760
        %v1722 = vsub.f32 %v523, %v1721
        %v1723 = vand.u32 %v1722, 4294901760
        %v1724 = vsub.f32 %v1722, %v1723
        %v1725 = vand.u32 %v1724, 4294901760
        %1726 = vmatpush1.msra.mxu0 %v1725
        %1727 = vmatprep.subr.mxu0 0.0
        %v1728 = vand.u32 %v524, 4294901760
        %v1729 = vsub.f32 %v524, %v1728
        %v1730 = vand.u32 %v1729, 4294901760
        %v1731 = vsub.f32 %v1729, %v1730
        %v1732 = vand.u32 %v1731, 4294901760
        %1733 = vmatpush1.msra.mxu0 %v1732
        %1734 = vmatprep.subr.mxu0 0.0
        %v1735 = vand.u32 %v525, 4294901760
        %v1736 = vsub.f32 %v525, %v1735
        %v1737 = vand.u32 %v1736, 4294901760
        %v1738 = vsub.f32 %v1736, %v1737
        %v1739 = vand.u32 %v1738, 4294901760
        %1740 = vmatpush1.msra.mxu0 %v1739
        %1741 = vmatprep.subr.mxu0 0.0
        %1742 = vmatpush1.msra.mxu0 0.0
        %1743 = vmatprep.subr.mxu0 0.0
        %1744 = vmatpush1.msra.mxu0 0.0
        %1745 = vmatprep.subr.mxu0 0.0
        %1746 = vmatpush1.msra.mxu0 0.0
        %1747 = vmatprep.subr.mxu0 0.0
        %1748 = vmatpush1.msra.mxu0 0.0
        %1749 = vmatprep.subr.mxu0 0.0
        %1750 = vmatpush1.msra.mxu0 0.0
        %1751 = vmatprep.subr.mxu0 0.0
        %1752 = vmatpush1.msra.mxu0 0.0
        %1753 = vmatprep.subr.mxu0 0.0
        %1754 = vmatpush1.msra.mxu0 0.0
        %1755 = vmatprep.subr.mxu0 0.0
        %1756 = vmatpush1.msra.mxu0 0.0
        %1757 = vmatprep.subr.mxu0 0.0
        %1758 = vmatpush1.msra.mxu0 0.0
        %1759 = vmatprep.subr.mxu0 0.0
        %1760 = vmatpush1.msra.mxu0 0.0
        %1761 = vmatprep.subr.mxu0 0.0
        %1762 = vmatpush1.msra.mxu0 0.0
        %1763 = vmatprep.subr.mxu0 0.0
        %1764 = vmatpush1.msra.mxu0 0.0
        %1765 = vmatprep.subr.mxu0 0.0
        %1766 = vmatpush1.msra.mxu0 0.0
        %1767 = vmatprep.subr.mxu0 0.0
        %1768 = vmatpush1.msra.mxu0 0.0
        %1769 = vmatprep.subr.mxu0 0.0
        %1770 = vmatpush1.msra.mxu0 0.0
        %1771 = vmatprep.subr.mxu0 0.0
        %1772 = vmatpush1.msra.mxu0 0.0
        %1773 = vmatprep.mubr.f32.mxu0 0.0
        %v1774 = vand.u32 %v495, 4294901760
        %1775 = vmatmul.mubr.f32.gmra.mrb[0].mxu0 %v1774
        %v1776 = vpop.f32.mrb[0].mxu0
        %v1777 = vadd.f32 %v1556, %v1776
        %v1778 = vpop.f32.mrb[0].mxu0
        %1779 = vmatprep.mubr.f32.mxu0 0.0
        %v1780 = vand.u32 %v497, 4294901760
        %1781 = vmatmul.mubr.f32.gmra.mrb[0].mxu0 %v1780
        %v1782 = vpop.f32.mrb[0].mxu0
        %v1783 = vadd.f32 %v1566, %v1782
        %v1784 = vpop.f32.mrb[0].mxu0
        %1785 = vmatprep.mubr.f32.mxu0 0.0
        %v1786 = vand.u32 %v499, 4294901760
        %1787 = vmatmul.mubr.f32.gmra.mrb[0].mxu0 %v1786
        %v1788 = vpop.f32.mrb[0].mxu0
        %v1789 = vadd.f32 %v1576, %v1788
        %v1790 = vpop.f32.mrb[0].mxu0
        %1791 = vmatprep.mubr.f32.mxu0 0.0
        %v1792 = vand.u32 %v501, 4294901760
        %1793 = vmatmul.mubr.f32.gmra.mrb[0].mxu0 %v1792
        %v1794 = vpop.f32.mrb[0].mxu0
        %v1795 = vadd.f32 %v1586, %v1794
        %v1796 = vpop.f32.mrb[0].mxu0
        %1797 = vmatprep.mubr.f32.mxu0 0.0
        %v1798 = vand.u32 %v503, 4294901760
        %1799 = vmatmul.mubr.f32.gmra.mrb[0].mxu0 %v1798
        %v1800 = vpop.f32.mrb[0].mxu0
        %v1801 = vadd.f32 %v1596, %v1800
        %v1802 = vpop.f32.mrb[0].mxu0
        %1803 = vmatprep.mubr.f32.mxu0 0.0
        %v1804 = vand.u32 %v505, 4294901760
        %1805 = vmatmul.mubr.f32.gmra.mrb[0].mxu0 %v1804
        %v1806 = vpop.f32.mrb[0].mxu0
        %v1807 = vadd.f32 %v1606, %v1806
        %v1808 = vpop.f32.mrb[0].mxu0
        %1809 = vmatprep.mubr.f32.mxu0 0.0
        %v1810 = vand.u32 %v507, 4294901760
        %1811 = vmatmul.mubr.f32.gmra.mrb[0].mxu0 %v1810
        %v1812 = vpop.f32.mrb[0].mxu0
        %v1813 = vadd.f32 %v1616, %v1812
        %v1814 = vpop.f32.mrb[0].mxu0
        %1815 = vmatprep.mubr.f32.mxu0 0.0
        %v1816 = vand.u32 %v509, 4294901760
        %1817 = vmatmul.mubr.f32.gmra.mrb[0].mxu0 %v1816
        %v1818 = vpop.f32.mrb[0].mxu0
        %v1819 = vadd.f32 %v1626, %v1818
        %v1820 = vpop.f32.mrb[0].mxu0
        %1821 = vdwg.mxu0
        %1822 = vmatprep.subr.mxu0 0.0
        %v1823 = vand.u32 %v510, 4294901760
        %v1824 = vsub.f32 %v510, %v1823
        %1825 = vmatpush1.msra.mxu0 %v1824
        %1826 = vmatprep.subr.mxu0 0.0
        %v1827 = vand.u32 %v511, 4294901760
        %v1828 = vsub.f32 %v511, %v1827
        %1829 = vmatpush1.msra.mxu0 %v1828
        %1830 = vmatprep.subr.mxu0 0.0
        %v1831 = vand.u32 %v512, 4294901760
        %v1832 = vsub.f32 %v512, %v1831
        %1833 = vmatpush1.msra.mxu0 %v1832
        %1834 = vmatprep.subr.mxu0 0.0
        %v1835 = vand.u32 %v513, 4294901760
        %v1836 = vsub.f32 %v513, %v1835
        %1837 = vmatpush1.msra.mxu0 %v1836
        %1838 = vmatprep.subr.mxu0 0.0
        %v1839 = vand.u32 %v514, 4294901760
        %v1840 = vsub.f32 %v514, %v1839
        %1841 = vmatpush1.msra.mxu0 %v1840
        %1842 = vmatprep.subr.mxu0 0.0
        %v1843 = vand.u32 %v515, 4294901760
        %v1844 = vsub.f32 %v515, %v1843
        %1845 = vmatpush1.msra.mxu0 %v1844
        %1846 = vmatprep.subr.mxu0 0.0
        %v1847 = vand.u32 %v516, 4294901760
        %v1848 = vsub.f32 %v516, %v1847
        %1849 = vmatpush1.msra.mxu0 %v1848
        %1850 = vmatprep.subr.mxu0 0.0
        %v1851 = vand.u32 %v517, 4294901760
        %v1852 = vsub.f32 %v517, %v1851
        %1853 = vmatpush1.msra.mxu0 %v1852
        %1854 = vmatprep.subr.mxu0 0.0
        %v1855 = vand.u32 %v518, 4294901760
        %v1856 = vsub.f32 %v518, %v1855
        %1857 = vmatpush1.msra.mxu0 %v1856
        %1858 = vmatprep.subr.mxu0 0.0
        %v1859 = vand.u32 %v519, 4294901760
        %v1860 = vsub.f32 %v519, %v1859
        %1861 = vmatpush1.msra.mxu0 %v1860
        %1862 = vmatprep.subr.mxu0 0.0
        %v1863 = vand.u32 %v520, 4294901760
        %v1864 = vsub.f32 %v520, %v1863
        %1865 = vmatpush1.msra.mxu0 %v1864
        %1866 = vmatprep.subr.mxu0 0.0
        %v1867 = vand.u32 %v521, 4294901760
        %v1868 = vsub.f32 %v521, %v1867
        %1869 = vmatpush1.msra.mxu0 %v1868
        %1870 = vmatprep.subr.mxu0 0.0
        %v1871 = vand.u32 %v522, 4294901760
        %v1872 = vsub.f32 %v522, %v1871
        %1873 = vmatpush1.msra.mxu0 %v1872
        %1874 = vmatprep.subr.mxu0 0.0
        %v1875 = vand.u32 %v523, 4294901760
        %v1876 = vsub.f32 %v523, %v1875
        %1877 = vmatpush1.msra.mxu0 %v1876
        %1878 = vmatprep.subr.mxu0 0.0
        %v1879 = vand.u32 %v524, 4294901760
        %v1880 = vsub.f32 %v524, %v1879
        %1881 = vmatpush1.msra.mxu0 %v1880
        %1882 = vmatprep.subr.mxu0 0.0
        %v1883 = vand.u32 %v525, 4294901760
        %v1884 = vsub.f32 %v525, %v1883
        %1885 = vmatpush1.msra.mxu0 %v1884
        %1886 = vmatprep.subr.mxu0 0.0
        %1887 = vmatpush1.msra.mxu0 0.0
        %1888 = vmatprep.subr.mxu0 0.0
        %1889 = vmatpush1.msra.mxu0 0.0
        %1890 = vmatprep.subr.mxu0 0.0
        %1891 = vmatpush1.msra.mxu0 0.0
        %1892 = vmatprep.subr.mxu0 0.0
        %1893 = vmatpush1.msra.mxu0 0.0
        %1894 = vmatprep.subr.mxu0 0.0
        %1895 = vmatpush1.msra.mxu0 0.0
        %1896 = vmatprep.subr.mxu0 0.0
        %1897 = vmatpush1.msra.mxu0 0.0
        %1898 = vmatprep.subr.mxu0 0.0
        %1899 = vmatpush1.msra.mxu0 0.0
        %1900 = vmatprep.subr.mxu0 0.0
        %1901 = vmatpush1.msra.mxu0 0.0
        %1902 = vmatprep.subr.mxu0 0.0
        %1903 = vmatpush1.msra.mxu0 0.0
        %1904 = vmatprep.subr.mxu0 0.0
        %1905 = vmatpush1.msra.mxu0 0.0
        %1906 = vmatprep.subr.mxu0 0.0
        %1907 = vmatpush1.msra.mxu0 0.0
        %1908 = vmatprep.subr.mxu0 0.0
        %1909 = vmatpush1.msra.mxu0 0.0
        %1910 = vmatprep.subr.mxu0 0.0
        %1911 = vmatpush1.msra.mxu0 0.0
        %1912 = vmatprep.subr.mxu0 0.0
        %1913 = vmatpush1.msra.mxu0 0.0
        %1914 = vmatprep.subr.mxu0 0.0
        %1915 = vmatpush1.msra.mxu0 0.0
        %1916 = vmatprep.subr.mxu0 0.0
        %1917 = vmatpush1.msra.mxu0 0.0
        %1918 = vmatprep.mubr.f32.mxu0 0.0
        %v1919 = vand.u32 %v495, 4294901760
        %v1920 = vsub.f32 %v495, %v1919
        %1921 = vmatmul.mubr.f32.gmra.mrb[0].mxu0 %v1920
        %v1922 = vpop.f32.mrb[0].mxu0
        %v1923 = vadd.f32 %v1777, %v1922
        %v1924 = vpop.f32.mrb[0].mxu0
        %1925 = vmatprep.mubr.f32.mxu0 0.0
        %v1926 = vand.u32 %v497, 4294901760
        %v1927 = vsub.f32 %v497, %v1926
        %1928 = vmatmul.mubr.f32.gmra.mrb[0].mxu0 %v1927
        %v1929 = vpop.f32.mrb[0].mxu0
        %v1930 = vadd.f32 %v1783, %v1929
        %v1931 = vpop.f32.mrb[0].mxu0
        %1932 = vmatprep.mubr.f32.mxu0 0.0
        %v1933 = vand.u32 %v499, 4294901760
        %v1934 = vsub.f32 %v499, %v1933
        %1935 = vmatmul.mubr.f32.gmra.mrb[0].mxu0 %v1934
        %v1936 = vpop.f32.mrb[0].mxu0
        %v1937 = vadd.f32 %v1789, %v1936
        %v1938 = vpop.f32.mrb[0].mxu0
        %1939 = vmatprep.mubr.f32.mxu0 0.0
        %v1940 = vand.u32 %v501, 4294901760
        %v1941 = vsub.f32 %v501, %v1940
        %1942 = vmatmul.mubr.f32.gmra.mrb[0].mxu0 %v1941
        %v1943 = vpop.f32.mrb[0].mxu0
        %v1944 = vadd.f32 %v1795, %v1943
        %v1945 = vpop.f32.mrb[0].mxu0
        %1946 = vmatprep.mubr.f32.mxu0 0.0
        %v1947 = vand.u32 %v503, 4294901760
        %v1948 = vsub.f32 %v503, %v1947
        %1949 = vmatmul.mubr.f32.gmra.mrb[0].mxu0 %v1948
        %v1950 = vpop.f32.mrb[0].mxu0
        %v1951 = vadd.f32 %v1801, %v1950
        %v1952 = vpop.f32.mrb[0].mxu0
        %1953 = vmatprep.mubr.f32.mxu0 0.0
        %v1954 = vand.u32 %v505, 4294901760
        %v1955 = vsub.f32 %v505, %v1954
        %1956 = vmatmul.mubr.f32.gmra.mrb[0].mxu0 %v1955
        %v1957 = vpop.f32.mrb[0].mxu0
        %v1958 = vadd.f32 %v1807, %v1957
        %v1959 = vpop.f32.mrb[0].mxu0
        %1960 = vmatprep.mubr.f32.mxu0 0.0
        %v1961 = vand.u32 %v507, 4294901760
        %v1962 = vsub.f32 %v507, %v1961
        %1963 = vmatmul.mubr.f32.gmra.mrb[0].mxu0 %v1962
        %v1964 = vpop.f32.mrb[0].mxu0
        %v1965 = vadd.f32 %v1813, %v1964
        %v1966 = vpop.f32.mrb[0].mxu0
        %1967 = vmatprep.mubr.f32.mxu0 0.0
        %v1968 = vand.u32 %v509, 4294901760
        %v1969 = vsub.f32 %v509, %v1968
        %1970 = vmatmul.mubr.f32.gmra.mrb[0].mxu0 %v1969
        %v1971 = vpop.f32.mrb[0].mxu0
        %v1972 = vadd.f32 %v1819, %v1971
        %v1973 = vpop.f32.mrb[0].mxu0
        %1974 = vdwg.mxu0
        %1975 = vmatprep.subr.mxu0 0.0
        %v1976 = vand.u32 %v510, 4294901760
        %1977 = vmatpush1.msra.mxu0 %v1976
        %1978 = vmatprep.subr.mxu0 0.0
        %v1979 = vand.u32 %v511, 4294901760
        %1980 = vmatpush1.msra.mxu0 %v1979
        %1981 = vmatprep.subr.mxu0 0.0
        %v1982 = vand.u32 %v512, 4294901760
        %1983 = vmatpush1.msra.mxu0 %v1982
        %1984 = vmatprep.subr.mxu0 0.0
        %v1985 = vand.u32 %v513, 4294901760
        %1986 = vmatpush1.msra.mxu0 %v1985
        %1987 = vmatprep.subr.mxu0 0.0
        %v1988 = vand.u32 %v514, 4294901760
        %1989 = vmatpush1.msra.mxu0 %v1988
        %1990 = vmatprep.subr.mxu0 0.0
        %v1991 = vand.u32 %v515, 4294901760
        %1992 = vmatpush1.msra.mxu0 %v1991
        %1993 = vmatprep.subr.mxu0 0.0
        %v1994 = vand.u32 %v516, 4294901760
        %1995 = vmatpush1.msra.mxu0 %v1994
        %1996 = vmatprep.subr.mxu0 0.0
        %v1997 = vand.u32 %v517, 4294901760
        %1998 = vmatpush1.msra.mxu0 %v1997
        %1999 = vmatprep.subr.mxu0 0.0
        %v2000 = vand.u32 %v518, 4294901760
        %2001 = vmatpush1.msra.mxu0 %v2000
        %2002 = vmatprep.subr.mxu0 0.0
        %v2003 = vand.u32 %v519, 4294901760
        %2004 = vmatpush1.msra.mxu0 %v2003
        %2005 = vmatprep.subr.mxu0 0.0
        %v2006 = vand.u32 %v520, 4294901760
        %2007 = vmatpush1.msra.mxu0 %v2006
        %2008 = vmatprep.subr.mxu0 0.0
        %v2009 = vand.u32 %v521, 4294901760
        %2010 = vmatpush1.msra.mxu0 %v2009
        %2011 = vmatprep.subr.mxu0 0.0
        %v2012 = vand.u32 %v522, 4294901760
        %2013 = vmatpush1.msra.mxu0 %v2012
        %2014 = vmatprep.subr.mxu0 0.0
        %v2015 = vand.u32 %v523, 4294901760
        %2016 = vmatpush1.msra.mxu0 %v2015
        %2017 = vmatprep.subr.mxu0 0.0
        %v2018 = vand.u32 %v524, 4294901760
        %2019 = vmatpush1.msra.mxu0 %v2018
        %2020 = vmatprep.subr.mxu0 0.0
        %v2021 = vand.u32 %v525, 4294901760
        %2022 = vmatpush1.msra.mxu0 %v2021
        %2023 = vmatprep.subr.mxu0 0.0
        %2024 = vmatpush1.msra.mxu0 0.0
        %2025 = vmatprep.subr.mxu0 0.0
        %2026 = vmatpush1.msra.mxu0 0.0
        %2027 = vmatprep.subr.mxu0 0.0
        %2028 = vmatpush1.msra.mxu0 0.0
        %2029 = vmatprep.subr.mxu0 0.0
        %2030 = vmatpush1.msra.mxu0 0.0
        %2031 = vmatprep.subr.mxu0 0.0
        %2032 = vmatpush1.msra.mxu0 0.0
        %2033 = vmatprep.subr.mxu0 0.0
        %2034 = vmatpush1.msra.mxu0 0.0
        %2035 = vmatprep.subr.mxu0 0.0
        %2036 = vmatpush1.msra.mxu0 0.0
        %2037 = vmatprep.subr.mxu0 0.0
        %2038 = vmatpush1.msra.mxu0 0.0
        %2039 = vmatprep.subr.mxu0 0.0
        %2040 = vmatpush1.msra.mxu0 0.0
        %2041 = vmatprep.subr.mxu0 0.0
        %2042 = vmatpush1.msra.mxu0 0.0
        %2043 = vmatprep.subr.mxu0 0.0
        %2044 = vmatpush1.msra.mxu0 0.0
        %2045 = vmatprep.subr.mxu0 0.0
        %2046 = vmatpush1.msra.mxu0 0.0
        %2047 = vmatprep.subr.mxu0 0.0
        %2048 = vmatpush1.msra.mxu0 0.0
        %2049 = vmatprep.subr.mxu0 0.0
        %2050 = vmatpush1.msra.mxu0 0.0
        %2051 = vmatprep.subr.mxu0 0.0
        %2052 = vmatpush1.msra.mxu0 0.0
        %2053 = vmatprep.subr.mxu0 0.0
        %2054 = vmatpush1.msra.mxu0 0.0
        %2055 = vmatprep.mubr.f32.mxu0 0.0
        %v2056 = vand.u32 %v495, 4294901760
        %v2057 = vsub.f32 %v495, %v2056
        %v2058 = vand.u32 %v2057, 4294901760
        %2059 = vmatmul.mubr.f32.gmra.mrb[0].mxu0 %v2058
        %v2060 = vpop.f32.mrb[0].mxu0
        %v2061 = vadd.f32 %v1923, %v2060
        %v2062 = vpop.f32.mrb[0].mxu0
        %2063 = vmatprep.mubr.f32.mxu0 0.0
        %v2064 = vand.u32 %v497, 4294901760
        %v2065 = vsub.f32 %v497, %v2064
        %v2066 = vand.u32 %v2065, 4294901760
        %2067 = vmatmul.mubr.f32.gmra.mrb[0].mxu0 %v2066
        %v2068 = vpop.f32.mrb[0].mxu0
        %v2069 = vadd.f32 %v1930, %v2068
        %v2070 = vpop.f32.mrb[0].mxu0
        %2071 = vmatprep.mubr.f32.mxu0 0.0
        %v2072 = vand.u32 %v499, 4294901760
        %v2073 = vsub.f32 %v499, %v2072
        %v2074 = vand.u32 %v2073, 4294901760
        %2075 = vmatmul.mubr.f32.gmra.mrb[0].mxu0 %v2074
        %v2076 = vpop.f32.mrb[0].mxu0
        %v2077 = vadd.f32 %v1937, %v2076
        %v2078 = vpop.f32.mrb[0].mxu0
        %2079 = vmatprep.mubr.f32.mxu0 0.0
        %v2080 = vand.u32 %v501, 4294901760
        %v2081 = vsub.f32 %v501, %v2080
        %v2082 = vand.u32 %v2081, 4294901760
        %2083 = vmatmul.mubr.f32.gmra.mrb[0].mxu0 %v2082
        %v2084 = vpop.f32.mrb[0].mxu0
        %v2085 = vadd.f32 %v1944, %v2084
        %v2086 = vpop.f32.mrb[0].mxu0
        %2087 = vmatprep.mubr.f32.mxu0 0.0
        %v2088 = vand.u32 %v503, 4294901760
        %v2089 = vsub.f32 %v503, %v2088
        %v2090 = vand.u32 %v2089, 4294901760
        %2091 = vmatmul.mubr.f32.gmra.mrb[0].mxu0 %v2090
        %v2092 = vpop.f32.mrb[0].mxu0
        %v2093 = vadd.f32 %v1951, %v2092
        %v2094 = vpop.f32.mrb[0].mxu0
        %2095 = vmatprep.mubr.f32.mxu0 0.0
        %v2096 = vand.u32 %v505, 4294901760
        %v2097 = vsub.f32 %v505, %v2096
        %v2098 = vand.u32 %v2097, 4294901760
        %2099 = vmatmul.mubr.f32.gmra.mrb[0].mxu0 %v2098
        %v2100 = vpop.f32.mrb[0].mxu0
        %v2101 = vadd.f32 %v1958, %v2100
        %v2102 = vpop.f32.mrb[0].mxu0
        %2103 = vmatprep.mubr.f32.mxu0 0.0
        %v2104 = vand.u32 %v507, 4294901760
        %v2105 = vsub.f32 %v507, %v2104
        %v2106 = vand.u32 %v2105, 4294901760
        %2107 = vmatmul.mubr.f32.gmra.mrb[0].mxu0 %v2106
        %v2108 = vpop.f32.mrb[0].mxu0
        %v2109 = vadd.f32 %v1965, %v2108
        %v2110 = vpop.f32.mrb[0].mxu0
        %2111 = vmatprep.mubr.f32.mxu0 0.0
        %v2112 = vand.u32 %v509, 4294901760
        %v2113 = vsub.f32 %v509, %v2112
        %v2114 = vand.u32 %v2113, 4294901760
        %2115 = vmatmul.mubr.f32.gmra.mrb[0].mxu0 %v2114
        %v2116 = vpop.f32.mrb[0].mxu0
        %v2117 = vadd.f32 %v1972, %v2116
        %v2118 = vpop.f32.mrb[0].mxu0
        %2119 = vdwg.mxu0
        %2120 = vmatprep.subr.mxu0 0.0
        %v2121 = vand.u32 %v510, 4294901760
        %v2122 = vsub.f32 %v510, %v2121
        %v2123 = vand.u32 %v2122, 4294901760
        %2124 = vmatpush1.msra.mxu0 %v2123
        %2125 = vmatprep.subr.mxu0 0.0
        %v2126 = vand.u32 %v511, 4294901760
        %v2127 = vsub.f32 %v511, %v2126
        %v2128 = vand.u32 %v2127, 4294901760
        %2129 = vmatpush1.msra.mxu0 %v2128
        %2130 = vmatprep.subr.mxu0 0.0
        %v2131 = vand.u32 %v512, 4294901760
        %v2132 = vsub.f32 %v512, %v2131
        %v2133 = vand.u32 %v2132, 4294901760
        %2134 = vmatpush1.msra.mxu0 %v2133
        %2135 = vmatprep.subr.mxu0 0.0
        %v2136 = vand.u32 %v513, 4294901760
        %v2137 = vsub.f32 %v513, %v2136
        %v2138 = vand.u32 %v2137, 4294901760
        %2139 = vmatpush1.msra.mxu0 %v2138
        %2140 = vmatprep.subr.mxu0 0.0
        %v2141 = vand.u32 %v514, 4294901760
        %v2142 = vsub.f32 %v514, %v2141
        %v2143 = vand.u32 %v2142, 4294901760
        %2144 = vmatpush1.msra.mxu0 %v2143
        %2145 = vmatprep.subr.mxu0 0.0
        %v2146 = vand.u32 %v515, 4294901760
        %v2147 = vsub.f32 %v515, %v2146
        %v2148 = vand.u32 %v2147, 4294901760
        %2149 = vmatpush1.msra.mxu0 %v2148
        %2150 = vmatprep.subr.mxu0 0.0
        %v2151 = vand.u32 %v516, 4294901760
        %v2152 = vsub.f32 %v516, %v2151
        %v2153 = vand.u32 %v2152, 4294901760
        %2154 = vmatpush1.msra.mxu0 %v2153
        %2155 = vmatprep.subr.mxu0 0.0
        %v2156 = vand.u32 %v517, 4294901760
        %v2157 = vsub.f32 %v517, %v2156
        %v2158 = vand.u32 %v2157, 4294901760
        %2159 = vmatpush1.msra.mxu0 %v2158
        %2160 = vmatprep.subr.mxu0 0.0
        %v2161 = vand.u32 %v518, 4294901760
        %v2162 = vsub.f32 %v518, %v2161
        %v2163 = vand.u32 %v2162, 4294901760
        %2164 = vmatpush1.msra.mxu0 %v2163
        %2165 = vmatprep.subr.mxu0 0.0
        %v2166 = vand.u32 %v519, 4294901760
        %v2167 = vsub.f32 %v519, %v2166
        %v2168 = vand.u32 %v2167, 4294901760
        %2169 = vmatpush1.msra.mxu0 %v2168
        %2170 = vmatprep.subr.mxu0 0.0
        %v2171 = vand.u32 %v520, 4294901760
        %v2172 = vsub.f32 %v520, %v2171
        %v2173 = vand.u32 %v2172, 4294901760
        %2174 = vmatpush1.msra.mxu0 %v2173
        %2175 = vmatprep.subr.mxu0 0.0
        %v2176 = vand.u32 %v521, 4294901760
        %v2177 = vsub.f32 %v521, %v2176
        %v2178 = vand.u32 %v2177, 4294901760
        %2179 = vmatpush1.msra.mxu0 %v2178
        %2180 = vmatprep.subr.mxu0 0.0
        %v2181 = vand.u32 %v522, 4294901760
        %v2182 = vsub.f32 %v522, %v2181
        %v2183 = vand.u32 %v2182, 4294901760
        %2184 = vmatpush1.msra.mxu0 %v2183
        %2185 = vmatprep.subr.mxu0 0.0
        %v2186 = vand.u32 %v523, 4294901760
        %v2187 = vsub.f32 %v523, %v2186
        %v2188 = vand.u32 %v2187, 4294901760
        %2189 = vmatpush1.msra.mxu0 %v2188
        %2190 = vmatprep.subr.mxu0 0.0
        %v2191 = vand.u32 %v524, 4294901760
        %v2192 = vsub.f32 %v524, %v2191
        %v2193 = vand.u32 %v2192, 4294901760
        %2194 = vmatpush1.msra.mxu0 %v2193
        %2195 = vmatprep.subr.mxu0 0.0
        %v2196 = vand.u32 %v525, 4294901760
        %v2197 = vsub.f32 %v525, %v2196
        %v2198 = vand.u32 %v2197, 4294901760
        %2199 = vmatpush1.msra.mxu0 %v2198
        %2200 = vmatprep.subr.mxu0 0.0
        %2201 = vmatpush1.msra.mxu0 0.0
        %2202 = vmatprep.subr.mxu0 0.0
        %2203 = vmatpush1.msra.mxu0 0.0
        %2204 = vmatprep.subr.mxu0 0.0
        %2205 = vmatpush1.msra.mxu0 0.0
        %2206 = vmatprep.subr.mxu0 0.0
        %2207 = vmatpush1.msra.mxu0 0.0
        %2208 = vmatprep.subr.mxu0 0.0
        %2209 = vmatpush1.msra.mxu0 0.0
        %2210 = vmatprep.subr.mxu0 0.0
        %2211 = vmatpush1.msra.mxu0 0.0
        %2212 = vmatprep.subr.mxu0 0.0
        %2213 = vmatpush1.msra.mxu0 0.0
        %2214 = vmatprep.subr.mxu0 0.0
        %2215 = vmatpush1.msra.mxu0 0.0
        %2216 = vmatprep.subr.mxu0 0.0
        %2217 = vmatpush1.msra.mxu0 0.0
        %2218 = vmatprep.subr.mxu0 0.0
        %2219 = vmatpush1.msra.mxu0 0.0
        %2220 = vmatprep.subr.mxu0 0.0
        %2221 = vmatpush1.msra.mxu0 0.0
        %2222 = vmatprep.subr.mxu0 0.0
        %2223 = vmatpush1.msra.mxu0 0.0
        %2224 = vmatprep.subr.mxu0 0.0
        %2225 = vmatpush1.msra.mxu0 0.0
        %2226 = vmatprep.subr.mxu0 0.0
        %2227 = vmatpush1.msra.mxu0 0.0
        %2228 = vmatprep.subr.mxu0 0.0
        %2229 = vmatpush1.msra.mxu0 0.0
        %2230 = vmatprep.subr.mxu0 0.0
        %2231 = vmatpush1.msra.mxu0 0.0
        %2232 = vmatprep.mubr.f32.mxu0 0.0
        %v2233 = vand.u32 %v495, 4294901760
        %2234 = vmatmul.mubr.f32.gmra.mrb[0].mxu0 %v2233
        %v2235 = vpop.f32.mrb[0].mxu0
        %v2236 = vadd.f32 %v2061, %v2235
        %v2237 = vpop.f32.mrb[0].mxu0
        %2238 = vmatprep.mubr.f32.mxu0 0.0
        %v2239 = vand.u32 %v497, 4294901760
        %2240 = vmatmul.mubr.f32.gmra.mrb[0].mxu0 %v2239
        %v2241 = vpop.f32.mrb[0].mxu0
        %v2242 = vadd.f32 %v2069, %v2241
        %v2243 = vpop.f32.mrb[0].mxu0
        %2244 = vmatprep.mubr.f32.mxu0 0.0
        %v2245 = vand.u32 %v499, 4294901760
        %2246 = vmatmul.mubr.f32.gmra.mrb[0].mxu0 %v2245
        %v2247 = vpop.f32.mrb[0].mxu0
        %v2248 = vadd.f32 %v2077, %v2247
        %v2249 = vpop.f32.mrb[0].mxu0
        %2250 = vmatprep.mubr.f32.mxu0 0.0
        %v2251 = vand.u32 %v501, 4294901760
        %2252 = vmatmul.mubr.f32.gmra.mrb[0].mxu0 %v2251
        %v2253 = vpop.f32.mrb[0].mxu0
        %v2254 = vadd.f32 %v2085, %v2253
        %v2255 = vpop.f32.mrb[0].mxu0
        %2256 = vmatprep.mubr.f32.mxu0 0.0
        %v2257 = vand.u32 %v503, 4294901760
        %2258 = vmatmul.mubr.f32.gmra.mrb[0].mxu0 %v2257
        %v2259 = vpop.f32.mrb[0].mxu0
        %v2260 = vadd.f32 %v2093, %v2259
        %v2261 = vpop.f32.mrb[0].mxu0
        %2262 = vmatprep.mubr.f32.mxu0 0.0
        %v2263 = vand.u32 %v505, 4294901760
        %2264 = vmatmul.mubr.f32.gmra.mrb[0].mxu0 %v2263
        %v2265 = vpop.f32.mrb[0].mxu0
        %v2266 = vadd.f32 %v2101, %v2265
        %v2267 = vpop.f32.mrb[0].mxu0
        %2268 = vmatprep.mubr.f32.mxu0 0.0
        %v2269 = vand.u32 %v507, 4294901760
        %2270 = vmatmul.mubr.f32.gmra.mrb[0].mxu0 %v2269
        %v2271 = vpop.f32.mrb[0].mxu0
        %v2272 = vadd.f32 %v2109, %v2271
        %v2273 = vpop.f32.mrb[0].mxu0
        %2274 = vmatprep.mubr.f32.mxu0 0.0
        %v2275 = vand.u32 %v509, 4294901760
        %2276 = vmatmul.mubr.f32.gmra.mrb[0].mxu0 %v2275
        %v2277 = vpop.f32.mrb[0].mxu0
        %v2278 = vadd.f32 %v2117, %v2277
        %v2279 = vpop.f32.mrb[0].mxu0
        %2280 = vdwg.mxu0
        %2281 = vmatprep.subr.mxu0 0.0
        %v2282 = vand.u32 %v510, 4294901760
        %2283 = vmatpush1.msra.mxu0 %v2282
        %2284 = vmatprep.subr.mxu0 0.0
        %v2285 = vand.u32 %v511, 4294901760
        %2286 = vmatpush1.msra.mxu0 %v2285
        %2287 = vmatprep.subr.mxu0 0.0
        %v2288 = vand.u32 %v512, 4294901760
        %2289 = vmatpush1.msra.mxu0 %v2288
        %2290 = vmatprep.subr.mxu0 0.0
        %v2291 = vand.u32 %v513, 4294901760
        %2292 = vmatpush1.msra.mxu0 %v2291
        %2293 = vmatprep.subr.mxu0 0.0
        %v2294 = vand.u32 %v514, 4294901760
        %2295 = vmatpush1.msra.mxu0 %v2294
        %2296 = vmatprep.subr.mxu0 0.0
        %v2297 = vand.u32 %v515, 4294901760
        %2298 = vmatpush1.msra.mxu0 %v2297
        %2299 = vmatprep.subr.mxu0 0.0
        %v2300 = vand.u32 %v516, 4294901760
        %2301 = vmatpush1.msra.mxu0 %v2300
        %2302 = vmatprep.subr.mxu0 0.0
        %v2303 = vand.u32 %v517, 4294901760
        %2304 = vmatpush1.msra.mxu0 %v2303
        %2305 = vmatprep.subr.mxu0 0.0
        %v2306 = vand.u32 %v518, 4294901760
        %2307 = vmatpush1.msra.mxu0 %v2306
        %2308 = vmatprep.subr.mxu0 0.0
        %v2309 = vand.u32 %v519, 4294901760
        %2310 = vmatpush1.msra.mxu0 %v2309
        %2311 = vmatprep.subr.mxu0 0.0
        %v2312 = vand.u32 %v520, 4294901760
        %2313 = vmatpush1.msra.mxu0 %v2312
        %2314 = vmatprep.subr.mxu0 0.0
        %v2315 = vand.u32 %v521, 4294901760
        %2316 = vmatpush1.msra.mxu0 %v2315
        %2317 = vmatprep.subr.mxu0 0.0
        %v2318 = vand.u32 %v522, 4294901760
        %2319 = vmatpush1.msra.mxu0 %v2318
        %2320 = vmatprep.subr.mxu0 0.0
        %v2321 = vand.u32 %v523, 4294901760
        %2322 = vmatpush1.msra.mxu0 %v2321
        %2323 = vmatprep.subr.mxu0 0.0
        %v2324 = vand.u32 %v524, 4294901760
        %2325 = vmatpush1.msra.mxu0 %v2324
        %2326 = vmatprep.subr.mxu0 0.0
        %v2327 = vand.u32 %v525, 4294901760
        %2328 = vmatpush1.msra.mxu0 %v2327
        %2329 = vmatprep.subr.mxu0 0.0
        %2330 = vmatpush1.msra.mxu0 0.0
        %2331 = vmatprep.subr.mxu0 0.0
        %2332 = vmatpush1.msra.mxu0 0.0
        %2333 = vmatprep.subr.mxu0 0.0
        %2334 = vmatpush1.msra.mxu0 0.0
        %2335 = vmatprep.subr.mxu0 0.0
        %2336 = vmatpush1.msra.mxu0 0.0
        %2337 = vmatprep.subr.mxu0 0.0
        %2338 = vmatpush1.msra.mxu0 0.0
        %2339 = vmatprep.subr.mxu0 0.0
        %2340 = vmatpush1.msra.mxu0 0.0
        %2341 = vmatprep.subr.mxu0 0.0
        %2342 = vmatpush1.msra.mxu0 0.0
        %2343 = vmatprep.subr.mxu0 0.0
        %2344 = vmatpush1.msra.mxu0 0.0
        %2345 = vmatprep.subr.mxu0 0.0
        %2346 = vmatpush1.msra.mxu0 0.0
        %2347 = vmatprep.subr.mxu0 0.0
        %2348 = vmatpush1.msra.mxu0 0.0
        %2349 = vmatprep.subr.mxu0 0.0
        %2350 = vmatpush1.msra.mxu0 0.0
        %2351 = vmatprep.subr.mxu0 0.0
        %2352 = vmatpush1.msra.mxu0 0.0
        %2353 = vmatprep.subr.mxu0 0.0
        %2354 = vmatpush1.msra.mxu0 0.0
        %2355 = vmatprep.subr.mxu0 0.0
        %2356 = vmatpush1.msra.mxu0 0.0
        %2357 = vmatprep.subr.mxu0 0.0
        %2358 = vmatpush1.msra.mxu0 0.0
        %2359 = vmatprep.subr.mxu0 0.0
        %2360 = vmatpush1.msra.mxu0 0.0
        %2361 = vmatprep.mubr.f32.mxu0 0.0
        %v2362 = vand.u32 %v495, 4294901760
        %2363 = vmatmul.mubr.f32.gmra.mrb[0].mxu0 %v2362
        %v2364 = vpop.f32.mrb[0].mxu0
        %v2365 = vadd.f32 %v2236, %v2364
        %v2366 = vpop.f32.mrb[0].mxu0
        %2367 = vmatprep.mubr.f32.mxu0 0.0
        %v2368 = vand.u32 %v497, 4294901760
        %2369 = vmatmul.mubr.f32.gmra.mrb[0].mxu0 %v2368
        %v2370 = vpop.f32.mrb[0].mxu0
        %v2371 = vadd.f32 %v2242, %v2370
        %v2372 = vpop.f32.mrb[0].mxu0
        %2373 = vmatprep.mubr.f32.mxu0 0.0
        %v2374 = vand.u32 %v499, 4294901760
        %2375 = vmatmul.mubr.f32.gmra.mrb[0].mxu0 %v2374
        %v2376 = vpop.f32.mrb[0].mxu0
        %v2377 = vadd.f32 %v2248, %v2376
        %v2378 = vpop.f32.mrb[0].mxu0
        %2379 = vmatprep.mubr.f32.mxu0 0.0
        %v2380 = vand.u32 %v501, 4294901760
        %2381 = vmatmul.mubr.f32.gmra.mrb[0].mxu0 %v2380
        %v2382 = vpop.f32.mrb[0].mxu0
        %v2383 = vadd.f32 %v2254, %v2382
        %v2384 = vpop.f32.mrb[0].mxu0
        %2385 = vmatprep.mubr.f32.mxu0 0.0
        %v2386 = vand.u32 %v503, 4294901760
        %2387 = vmatmul.mubr.f32.gmra.mrb[0].mxu0 %v2386
        %v2388 = vpop.f32.mrb[0].mxu0
        %v2389 = vadd.f32 %v2260, %v2388
        %v2390 = vpop.f32.mrb[0].mxu0
        %2391 = vmatprep.mubr.f32.mxu0 0.0
        %v2392 = vand.u32 %v505, 4294901760
        %2393 = vmatmul.mubr.f32.gmra.mrb[0].mxu0 %v2392
        %v2394 = vpop.f32.mrb[0].mxu0
        %v2395 = vadd.f32 %v2266, %v2394
        %v2396 = vpop.f32.mrb[0].mxu0
        %2397 = vmatprep.mubr.f32.mxu0 0.0
        %v2398 = vand.u32 %v507, 4294901760
        %2399 = vmatmul.mubr.f32.gmra.mrb[0].mxu0 %v2398
        %v2400 = vpop.f32.mrb[0].mxu0
        %v2401 = vadd.f32 %v2272, %v2400
        %v2402 = vpop.f32.mrb[0].mxu0
        %2403 = vmatprep.mubr.f32.mxu0 0.0
        %v2404 = vand.u32 %v509, 4294901760
        %2405 = vmatmul.mubr.f32.gmra.mrb[0].mxu0 %v2404
        %v2406 = vpop.f32.mrb[0].mxu0
        %v2407 = vadd.f32 %v2278, %v2406
        %v2408 = vpop.f32.mrb[0].mxu0
        %2409 = vdwg.mxu0
        %v2410 = vmax.f32 %v1423, 1e-30
        %v2411 = vmax.f32 %v1429, 1e-30
        %v2412 = vmax.f32 %v1435, 1e-30
        %v2413 = vmax.f32 %v1441, 1e-30
        %v2414 = vmax.f32 %v1447, 1e-30
        %v2415 = vmax.f32 %v1453, 1e-30
        %v2416 = vmax.f32 %v1459, 1e-30
        %v2417 = vmax.f32 %v1465, 1e-30
        %v2418 = vmax.f32 %v2365, 1e-30
        %v2419 = vmax.f32 %v2371, 1e-30
        %v2420 = vmax.f32 %v2377, 1e-30
        %v2421 = vmax.f32 %v2383, 1e-30
        %v2422 = vmax.f32 %v2389, 1e-30
        %v2423 = vmax.f32 %v2395, 1e-30
        %v2424 = vmax.f32 %v2401, 1e-30
        %v2425 = vmax.f32 %v2407, 1e-30
        %v2426 = vrcp.pop %v2410
        %v2427 = vmul.f32 %v455, %v2426
        %v2428 = vrcp.pop %v2411
        %v2429 = vmul.f32 %v457, %v2428
        %v2430 = vrcp.pop %v2412
        %v2431 = vmul.f32 %v459, %v2430
        %v2432 = vrcp.pop %v2413
        %v2433 = vmul.f32 %v461, %v2432
        %v2434 = vrcp.pop %v2414
        %v2435 = vmul.f32 %v463, %v2434
        %v2436 = vrcp.pop %v2415
        %v2437 = vmul.f32 %v465, %v2436
        %v2438 = vrcp.pop %v2416
        %v2439 = vmul.f32 %v467, %v2438
        %v2440 = vrcp.pop %v2417
        %v2441 = vmul.f32 %v469, %v2440
        %v2442 = vmul.f32 %v2427, %v495
        %v2443 = vmul.f32 %v2429, %v497
        %v2444 = vmul.f32 %v2431, %v499
        %v2445 = vmul.f32 %v2433, %v501
        %v2446 = vmul.f32 %v2435, %v503
        %v2447 = vmul.f32 %v2437, %v505
        %v2448 = vmul.f32 %v2439, %v507
        %v2449 = vmul.f32 %v2441, %v509
        %2450 = vmatprep.subr.mxu0 0.0
        %v2451 = vand.u32 %v510, 4294901760
        %2452 = vmatpush1.msra.mxu0 %v2451
        %2453 = vmatprep.subr.mxu0 0.0
        %v2454 = vand.u32 %v511, 4294901760
        %2455 = vmatpush1.msra.mxu0 %v2454
        %2456 = vmatprep.subr.mxu0 0.0
        %v2457 = vand.u32 %v512, 4294901760
        %2458 = vmatpush1.msra.mxu0 %v2457
        %2459 = vmatprep.subr.mxu0 0.0
        %v2460 = vand.u32 %v513, 4294901760
        %2461 = vmatpush1.msra.mxu0 %v2460
        %2462 = vmatprep.subr.mxu0 0.0
        %v2463 = vand.u32 %v514, 4294901760
        %2464 = vmatpush1.msra.mxu0 %v2463
        %2465 = vmatprep.subr.mxu0 0.0
        %v2466 = vand.u32 %v515, 4294901760
        %2467 = vmatpush1.msra.mxu0 %v2466
        %2468 = vmatprep.subr.mxu0 0.0
        %v2469 = vand.u32 %v516, 4294901760
        %2470 = vmatpush1.msra.mxu0 %v2469
        %2471 = vmatprep.subr.mxu0 0.0
        %v2472 = vand.u32 %v517, 4294901760
        %2473 = vmatpush1.msra.mxu0 %v2472
        %2474 = vmatprep.subr.mxu0 0.0
        %v2475 = vand.u32 %v518, 4294901760
        %2476 = vmatpush1.msra.mxu0 %v2475
        %2477 = vmatprep.subr.mxu0 0.0
        %v2478 = vand.u32 %v519, 4294901760
        %2479 = vmatpush1.msra.mxu0 %v2478
        %2480 = vmatprep.subr.mxu0 0.0
        %v2481 = vand.u32 %v520, 4294901760
        %2482 = vmatpush1.msra.mxu0 %v2481
        %2483 = vmatprep.subr.mxu0 0.0
        %v2484 = vand.u32 %v521, 4294901760
        %2485 = vmatpush1.msra.mxu0 %v2484
        %2486 = vmatprep.subr.mxu0 0.0
        %v2487 = vand.u32 %v522, 4294901760
        %2488 = vmatpush1.msra.mxu0 %v2487
        %2489 = vmatprep.subr.mxu0 0.0
        %v2490 = vand.u32 %v523, 4294901760
        %2491 = vmatpush1.msra.mxu0 %v2490
        %2492 = vmatprep.subr.mxu0 0.0
        %v2493 = vand.u32 %v524, 4294901760
        %2494 = vmatpush1.msra.mxu0 %v2493
        %2495 = vmatprep.subr.mxu0 0.0
        %v2496 = vand.u32 %v525, 4294901760
        %2497 = vmatpush1.msra.mxu0 %v2496
        %2498 = vmatprep.subr.mxu0 0.0
        %2499 = vmatpush1.msra.mxu0 0.0
        %2500 = vmatprep.subr.mxu0 0.0
        %2501 = vmatpush1.msra.mxu0 0.0
        %2502 = vmatprep.subr.mxu0 0.0
        %2503 = vmatpush1.msra.mxu0 0.0
        %2504 = vmatprep.subr.mxu0 0.0
        %2505 = vmatpush1.msra.mxu0 0.0
        %2506 = vmatprep.subr.mxu0 0.0
        %2507 = vmatpush1.msra.mxu0 0.0
        %2508 = vmatprep.subr.mxu0 0.0
        %2509 = vmatpush1.msra.mxu0 0.0
        %2510 = vmatprep.subr.mxu0 0.0
        %2511 = vmatpush1.msra.mxu0 0.0
        %2512 = vmatprep.subr.mxu0 0.0
        %2513 = vmatpush1.msra.mxu0 0.0
        %2514 = vmatprep.subr.mxu0 0.0
        %2515 = vmatpush1.msra.mxu0 0.0
        %2516 = vmatprep.subr.mxu0 0.0
        %2517 = vmatpush1.msra.mxu0 0.0
        %2518 = vmatprep.subr.mxu0 0.0
        %2519 = vmatpush1.msra.mxu0 0.0
        %2520 = vmatprep.subr.mxu0 0.0
        %2521 = vmatpush1.msra.mxu0 0.0
        %2522 = vmatprep.subr.mxu0 0.0
        %2523 = vmatpush1.msra.mxu0 0.0
        %2524 = vmatprep.subr.mxu0 0.0
        %2525 = vmatpush1.msra.mxu0 0.0
        %2526 = vmatprep.subr.mxu0 0.0
        %2527 = vmatpush1.msra.mxu0 0.0
        %2528 = vmatprep.subr.mxu0 0.0
        %2529 = vmatpush1.msra.mxu0 0.0
        %2530 = vmatprep.mubr.f32.mxu0 0.0
        %v2531 = vand.u32 %v2442, 4294901760
        %v2532 = vsub.f32 %v2442, %v2531
        %v2533 = vand.u32 %v2532, 4294901760
        %v2534 = vsub.f32 %v2532, %v2533
        %v2535 = vand.u32 %v2534, 4294901760
        %2536 = vmatmul.mubr.f32.gmra.mrb[0].mxu0 %v2535
        %v2537 = vpop.f32.mrb[0].mxu0
        %v2538 = vadd.f32 0.0, %v2537
        %v2539 = vpop.f32.mrb[0].mxu0
        %2540 = vmatprep.mubr.f32.mxu0 0.0
        %v2541 = vand.u32 %v2443, 4294901760
        %v2542 = vsub.f32 %v2443, %v2541
        %v2543 = vand.u32 %v2542, 4294901760
        %v2544 = vsub.f32 %v2542, %v2543
        %v2545 = vand.u32 %v2544, 4294901760
        %2546 = vmatmul.mubr.f32.gmra.mrb[0].mxu0 %v2545
        %v2547 = vpop.f32.mrb[0].mxu0
        %v2548 = vadd.f32 0.0, %v2547
        %v2549 = vpop.f32.mrb[0].mxu0
        %2550 = vmatprep.mubr.f32.mxu0 0.0
        %v2551 = vand.u32 %v2444, 4294901760
        %v2552 = vsub.f32 %v2444, %v2551
        %v2553 = vand.u32 %v2552, 4294901760
        %v2554 = vsub.f32 %v2552, %v2553
        %v2555 = vand.u32 %v2554, 4294901760
        %2556 = vmatmul.mubr.f32.gmra.mrb[0].mxu0 %v2555
        %v2557 = vpop.f32.mrb[0].mxu0
        %v2558 = vadd.f32 0.0, %v2557
        %v2559 = vpop.f32.mrb[0].mxu0
        %2560 = vmatprep.mubr.f32.mxu0 0.0
        %v2561 = vand.u32 %v2445, 4294901760
        %v2562 = vsub.f32 %v2445, %v2561
        %v2563 = vand.u32 %v2562, 4294901760
        %v2564 = vsub.f32 %v2562, %v2563
        %v2565 = vand.u32 %v2564, 4294901760
        %2566 = vmatmul.mubr.f32.gmra.mrb[0].mxu0 %v2565
        %v2567 = vpop.f32.mrb[0].mxu0
        %v2568 = vadd.f32 0.0, %v2567
        %v2569 = vpop.f32.mrb[0].mxu0
        %2570 = vmatprep.mubr.f32.mxu0 0.0
        %v2571 = vand.u32 %v2446, 4294901760
        %v2572 = vsub.f32 %v2446, %v2571
        %v2573 = vand.u32 %v2572, 4294901760
        %v2574 = vsub.f32 %v2572, %v2573
        %v2575 = vand.u32 %v2574, 4294901760
        %2576 = vmatmul.mubr.f32.gmra.mrb[0].mxu0 %v2575
        %v2577 = vpop.f32.mrb[0].mxu0
        %v2578 = vadd.f32 0.0, %v2577
        %v2579 = vpop.f32.mrb[0].mxu0
        %2580 = vmatprep.mubr.f32.mxu0 0.0
        %v2581 = vand.u32 %v2447, 4294901760
        %v2582 = vsub.f32 %v2447, %v2581
        %v2583 = vand.u32 %v2582, 4294901760
        %v2584 = vsub.f32 %v2582, %v2583
        %v2585 = vand.u32 %v2584, 4294901760
        %2586 = vmatmul.mubr.f32.gmra.mrb[0].mxu0 %v2585
        %v2587 = vpop.f32.mrb[0].mxu0
        %v2588 = vadd.f32 0.0, %v2587
        %v2589 = vpop.f32.mrb[0].mxu0
        %2590 = vmatprep.mubr.f32.mxu0 0.0
        %v2591 = vand.u32 %v2448, 4294901760
        %v2592 = vsub.f32 %v2448, %v2591
        %v2593 = vand.u32 %v2592, 4294901760
        %v2594 = vsub.f32 %v2592, %v2593
        %v2595 = vand.u32 %v2594, 4294901760
        %2596 = vmatmul.mubr.f32.gmra.mrb[0].mxu0 %v2595
        %v2597 = vpop.f32.mrb[0].mxu0
        %v2598 = vadd.f32 0.0, %v2597
        %v2599 = vpop.f32.mrb[0].mxu0
        %2600 = vmatprep.mubr.f32.mxu0 0.0
        %v2601 = vand.u32 %v2449, 4294901760
        %v2602 = vsub.f32 %v2449, %v2601
        %v2603 = vand.u32 %v2602, 4294901760
        %v2604 = vsub.f32 %v2602, %v2603
        %v2605 = vand.u32 %v2604, 4294901760
        %2606 = vmatmul.mubr.f32.gmra.mrb[0].mxu0 %v2605
        %v2607 = vpop.f32.mrb[0].mxu0
        %v2608 = vadd.f32 0.0, %v2607
        %v2609 = vpop.f32.mrb[0].mxu0
        %2610 = vdwg.mxu0
        %2611 = vmatprep.subr.mxu0 0.0
        %v2612 = vand.u32 %v510, 4294901760
        %v2613 = vsub.f32 %v510, %v2612
        %v2614 = vand.u32 %v2613, 4294901760
        %v2615 = vsub.f32 %v2613, %v2614
        %v2616 = vand.u32 %v2615, 4294901760
        %2617 = vmatpush1.msra.mxu0 %v2616
        %2618 = vmatprep.subr.mxu0 0.0
        %v2619 = vand.u32 %v511, 4294901760
        %v2620 = vsub.f32 %v511, %v2619
        %v2621 = vand.u32 %v2620, 4294901760
        %v2622 = vsub.f32 %v2620, %v2621
        %v2623 = vand.u32 %v2622, 4294901760
        %2624 = vmatpush1.msra.mxu0 %v2623
        %2625 = vmatprep.subr.mxu0 0.0
        %v2626 = vand.u32 %v512, 4294901760
        %v2627 = vsub.f32 %v512, %v2626
        %v2628 = vand.u32 %v2627, 4294901760
        %v2629 = vsub.f32 %v2627, %v2628
        %v2630 = vand.u32 %v2629, 4294901760
        %2631 = vmatpush1.msra.mxu0 %v2630
        %2632 = vmatprep.subr.mxu0 0.0
        %v2633 = vand.u32 %v513, 4294901760
        %v2634 = vsub.f32 %v513, %v2633
        %v2635 = vand.u32 %v2634, 4294901760
        %v2636 = vsub.f32 %v2634, %v2635
        %v2637 = vand.u32 %v2636, 4294901760
        %2638 = vmatpush1.msra.mxu0 %v2637
        %2639 = vmatprep.subr.mxu0 0.0
        %v2640 = vand.u32 %v514, 4294901760
        %v2641 = vsub.f32 %v514, %v2640
        %v2642 = vand.u32 %v2641, 4294901760
        %v2643 = vsub.f32 %v2641, %v2642
        %v2644 = vand.u32 %v2643, 4294901760
        %2645 = vmatpush1.msra.mxu0 %v2644
        %2646 = vmatprep.subr.mxu0 0.0
        %v2647 = vand.u32 %v515, 4294901760
        %v2648 = vsub.f32 %v515, %v2647
        %v2649 = vand.u32 %v2648, 4294901760
        %v2650 = vsub.f32 %v2648, %v2649
        %v2651 = vand.u32 %v2650, 4294901760
        %2652 = vmatpush1.msra.mxu0 %v2651
        %2653 = vmatprep.subr.mxu0 0.0
        %v2654 = vand.u32 %v516, 4294901760
        %v2655 = vsub.f32 %v516, %v2654
        %v2656 = vand.u32 %v2655, 4294901760
        %v2657 = vsub.f32 %v2655, %v2656
        %v2658 = vand.u32 %v2657, 4294901760
        %2659 = vmatpush1.msra.mxu0 %v2658
        %2660 = vmatprep.subr.mxu0 0.0
        %v2661 = vand.u32 %v517, 4294901760
        %v2662 = vsub.f32 %v517, %v2661
        %v2663 = vand.u32 %v2662, 4294901760
        %v2664 = vsub.f32 %v2662, %v2663
        %v2665 = vand.u32 %v2664, 4294901760
        %2666 = vmatpush1.msra.mxu0 %v2665
        %2667 = vmatprep.subr.mxu0 0.0
        %v2668 = vand.u32 %v518, 4294901760
        %v2669 = vsub.f32 %v518, %v2668
        %v2670 = vand.u32 %v2669, 4294901760
        %v2671 = vsub.f32 %v2669, %v2670
        %v2672 = vand.u32 %v2671, 4294901760
        %2673 = vmatpush1.msra.mxu0 %v2672
        %2674 = vmatprep.subr.mxu0 0.0
        %v2675 = vand.u32 %v519, 4294901760
        %v2676 = vsub.f32 %v519, %v2675
        %v2677 = vand.u32 %v2676, 4294901760
        %v2678 = vsub.f32 %v2676, %v2677
        %v2679 = vand.u32 %v2678, 4294901760
        %2680 = vmatpush1.msra.mxu0 %v2679
        %2681 = vmatprep.subr.mxu0 0.0
        %v2682 = vand.u32 %v520, 4294901760
        %v2683 = vsub.f32 %v520, %v2682
        %v2684 = vand.u32 %v2683, 4294901760
        %v2685 = vsub.f32 %v2683, %v2684
        %v2686 = vand.u32 %v2685, 4294901760
        %2687 = vmatpush1.msra.mxu0 %v2686
        %2688 = vmatprep.subr.mxu0 0.0
        %v2689 = vand.u32 %v521, 4294901760
        %v2690 = vsub.f32 %v521, %v2689
        %v2691 = vand.u32 %v2690, 4294901760
        %v2692 = vsub.f32 %v2690, %v2691
        %v2693 = vand.u32 %v2692, 4294901760
        %2694 = vmatpush1.msra.mxu0 %v2693
        %2695 = vmatprep.subr.mxu0 0.0
        %v2696 = vand.u32 %v522, 4294901760
        %v2697 = vsub.f32 %v522, %v2696
        %v2698 = vand.u32 %v2697, 4294901760
        %v2699 = vsub.f32 %v2697, %v2698
        %v2700 = vand.u32 %v2699, 4294901760
        %2701 = vmatpush1.msra.mxu0 %v2700
        %2702 = vmatprep.subr.mxu0 0.0
        %v2703 = vand.u32 %v523, 4294901760
        %v2704 = vsub.f32 %v523, %v2703
        %v2705 = vand.u32 %v2704, 4294901760
        %v2706 = vsub.f32 %v2704, %v2705
        %v2707 = vand.u32 %v2706, 4294901760
        %2708 = vmatpush1.msra.mxu0 %v2707
        %2709 = vmatprep.subr.mxu0 0.0
        %v2710 = vand.u32 %v524, 4294901760
        %v2711 = vsub.f32 %v524, %v2710
        %v2712 = vand.u32 %v2711, 4294901760
        %v2713 = vsub.f32 %v2711, %v2712
        %v2714 = vand.u32 %v2713, 4294901760
        %2715 = vmatpush1.msra.mxu0 %v2714
        %2716 = vmatprep.subr.mxu0 0.0
        %v2717 = vand.u32 %v525, 4294901760
        %v2718 = vsub.f32 %v525, %v2717
        %v2719 = vand.u32 %v2718, 4294901760
        %v2720 = vsub.f32 %v2718, %v2719
        %v2721 = vand.u32 %v2720, 4294901760
        %2722 = vmatpush1.msra.mxu0 %v2721
        %2723 = vmatprep.subr.mxu0 0.0
        %2724 = vmatpush1.msra.mxu0 0.0
        %2725 = vmatprep.subr.mxu0 0.0
        %2726 = vmatpush1.msra.mxu0 0.0
        %2727 = vmatprep.subr.mxu0 0.0
        %2728 = vmatpush1.msra.mxu0 0.0
        %2729 = vmatprep.subr.mxu0 0.0
        %2730 = vmatpush1.msra.mxu0 0.0
        %2731 = vmatprep.subr.mxu0 0.0
        %2732 = vmatpush1.msra.mxu0 0.0
        %2733 = vmatprep.subr.mxu0 0.0
        %2734 = vmatpush1.msra.mxu0 0.0
        %2735 = vmatprep.subr.mxu0 0.0
        %2736 = vmatpush1.msra.mxu0 0.0
        %2737 = vmatprep.subr.mxu0 0.0
        %2738 = vmatpush1.msra.mxu0 0.0
        %2739 = vmatprep.subr.mxu0 0.0
        %2740 = vmatpush1.msra.mxu0 0.0
        %2741 = vmatprep.subr.mxu0 0.0
        %2742 = vmatpush1.msra.mxu0 0.0
        %2743 = vmatprep.subr.mxu0 0.0
        %2744 = vmatpush1.msra.mxu0 0.0
        %2745 = vmatprep.subr.mxu0 0.0
        %2746 = vmatpush1.msra.mxu0 0.0
        %2747 = vmatprep.subr.mxu0 0.0
        %2748 = vmatpush1.msra.mxu0 0.0
        %2749 = vmatprep.subr.mxu0 0.0
        %2750 = vmatpush1.msra.mxu0 0.0
        %2751 = vmatprep.subr.mxu0 0.0
        %2752 = vmatpush1.msra.mxu0 0.0
        %2753 = vmatprep.subr.mxu0 0.0
        %2754 = vmatpush1.msra.mxu0 0.0
        %2755 = vmatprep.mubr.f32.mxu0 0.0
        %v2756 = vand.u32 %v2442, 4294901760
        %2757 = vmatmul.mubr.f32.gmra.mrb[0].mxu0 %v2756
        %v2758 = vpop.f32.mrb[0].mxu0
        %v2759 = vadd.f32 %v2538, %v2758
        %v2760 = vpop.f32.mrb[0].mxu0
        %2761 = vmatprep.mubr.f32.mxu0 0.0
        %v2762 = vand.u32 %v2443, 4294901760
        %2763 = vmatmul.mubr.f32.gmra.mrb[0].mxu0 %v2762
        %v2764 = vpop.f32.mrb[0].mxu0
        %v2765 = vadd.f32 %v2548, %v2764
        %v2766 = vpop.f32.mrb[0].mxu0
        %2767 = vmatprep.mubr.f32.mxu0 0.0
        %v2768 = vand.u32 %v2444, 4294901760
        %2769 = vmatmul.mubr.f32.gmra.mrb[0].mxu0 %v2768
        %v2770 = vpop.f32.mrb[0].mxu0
        %v2771 = vadd.f32 %v2558, %v2770
        %v2772 = vpop.f32.mrb[0].mxu0
        %2773 = vmatprep.mubr.f32.mxu0 0.0
        %v2774 = vand.u32 %v2445, 4294901760
        %2775 = vmatmul.mubr.f32.gmra.mrb[0].mxu0 %v2774
        %v2776 = vpop.f32.mrb[0].mxu0
        %v2777 = vadd.f32 %v2568, %v2776
        %v2778 = vpop.f32.mrb[0].mxu0
        %2779 = vmatprep.mubr.f32.mxu0 0.0
        %v2780 = vand.u32 %v2446, 4294901760
        %2781 = vmatmul.mubr.f32.gmra.mrb[0].mxu0 %v2780
        %v2782 = vpop.f32.mrb[0].mxu0
        %v2783 = vadd.f32 %v2578, %v2782
        %v2784 = vpop.f32.mrb[0].mxu0
        %2785 = vmatprep.mubr.f32.mxu0 0.0
        %v2786 = vand.u32 %v2447, 4294901760
        %2787 = vmatmul.mubr.f32.gmra.mrb[0].mxu0 %v2786
        %v2788 = vpop.f32.mrb[0].mxu0
        %v2789 = vadd.f32 %v2588, %v2788
        %v2790 = vpop.f32.mrb[0].mxu0
        %2791 = vmatprep.mubr.f32.mxu0 0.0
        %v2792 = vand.u32 %v2448, 4294901760
        %2793 = vmatmul.mubr.f32.gmra.mrb[0].mxu0 %v2792
        %v2794 = vpop.f32.mrb[0].mxu0
        %v2795 = vadd.f32 %v2598, %v2794
        %v2796 = vpop.f32.mrb[0].mxu0
        %2797 = vmatprep.mubr.f32.mxu0 0.0
        %v2798 = vand.u32 %v2449, 4294901760
        %2799 = vmatmul.mubr.f32.gmra.mrb[0].mxu0 %v2798
        %v2800 = vpop.f32.mrb[0].mxu0
        %v2801 = vadd.f32 %v2608, %v2800
        %v2802 = vpop.f32.mrb[0].mxu0
        %2803 = vdwg.mxu0
        %2804 = vmatprep.subr.mxu0 0.0
        %v2805 = vand.u32 %v510, 4294901760
        %v2806 = vsub.f32 %v510, %v2805
        %2807 = vmatpush1.msra.mxu0 %v2806
        %2808 = vmatprep.subr.mxu0 0.0
        %v2809 = vand.u32 %v511, 4294901760
        %v2810 = vsub.f32 %v511, %v2809
        %2811 = vmatpush1.msra.mxu0 %v2810
        %2812 = vmatprep.subr.mxu0 0.0
        %v2813 = vand.u32 %v512, 4294901760
        %v2814 = vsub.f32 %v512, %v2813
        %2815 = vmatpush1.msra.mxu0 %v2814
        %2816 = vmatprep.subr.mxu0 0.0
        %v2817 = vand.u32 %v513, 4294901760
        %v2818 = vsub.f32 %v513, %v2817
        %2819 = vmatpush1.msra.mxu0 %v2818
        %2820 = vmatprep.subr.mxu0 0.0
        %v2821 = vand.u32 %v514, 4294901760
        %v2822 = vsub.f32 %v514, %v2821
        %2823 = vmatpush1.msra.mxu0 %v2822
        %2824 = vmatprep.subr.mxu0 0.0
        %v2825 = vand.u32 %v515, 4294901760
        %v2826 = vsub.f32 %v515, %v2825
        %2827 = vmatpush1.msra.mxu0 %v2826
        %2828 = vmatprep.subr.mxu0 0.0
        %v2829 = vand.u32 %v516, 4294901760
        %v2830 = vsub.f32 %v516, %v2829
        %2831 = vmatpush1.msra.mxu0 %v2830
        %2832 = vmatprep.subr.mxu0 0.0
        %v2833 = vand.u32 %v517, 4294901760
        %v2834 = vsub.f32 %v517, %v2833
        %2835 = vmatpush1.msra.mxu0 %v2834
        %2836 = vmatprep.subr.mxu0 0.0
        %v2837 = vand.u32 %v518, 4294901760
        %v2838 = vsub.f32 %v518, %v2837
        %2839 = vmatpush1.msra.mxu0 %v2838
        %2840 = vmatprep.subr.mxu0 0.0
        %v2841 = vand.u32 %v519, 4294901760
        %v2842 = vsub.f32 %v519, %v2841
        %2843 = vmatpush1.msra.mxu0 %v2842
        %2844 = vmatprep.subr.mxu0 0.0
        %v2845 = vand.u32 %v520, 4294901760
        %v2846 = vsub.f32 %v520, %v2845
        %2847 = vmatpush1.msra.mxu0 %v2846
        %2848 = vmatprep.subr.mxu0 0.0
        %v2849 = vand.u32 %v521, 4294901760
        %v2850 = vsub.f32 %v521, %v2849
        %2851 = vmatpush1.msra.mxu0 %v2850
        %2852 = vmatprep.subr.mxu0 0.0
        %v2853 = vand.u32 %v522, 4294901760
        %v2854 = vsub.f32 %v522, %v2853
        %2855 = vmatpush1.msra.mxu0 %v2854
        %2856 = vmatprep.subr.mxu0 0.0
        %v2857 = vand.u32 %v523, 4294901760
        %v2858 = vsub.f32 %v523, %v2857
        %2859 = vmatpush1.msra.mxu0 %v2858
        %2860 = vmatprep.subr.mxu0 0.0
        %v2861 = vand.u32 %v524, 4294901760
        %v2862 = vsub.f32 %v524, %v2861
        %2863 = vmatpush1.msra.mxu0 %v2862
        %2864 = vmatprep.subr.mxu0 0.0
        %v2865 = vand.u32 %v525, 4294901760
        %v2866 = vsub.f32 %v525, %v2865
        %2867 = vmatpush1.msra.mxu0 %v2866
        %2868 = vmatprep.subr.mxu0 0.0
        %2869 = vmatpush1.msra.mxu0 0.0
        %2870 = vmatprep.subr.mxu0 0.0
        %2871 = vmatpush1.msra.mxu0 0.0
        %2872 = vmatprep.subr.mxu0 0.0
        %2873 = vmatpush1.msra.mxu0 0.0
        %2874 = vmatprep.subr.mxu0 0.0
        %2875 = vmatpush1.msra.mxu0 0.0
        %2876 = vmatprep.subr.mxu0 0.0
        %2877 = vmatpush1.msra.mxu0 0.0
        %2878 = vmatprep.subr.mxu0 0.0
        %2879 = vmatpush1.msra.mxu0 0.0
        %2880 = vmatprep.subr.mxu0 0.0
        %2881 = vmatpush1.msra.mxu0 0.0
        %2882 = vmatprep.subr.mxu0 0.0
        %2883 = vmatpush1.msra.mxu0 0.0
        %2884 = vmatprep.subr.mxu0 0.0
        %2885 = vmatpush1.msra.mxu0 0.0
        %2886 = vmatprep.subr.mxu0 0.0
        %2887 = vmatpush1.msra.mxu0 0.0
        %2888 = vmatprep.subr.mxu0 0.0
        %2889 = vmatpush1.msra.mxu0 0.0
        %2890 = vmatprep.subr.mxu0 0.0
        %2891 = vmatpush1.msra.mxu0 0.0
        %2892 = vmatprep.subr.mxu0 0.0
        %2893 = vmatpush1.msra.mxu0 0.0
        %2894 = vmatprep.subr.mxu0 0.0
        %2895 = vmatpush1.msra.mxu0 0.0
        %2896 = vmatprep.subr.mxu0 0.0
        %2897 = vmatpush1.msra.mxu0 0.0
        %2898 = vmatprep.subr.mxu0 0.0
        %2899 = vmatpush1.msra.mxu0 0.0
        %2900 = vmatprep.mubr.f32.mxu0 0.0
        %v2901 = vand.u32 %v2442, 4294901760
        %v2902 = vsub.f32 %v2442, %v2901
        %2903 = vmatmul.mubr.f32.gmra.mrb[0].mxu0 %v2902
        %v2904 = vpop.f32.mrb[0].mxu0
        %v2905 = vadd.f32 %v2759, %v2904
        %v2906 = vpop.f32.mrb[0].mxu0
        %2907 = vmatprep.mubr.f32.mxu0 0.0
        %v2908 = vand.u32 %v2443, 4294901760
        %v2909 = vsub.f32 %v2443, %v2908
        %2910 = vmatmul.mubr.f32.gmra.mrb[0].mxu0 %v2909
        %v2911 = vpop.f32.mrb[0].mxu0
        %v2912 = vadd.f32 %v2765, %v2911
        %v2913 = vpop.f32.mrb[0].mxu0
        %2914 = vmatprep.mubr.f32.mxu0 0.0
        %v2915 = vand.u32 %v2444, 4294901760
        %v2916 = vsub.f32 %v2444, %v2915
        %2917 = vmatmul.mubr.f32.gmra.mrb[0].mxu0 %v2916
        %v2918 = vpop.f32.mrb[0].mxu0
        %v2919 = vadd.f32 %v2771, %v2918
        %v2920 = vpop.f32.mrb[0].mxu0
        %2921 = vmatprep.mubr.f32.mxu0 0.0
        %v2922 = vand.u32 %v2445, 4294901760
        %v2923 = vsub.f32 %v2445, %v2922
        %2924 = vmatmul.mubr.f32.gmra.mrb[0].mxu0 %v2923
        %v2925 = vpop.f32.mrb[0].mxu0
        %v2926 = vadd.f32 %v2777, %v2925
        %v2927 = vpop.f32.mrb[0].mxu0
        %2928 = vmatprep.mubr.f32.mxu0 0.0
        %v2929 = vand.u32 %v2446, 4294901760
        %v2930 = vsub.f32 %v2446, %v2929
        %2931 = vmatmul.mubr.f32.gmra.mrb[0].mxu0 %v2930
        %v2932 = vpop.f32.mrb[0].mxu0
        %v2933 = vadd.f32 %v2783, %v2932
        %v2934 = vpop.f32.mrb[0].mxu0
        %2935 = vmatprep.mubr.f32.mxu0 0.0
        %v2936 = vand.u32 %v2447, 4294901760
        %v2937 = vsub.f32 %v2447, %v2936
        %2938 = vmatmul.mubr.f32.gmra.mrb[0].mxu0 %v2937
        %v2939 = vpop.f32.mrb[0].mxu0
        %v2940 = vadd.f32 %v2789, %v2939
        %v2941 = vpop.f32.mrb[0].mxu0
        %2942 = vmatprep.mubr.f32.mxu0 0.0
        %v2943 = vand.u32 %v2448, 4294901760
        %v2944 = vsub.f32 %v2448, %v2943
        %2945 = vmatmul.mubr.f32.gmra.mrb[0].mxu0 %v2944
        %v2946 = vpop.f32.mrb[0].mxu0
        %v2947 = vadd.f32 %v2795, %v2946
        %v2948 = vpop.f32.mrb[0].mxu0
        %2949 = vmatprep.mubr.f32.mxu0 0.0
        %v2950 = vand.u32 %v2449, 4294901760
        %v2951 = vsub.f32 %v2449, %v2950
        %2952 = vmatmul.mubr.f32.gmra.mrb[0].mxu0 %v2951
        %v2953 = vpop.f32.mrb[0].mxu0
        %v2954 = vadd.f32 %v2801, %v2953
        %v2955 = vpop.f32.mrb[0].mxu0
        %2956 = vdwg.mxu0
        %2957 = vmatprep.subr.mxu0 0.0
        %v2958 = vand.u32 %v510, 4294901760
        %2959 = vmatpush1.msra.mxu0 %v2958
        %2960 = vmatprep.subr.mxu0 0.0
        %v2961 = vand.u32 %v511, 4294901760
        %2962 = vmatpush1.msra.mxu0 %v2961
        %2963 = vmatprep.subr.mxu0 0.0
        %v2964 = vand.u32 %v512, 4294901760
        %2965 = vmatpush1.msra.mxu0 %v2964
        %2966 = vmatprep.subr.mxu0 0.0
        %v2967 = vand.u32 %v513, 4294901760
        %2968 = vmatpush1.msra.mxu0 %v2967
        %2969 = vmatprep.subr.mxu0 0.0
        %v2970 = vand.u32 %v514, 4294901760
        %2971 = vmatpush1.msra.mxu0 %v2970
        %2972 = vmatprep.subr.mxu0 0.0
        %v2973 = vand.u32 %v515, 4294901760
        %2974 = vmatpush1.msra.mxu0 %v2973
        %2975 = vmatprep.subr.mxu0 0.0
        %v2976 = vand.u32 %v516, 4294901760
        %2977 = vmatpush1.msra.mxu0 %v2976
        %2978 = vmatprep.subr.mxu0 0.0
        %v2979 = vand.u32 %v517, 4294901760
        %2980 = vmatpush1.msra.mxu0 %v2979
        %2981 = vmatprep.subr.mxu0 0.0
        %v2982 = vand.u32 %v518, 4294901760
        %2983 = vmatpush1.msra.mxu0 %v2982
        %2984 = vmatprep.subr.mxu0 0.0
        %v2985 = vand.u32 %v519, 4294901760
        %2986 = vmatpush1.msra.mxu0 %v2985
        %2987 = vmatprep.subr.mxu0 0.0
        %v2988 = vand.u32 %v520, 4294901760
        %2989 = vmatpush1.msra.mxu0 %v2988
        %2990 = vmatprep.subr.mxu0 0.0
        %v2991 = vand.u32 %v521, 4294901760
        %2992 = vmatpush1.msra.mxu0 %v2991
        %2993 = vmatprep.subr.mxu0 0.0
        %v2994 = vand.u32 %v522, 4294901760
        %2995 = vmatpush1.msra.mxu0 %v2994
        %2996 = vmatprep.subr.mxu0 0.0
        %v2997 = vand.u32 %v523, 4294901760
        %2998 = vmatpush1.msra.mxu0 %v2997
        %2999 = vmatprep.subr.mxu0 0.0
        %v3000 = vand.u32 %v524, 4294901760
        %3001 = vmatpush1.msra.mxu0 %v3000
        %3002 = vmatprep.subr.mxu0 0.0
        %v3003 = vand.u32 %v525, 4294901760
        %3004 = vmatpush1.msra.mxu0 %v3003
        %3005 = vmatprep.subr.mxu0 0.0
        %3006 = vmatpush1.msra.mxu0 0.0
        %3007 = vmatprep.subr.mxu0 0.0
        %3008 = vmatpush1.msra.mxu0 0.0
        %3009 = vmatprep.subr.mxu0 0.0
        %3010 = vmatpush1.msra.mxu0 0.0
        %3011 = vmatprep.subr.mxu0 0.0
        %3012 = vmatpush1.msra.mxu0 0.0
        %3013 = vmatprep.subr.mxu0 0.0
        %3014 = vmatpush1.msra.mxu0 0.0
        %3015 = vmatprep.subr.mxu0 0.0
        %3016 = vmatpush1.msra.mxu0 0.0
        %3017 = vmatprep.subr.mxu0 0.0
        %3018 = vmatpush1.msra.mxu0 0.0
        %3019 = vmatprep.subr.mxu0 0.0
        %3020 = vmatpush1.msra.mxu0 0.0
        %3021 = vmatprep.subr.mxu0 0.0
        %3022 = vmatpush1.msra.mxu0 0.0
        %3023 = vmatprep.subr.mxu0 0.0
        %3024 = vmatpush1.msra.mxu0 0.0
        %3025 = vmatprep.subr.mxu0 0.0
        %3026 = vmatpush1.msra.mxu0 0.0
        %3027 = vmatprep.subr.mxu0 0.0
        %3028 = vmatpush1.msra.mxu0 0.0
        %3029 = vmatprep.subr.mxu0 0.0
        %3030 = vmatpush1.msra.mxu0 0.0
        %3031 = vmatprep.subr.mxu0 0.0
        %3032 = vmatpush1.msra.mxu0 0.0
        %3033 = vmatprep.subr.mxu0 0.0
        %3034 = vmatpush1.msra.mxu0 0.0
        %3035 = vmatprep.subr.mxu0 0.0
        %3036 = vmatpush1.msra.mxu0 0.0
        %3037 = vmatprep.mubr.f32.mxu0 0.0
        %v3038 = vand.u32 %v2442, 4294901760
        %v3039 = vsub.f32 %v2442, %v3038
        %v3040 = vand.u32 %v3039, 4294901760
        %3041 = vmatmul.mubr.f32.gmra.mrb[0].mxu0 %v3040
        %v3042 = vpop.f32.mrb[0].mxu0
        %v3043 = vadd.f32 %v2905, %v3042
        %v3044 = vpop.f32.mrb[0].mxu0
        %3045 = vmatprep.mubr.f32.mxu0 0.0
        %v3046 = vand.u32 %v2443, 4294901760
        %v3047 = vsub.f32 %v2443, %v3046
        %v3048 = vand.u32 %v3047, 4294901760
        %3049 = vmatmul.mubr.f32.gmra.mrb[0].mxu0 %v3048
        %v3050 = vpop.f32.mrb[0].mxu0
        %v3051 = vadd.f32 %v2912, %v3050
        %v3052 = vpop.f32.mrb[0].mxu0
        %3053 = vmatprep.mubr.f32.mxu0 0.0
        %v3054 = vand.u32 %v2444, 4294901760
        %v3055 = vsub.f32 %v2444, %v3054
        %v3056 = vand.u32 %v3055, 4294901760
        %3057 = vmatmul.mubr.f32.gmra.mrb[0].mxu0 %v3056
        %v3058 = vpop.f32.mrb[0].mxu0
        %v3059 = vadd.f32 %v2919, %v3058
        %v3060 = vpop.f32.mrb[0].mxu0
        %3061 = vmatprep.mubr.f32.mxu0 0.0
        %v3062 = vand.u32 %v2445, 4294901760
        %v3063 = vsub.f32 %v2445, %v3062
        %v3064 = vand.u32 %v3063, 4294901760
        %3065 = vmatmul.mubr.f32.gmra.mrb[0].mxu0 %v3064
        %v3066 = vpop.f32.mrb[0].mxu0
        %v3067 = vadd.f32 %v2926, %v3066
        %v3068 = vpop.f32.mrb[0].mxu0
        %3069 = vmatprep.mubr.f32.mxu0 0.0
        %v3070 = vand.u32 %v2446, 4294901760
        %v3071 = vsub.f32 %v2446, %v3070
        %v3072 = vand.u32 %v3071, 4294901760
        %3073 = vmatmul.mubr.f32.gmra.mrb[0].mxu0 %v3072
        %v3074 = vpop.f32.mrb[0].mxu0
        %v3075 = vadd.f32 %v2933, %v3074
        %v3076 = vpop.f32.mrb[0].mxu0
        %3077 = vmatprep.mubr.f32.mxu0 0.0
        %v3078 = vand.u32 %v2447, 4294901760
        %v3079 = vsub.f32 %v2447, %v3078
        %v3080 = vand.u32 %v3079, 4294901760
        %3081 = vmatmul.mubr.f32.gmra.mrb[0].mxu0 %v3080
        %v3082 = vpop.f32.mrb[0].mxu0
        %v3083 = vadd.f32 %v2940, %v3082
        %v3084 = vpop.f32.mrb[0].mxu0
        %3085 = vmatprep.mubr.f32.mxu0 0.0
        %v3086 = vand.u32 %v2448, 4294901760
        %v3087 = vsub.f32 %v2448, %v3086
        %v3088 = vand.u32 %v3087, 4294901760
        %3089 = vmatmul.mubr.f32.gmra.mrb[0].mxu0 %v3088
        %v3090 = vpop.f32.mrb[0].mxu0
        %v3091 = vadd.f32 %v2947, %v3090
        %v3092 = vpop.f32.mrb[0].mxu0
        %3093 = vmatprep.mubr.f32.mxu0 0.0
        %v3094 = vand.u32 %v2449, 4294901760
        %v3095 = vsub.f32 %v2449, %v3094
        %v3096 = vand.u32 %v3095, 4294901760
        %3097 = vmatmul.mubr.f32.gmra.mrb[0].mxu0 %v3096
        %v3098 = vpop.f32.mrb[0].mxu0
        %v3099 = vadd.f32 %v2954, %v3098
        %v3100 = vpop.f32.mrb[0].mxu0
        %3101 = vdwg.mxu0
        %3102 = vmatprep.subr.mxu0 0.0
        %v3103 = vand.u32 %v510, 4294901760
        %v3104 = vsub.f32 %v510, %v3103
        %v3105 = vand.u32 %v3104, 4294901760
        %3106 = vmatpush1.msra.mxu0 %v3105
        %3107 = vmatprep.subr.mxu0 0.0
        %v3108 = vand.u32 %v511, 4294901760
        %v3109 = vsub.f32 %v511, %v3108
        %v3110 = vand.u32 %v3109, 4294901760
        %3111 = vmatpush1.msra.mxu0 %v3110
        %3112 = vmatprep.subr.mxu0 0.0
        %v3113 = vand.u32 %v512, 4294901760
        %v3114 = vsub.f32 %v512, %v3113
        %v3115 = vand.u32 %v3114, 4294901760
        %3116 = vmatpush1.msra.mxu0 %v3115
        %3117 = vmatprep.subr.mxu0 0.0
        %v3118 = vand.u32 %v513, 4294901760
        %v3119 = vsub.f32 %v513, %v3118
        %v3120 = vand.u32 %v3119, 4294901760
        %3121 = vmatpush1.msra.mxu0 %v3120
        %3122 = vmatprep.subr.mxu0 0.0
        %v3123 = vand.u32 %v514, 4294901760
        %v3124 = vsub.f32 %v514, %v3123
        %v3125 = vand.u32 %v3124, 4294901760
        %3126 = vmatpush1.msra.mxu0 %v3125
        %3127 = vmatprep.subr.mxu0 0.0
        %v3128 = vand.u32 %v515, 4294901760
        %v3129 = vsub.f32 %v515, %v3128
        %v3130 = vand.u32 %v3129, 4294901760
        %3131 = vmatpush1.msra.mxu0 %v3130
        %3132 = vmatprep.subr.mxu0 0.0
        %v3133 = vand.u32 %v516, 4294901760
        %v3134 = vsub.f32 %v516, %v3133
        %v3135 = vand.u32 %v3134, 4294901760
        %3136 = vmatpush1.msra.mxu0 %v3135
        %3137 = vmatprep.subr.mxu0 0.0
        %v3138 = vand.u32 %v517, 4294901760
        %v3139 = vsub.f32 %v517, %v3138
        %v3140 = vand.u32 %v3139, 4294901760
        %3141 = vmatpush1.msra.mxu0 %v3140
        %3142 = vmatprep.subr.mxu0 0.0
        %v3143 = vand.u32 %v518, 4294901760
        %v3144 = vsub.f32 %v518, %v3143
        %v3145 = vand.u32 %v3144, 4294901760
        %3146 = vmatpush1.msra.mxu0 %v3145
        %3147 = vmatprep.subr.mxu0 0.0
        %v3148 = vand.u32 %v519, 4294901760
        %v3149 = vsub.f32 %v519, %v3148
        %v3150 = vand.u32 %v3149, 4294901760
        %3151 = vmatpush1.msra.mxu0 %v3150
        %3152 = vmatprep.subr.mxu0 0.0
        %v3153 = vand.u32 %v520, 4294901760
        %v3154 = vsub.f32 %v520, %v3153
        %v3155 = vand.u32 %v3154, 4294901760
        %3156 = vmatpush1.msra.mxu0 %v3155
        %3157 = vmatprep.subr.mxu0 0.0
        %v3158 = vand.u32 %v521, 4294901760
        %v3159 = vsub.f32 %v521, %v3158
        %v3160 = vand.u32 %v3159, 4294901760
        %3161 = vmatpush1.msra.mxu0 %v3160
        %3162 = vmatprep.subr.mxu0 0.0
        %v3163 = vand.u32 %v522, 4294901760
        %v3164 = vsub.f32 %v522, %v3163
        %v3165 = vand.u32 %v3164, 4294901760
        %3166 = vmatpush1.msra.mxu0 %v3165
        %3167 = vmatprep.subr.mxu0 0.0
        %v3168 = vand.u32 %v523, 4294901760
        %v3169 = vsub.f32 %v523, %v3168
        %v3170 = vand.u32 %v3169, 4294901760
        %3171 = vmatpush1.msra.mxu0 %v3170
        %3172 = vmatprep.subr.mxu0 0.0
        %v3173 = vand.u32 %v524, 4294901760
        %v3174 = vsub.f32 %v524, %v3173
        %v3175 = vand.u32 %v3174, 4294901760
        %3176 = vmatpush1.msra.mxu0 %v3175
        %3177 = vmatprep.subr.mxu0 0.0
        %v3178 = vand.u32 %v525, 4294901760
        %v3179 = vsub.f32 %v525, %v3178
        %v3180 = vand.u32 %v3179, 4294901760
        %3181 = vmatpush1.msra.mxu0 %v3180
        %3182 = vmatprep.subr.mxu0 0.0
        %3183 = vmatpush1.msra.mxu0 0.0
        %3184 = vmatprep.subr.mxu0 0.0
        %3185 = vmatpush1.msra.mxu0 0.0
        %3186 = vmatprep.subr.mxu0 0.0
        %3187 = vmatpush1.msra.mxu0 0.0
        %3188 = vmatprep.subr.mxu0 0.0
        %3189 = vmatpush1.msra.mxu0 0.0
        %3190 = vmatprep.subr.mxu0 0.0
        %3191 = vmatpush1.msra.mxu0 0.0
        %3192 = vmatprep.subr.mxu0 0.0
        %3193 = vmatpush1.msra.mxu0 0.0
        %3194 = vmatprep.subr.mxu0 0.0
        %3195 = vmatpush1.msra.mxu0 0.0
        %3196 = vmatprep.subr.mxu0 0.0
        %3197 = vmatpush1.msra.mxu0 0.0
        %3198 = vmatprep.subr.mxu0 0.0
        %3199 = vmatpush1.msra.mxu0 0.0
        %3200 = vmatprep.subr.mxu0 0.0
        %3201 = vmatpush1.msra.mxu0 0.0
        %3202 = vmatprep.subr.mxu0 0.0
        %3203 = vmatpush1.msra.mxu0 0.0
        %3204 = vmatprep.subr.mxu0 0.0
        %3205 = vmatpush1.msra.mxu0 0.0
        %3206 = vmatprep.subr.mxu0 0.0
        %3207 = vmatpush1.msra.mxu0 0.0
        %3208 = vmatprep.subr.mxu0 0.0
        %3209 = vmatpush1.msra.mxu0 0.0
        %3210 = vmatprep.subr.mxu0 0.0
        %3211 = vmatpush1.msra.mxu0 0.0
        %3212 = vmatprep.subr.mxu0 0.0
        %3213 = vmatpush1.msra.mxu0 0.0
        %3214 = vmatprep.mubr.f32.mxu0 0.0
        %v3215 = vand.u32 %v2442, 4294901760
        %3216 = vmatmul.mubr.f32.gmra.mrb[0].mxu0 %v3215
        %v3217 = vpop.f32.mrb[0].mxu0
        %v3218 = vadd.f32 %v3043, %v3217
        %v3219 = vpop.f32.mrb[0].mxu0
        %3220 = vmatprep.mubr.f32.mxu0 0.0
        %v3221 = vand.u32 %v2443, 4294901760
        %3222 = vmatmul.mubr.f32.gmra.mrb[0].mxu0 %v3221
        %v3223 = vpop.f32.mrb[0].mxu0
        %v3224 = vadd.f32 %v3051, %v3223
        %v3225 = vpop.f32.mrb[0].mxu0
        %3226 = vmatprep.mubr.f32.mxu0 0.0
        %v3227 = vand.u32 %v2444, 4294901760
        %3228 = vmatmul.mubr.f32.gmra.mrb[0].mxu0 %v3227
        %v3229 = vpop.f32.mrb[0].mxu0
        %v3230 = vadd.f32 %v3059, %v3229
        %v3231 = vpop.f32.mrb[0].mxu0
        %3232 = vmatprep.mubr.f32.mxu0 0.0
        %v3233 = vand.u32 %v2445, 4294901760
        %3234 = vmatmul.mubr.f32.gmra.mrb[0].mxu0 %v3233
        %v3235 = vpop.f32.mrb[0].mxu0
        %v3236 = vadd.f32 %v3067, %v3235
        %v3237 = vpop.f32.mrb[0].mxu0
        %3238 = vmatprep.mubr.f32.mxu0 0.0
        %v3239 = vand.u32 %v2446, 4294901760
        %3240 = vmatmul.mubr.f32.gmra.mrb[0].mxu0 %v3239
        %v3241 = vpop.f32.mrb[0].mxu0
        %v3242 = vadd.f32 %v3075, %v3241
        %v3243 = vpop.f32.mrb[0].mxu0
        %3244 = vmatprep.mubr.f32.mxu0 0.0
        %v3245 = vand.u32 %v2447, 4294901760
        %3246 = vmatmul.mubr.f32.gmra.mrb[0].mxu0 %v3245
        %v3247 = vpop.f32.mrb[0].mxu0
        %v3248 = vadd.f32 %v3083, %v3247
        %v3249 = vpop.f32.mrb[0].mxu0
        %3250 = vmatprep.mubr.f32.mxu0 0.0
        %v3251 = vand.u32 %v2448, 4294901760
        %3252 = vmatmul.mubr.f32.gmra.mrb[0].mxu0 %v3251
        %v3253 = vpop.f32.mrb[0].mxu0
        %v3254 = vadd.f32 %v3091, %v3253
        %v3255 = vpop.f32.mrb[0].mxu0
        %3256 = vmatprep.mubr.f32.mxu0 0.0
        %v3257 = vand.u32 %v2449, 4294901760
        %3258 = vmatmul.mubr.f32.gmra.mrb[0].mxu0 %v3257
        %v3259 = vpop.f32.mrb[0].mxu0
        %v3260 = vadd.f32 %v3099, %v3259
        %v3261 = vpop.f32.mrb[0].mxu0
        %3262 = vdwg.mxu0
        %3263 = vmatprep.subr.mxu0 0.0
        %v3264 = vand.u32 %v510, 4294901760
        %3265 = vmatpush1.msra.mxu0 %v3264
        %3266 = vmatprep.subr.mxu0 0.0
        %v3267 = vand.u32 %v511, 4294901760
        %3268 = vmatpush1.msra.mxu0 %v3267
        %3269 = vmatprep.subr.mxu0 0.0
        %v3270 = vand.u32 %v512, 4294901760
        %3271 = vmatpush1.msra.mxu0 %v3270
        %3272 = vmatprep.subr.mxu0 0.0
        %v3273 = vand.u32 %v513, 4294901760
        %3274 = vmatpush1.msra.mxu0 %v3273
        %3275 = vmatprep.subr.mxu0 0.0
        %v3276 = vand.u32 %v514, 4294901760
        %3277 = vmatpush1.msra.mxu0 %v3276
        %3278 = vmatprep.subr.mxu0 0.0
        %v3279 = vand.u32 %v515, 4294901760
        %3280 = vmatpush1.msra.mxu0 %v3279
        %3281 = vmatprep.subr.mxu0 0.0
        %v3282 = vand.u32 %v516, 4294901760
        %3283 = vmatpush1.msra.mxu0 %v3282
        %3284 = vmatprep.subr.mxu0 0.0
        %v3285 = vand.u32 %v517, 4294901760
        %3286 = vmatpush1.msra.mxu0 %v3285
        %3287 = vmatprep.subr.mxu0 0.0
        %v3288 = vand.u32 %v518, 4294901760
        %3289 = vmatpush1.msra.mxu0 %v3288
        %3290 = vmatprep.subr.mxu0 0.0
        %v3291 = vand.u32 %v519, 4294901760
        %3292 = vmatpush1.msra.mxu0 %v3291
        %3293 = vmatprep.subr.mxu0 0.0
        %v3294 = vand.u32 %v520, 4294901760
        %3295 = vmatpush1.msra.mxu0 %v3294
        %3296 = vmatprep.subr.mxu0 0.0
        %v3297 = vand.u32 %v521, 4294901760
        %3298 = vmatpush1.msra.mxu0 %v3297
        %3299 = vmatprep.subr.mxu0 0.0
        %v3300 = vand.u32 %v522, 4294901760
        %3301 = vmatpush1.msra.mxu0 %v3300
        %3302 = vmatprep.subr.mxu0 0.0
        %v3303 = vand.u32 %v523, 4294901760
        %3304 = vmatpush1.msra.mxu0 %v3303
        %3305 = vmatprep.subr.mxu0 0.0
        %v3306 = vand.u32 %v524, 4294901760
        %3307 = vmatpush1.msra.mxu0 %v3306
        %3308 = vmatprep.subr.mxu0 0.0
        %v3309 = vand.u32 %v525, 4294901760
        %3310 = vmatpush1.msra.mxu0 %v3309
        %3311 = vmatprep.subr.mxu0 0.0
        %3312 = vmatpush1.msra.mxu0 0.0
        %3313 = vmatprep.subr.mxu0 0.0
        %3314 = vmatpush1.msra.mxu0 0.0
        %3315 = vmatprep.subr.mxu0 0.0
        %3316 = vmatpush1.msra.mxu0 0.0
        %3317 = vmatprep.subr.mxu0 0.0
        %3318 = vmatpush1.msra.mxu0 0.0
        %3319 = vmatprep.subr.mxu0 0.0
        %3320 = vmatpush1.msra.mxu0 0.0
        %3321 = vmatprep.subr.mxu0 0.0
        %3322 = vmatpush1.msra.mxu0 0.0
        %3323 = vmatprep.subr.mxu0 0.0
        %3324 = vmatpush1.msra.mxu0 0.0
        %3325 = vmatprep.subr.mxu0 0.0
        %3326 = vmatpush1.msra.mxu0 0.0
        %3327 = vmatprep.subr.mxu0 0.0
        %3328 = vmatpush1.msra.mxu0 0.0
        %3329 = vmatprep.subr.mxu0 0.0
        %3330 = vmatpush1.msra.mxu0 0.0
        %3331 = vmatprep.subr.mxu0 0.0
        %3332 = vmatpush1.msra.mxu0 0.0
        %3333 = vmatprep.subr.mxu0 0.0
        %3334 = vmatpush1.msra.mxu0 0.0
        %3335 = vmatprep.subr.mxu0 0.0
        %3336 = vmatpush1.msra.mxu0 0.0
        %3337 = vmatprep.subr.mxu0 0.0
        %3338 = vmatpush1.msra.mxu0 0.0
        %3339 = vmatprep.subr.mxu0 0.0
        %3340 = vmatpush1.msra.mxu0 0.0
        %3341 = vmatprep.subr.mxu0 0.0
        %3342 = vmatpush1.msra.mxu0 0.0
        %3343 = vmatprep.mubr.f32.mxu0 0.0
        %v3344 = vand.u32 %v2442, 4294901760
        %3345 = vmatmul.mubr.f32.gmra.mrb[0].mxu0 %v3344
        %v3346 = vpop.f32.mrb[0].mxu0
        %v3347 = vadd.f32 %v3218, %v3346
        %v3348 = vpop.f32.mrb[0].mxu0
        %3349 = vmatprep.mubr.f32.mxu0 0.0
        %v3350 = vand.u32 %v2443, 4294901760
        %3351 = vmatmul.mubr.f32.gmra.mrb[0].mxu0 %v3350
        %v3352 = vpop.f32.mrb[0].mxu0
        %v3353 = vadd.f32 %v3224, %v3352
        %v3354 = vpop.f32.mrb[0].mxu0
        %3355 = vmatprep.mubr.f32.mxu0 0.0
        %v3356 = vand.u32 %v2444, 4294901760
        %3357 = vmatmul.mubr.f32.gmra.mrb[0].mxu0 %v3356
        %v3358 = vpop.f32.mrb[0].mxu0
        %v3359 = vadd.f32 %v3230, %v3358
        %v3360 = vpop.f32.mrb[0].mxu0
        %3361 = vmatprep.mubr.f32.mxu0 0.0
        %v3362 = vand.u32 %v2445, 4294901760
        %3363 = vmatmul.mubr.f32.gmra.mrb[0].mxu0 %v3362
        %v3364 = vpop.f32.mrb[0].mxu0
        %v3365 = vadd.f32 %v3236, %v3364
        %v3366 = vpop.f32.mrb[0].mxu0
        %3367 = vmatprep.mubr.f32.mxu0 0.0
        %v3368 = vand.u32 %v2446, 4294901760
        %3369 = vmatmul.mubr.f32.gmra.mrb[0].mxu0 %v3368
        %v3370 = vpop.f32.mrb[0].mxu0
        %v3371 = vadd.f32 %v3242, %v3370
        %v3372 = vpop.f32.mrb[0].mxu0
        %3373 = vmatprep.mubr.f32.mxu0 0.0
        %v3374 = vand.u32 %v2447, 4294901760
        %3375 = vmatmul.mubr.f32.gmra.mrb[0].mxu0 %v3374
        %v3376 = vpop.f32.mrb[0].mxu0
        %v3377 = vadd.f32 %v3248, %v3376
        %v3378 = vpop.f32.mrb[0].mxu0
        %3379 = vmatprep.mubr.f32.mxu0 0.0
        %v3380 = vand.u32 %v2448, 4294901760
        %3381 = vmatmul.mubr.f32.gmra.mrb[0].mxu0 %v3380
        %v3382 = vpop.f32.mrb[0].mxu0
        %v3383 = vadd.f32 %v3254, %v3382
        %v3384 = vpop.f32.mrb[0].mxu0
        %3385 = vmatprep.mubr.f32.mxu0 0.0
        %v3386 = vand.u32 %v2449, 4294901760
        %3387 = vmatmul.mubr.f32.gmra.mrb[0].mxu0 %v3386
        %v3388 = vpop.f32.mrb[0].mxu0
        %v3389 = vadd.f32 %v3260, %v3388
        %v3390 = vpop.f32.mrb[0].mxu0
        %3391 = vdwg.mxu0
        %v3392 = vlog2.pop %v3347
        %v3393 = vmul.f32 %v3392, 0.6931472
        %v3394 = vlog2.pop %v3353
        %v3395 = vmul.f32 %v3394, 0.6931472
        %v3396 = vlog2.pop %v3359
        %v3397 = vmul.f32 %v3396, 0.6931472
        %v3398 = vlog2.pop %v3365
        %v3399 = vmul.f32 %v3398, 0.6931472
        %v3400 = vlog2.pop %v3371
        %v3401 = vmul.f32 %v3400, 0.6931472
        %v3402 = vlog2.pop %v3377
        %v3403 = vmul.f32 %v3402, 0.6931472
        %v3404 = vlog2.pop %v3383
        %v3405 = vmul.f32 %v3404, 0.6931472
        %v3406 = vlog2.pop %v3389
        %v3407 = vmul.f32 %v3406, 0.6931472
        %v3408 = vlog2.pop %v2418
        %v3409 = vmul.f32 %v3408, 0.6931472
        %v3410 = vlog2.pop %v2419
        %v3411 = vmul.f32 %v3410, 0.6931472
        %v3412 = vlog2.pop %v2420
        %v3413 = vmul.f32 %v3412, 0.6931472
        %v3414 = vlog2.pop %v2421
        %v3415 = vmul.f32 %v3414, 0.6931472
        %v3416 = vlog2.pop %v2422
        %v3417 = vmul.f32 %v3416, 0.6931472
        %v3418 = vlog2.pop %v2423
        %v3419 = vmul.f32 %v3418, 0.6931472
        %v3420 = vlog2.pop %v2424
        %v3421 = vmul.f32 %v3420, 0.6931472
        %v3422 = vlog2.pop %v2425
        %v3423 = vmul.f32 %v3422, 0.6931472
        %v3424 = vsub.f32 %v3393, %v3409
        %v3425 = vsub.f32 %v3395, %v3411
        %v3426 = vsub.f32 %v3397, %v3413
        %v3427 = vsub.f32 %v3399, %v3415
        %v3428 = vsub.f32 %v3401, %v3417
        %v3429 = vsub.f32 %v3403, %v3419
        %v3430 = vsub.f32 %v3405, %v3421
        %v3431 = vsub.f32 %v3407, %v3423
        %v3432 = vmax.f32 %v3424, -100.0
        %v3433 = vmax.f32 %v3425, -100.0
        %v3434 = vmax.f32 %v3426, -100.0
        %v3435 = vmax.f32 %v3427, -100.0
        %v3436 = vmax.f32 %v3428, -100.0
        %v3437 = vmax.f32 %v3429, -100.0
        %v3438 = vmax.f32 %v3430, -100.0
        %v3439 = vmax.f32 %v3431, -100.0
        %v3440 = vsel %vm398, %v3432, 0.0
        %v3441 = vsel %vm399, %v3433, 0.0
        %v3442 = vsel %vm400, %v3434, 0.0
        %v3443 = vsel %vm401, %v3435, 0.0
        %v3444 = vsel %vm402, %v3436, 0.0
        %v3445 = vsel %vm403, %v3437, 0.0
        %v3446 = vsel %vm404, %v3438, 0.0
        %v3447 = vsel %vm405, %v3439, 0.0
        %v3448 = vsel %vm398, %v2427, 0.0
        %v3449 = vsel %vm399, %v2429, 0.0
        %v3450 = vsel %vm400, %v2431, 0.0
        %v3451 = vsel %vm401, %v2433, 0.0
        %v3452 = vsel %vm402, %v2435, 0.0
        %v3453 = vsel %vm403, %v2437, 0.0
        %v3454 = vsel %vm404, %v2439, 0.0
        %v3455 = vsel %vm405, %v2441, 0.0
        %v3456 = vld [vmem:[%s321] sm:$0xff]
        %v3457 = vadd.f32 %v3440, %v3441
        %v3458 = vadd.f32 %v3457, %v3442
        %v3459 = vadd.f32 %v3458, %v3443
        %v3460 = vadd.f32 %v3459, %v3444
        %v3461 = vadd.f32 %v3460, %v3445
        %v3462 = vadd.f32 %v3461, %v3446
        %v3463 = vadd.f32 %v3462, %v3447
        %v3464 = vadd.f32 %v3456, %v3463
        %3465 = vst [vmem:[%s321] sm:$0xff] %v3464
        %v3466 = vld [vmem:[%s328] sm:$0xff]
        %v3467 = vadd.f32 %v3448, %v3449
        %v3468 = vadd.f32 %v3467, %v3450
        %v3469 = vadd.f32 %v3468, %v3451
        %v3470 = vadd.f32 %v3469, %v3452
        %v3471 = vadd.f32 %v3470, %v3453
        %v3472 = vadd.f32 %v3471, %v3454
        %v3473 = vadd.f32 %v3472, %v3455
        %v3474 = vadd.f32 %v3466, %v3473
        %3475 = vst [vmem:[%s328] sm:$0xff] %v3474
        %s3476 = sand.u32 %s137, 1
        %s3477 = scalar_lea.sflag [#allocation4], %s3476
        %s3478 = sand.u32 %s137, 1
        %s3479 = smul.addr %s3478, 8
        %s3480 = scalar_lea.vmem [#allocation8], %s3479
        %s3481 = sand.u32 %s163, 1
        %s3482 = scalar_lea.sflag [#allocation10], %s3481
        %s3483 = sand.u32 %s163, 1
        %s3484 = smul.addr %s3483, 8
        %s3485 = scalar_lea.vmem [#allocation9], %s3484
        // Predicated region
        $region49: #{tpu_custom_call.1} parent=31 // pred_check
          %p3486 = pneg %p147
        $region50: #{tpu_custom_call.1} parent=31 // pred_check_branch
          %3488 = sbr.rel (%p3486) target = $region52
        $region51: #{tpu_custom_call.1} parent=31 // pred_region
          %s3490 = ssub.s32 128, 128
          %3491 = vsyncadd %s3477, %s3490
          %s3492 = smul.addr %s32, 128
          %s3493 = scalar_lea.hbm %s3, %s3492
          %s3495 = sshll.u32 %s3480, 4
          %s3496 = int_to_ptr.vmem [resolvable:$true] %s3495
          %3498 = dma.vmem_to_hbm [thread:$0]  %s3496, 128, %s3493, %s3477
        $region52: #{tpu_custom_call.1} parent=31 // pred_fallthru
          _
        // Predicated region
        $region53: #{tpu_custom_call.1} parent=31 // pred_check
          %p3499 = pneg %p173
        $region54: #{tpu_custom_call.1} parent=31 // pred_check_branch
          %3501 = sbr.rel (%p3499) target = $region56
        $region55: #{tpu_custom_call.1} parent=31 // pred_region
          %s3503 = ssub.s32 128, 128
          %3504 = vsyncadd %s3482, %s3503
          %s3505 = smul.addr %s32, 128
          %s3506 = scalar_lea.hbm %s4, %s3505
          %s3508 = sshll.u32 %s3485, 4
          %s3509 = int_to_ptr.vmem [resolvable:$true] %s3508
          %3511 = dma.vmem_to_hbm [thread:$0]  %s3509, 128, %s3506, %s3482
        $region56: #{tpu_custom_call.1} parent=31 // pred_fallthru
          _
      $region32: #{tpu_custom_call.1} parent=5 // pred_fallthru
        _
      %p3512 = scmp.le.s32.totalorder 2, %s23
      // Predicated region
      $region57: #{tpu_custom_call.1} parent=5 // pred_check
        %p3513 = pneg %p3512
      $region58: #{tpu_custom_call.1} parent=5 // pred_check_branch
        %3515 = sbr.rel (%p3513) target = $region60
      $region59: #{tpu_custom_call.1} parent=5 // pred_region
        %s3516 = ssub.s32 %s23, 2
        // Predicated region
        $region61: #{tpu_custom_call.1} parent=59 // pred_check
          %p3517 = pneg %p153
        $region62: #{tpu_custom_call.1} parent=59 // pred_check_branch
          %3519 = sbr.rel (%p3517) target = $region64
        $region63: #{tpu_custom_call.1} parent=59 // pred_region
          %s3520 = sand.u32 %s138, 1
          %s3521 = scalar_lea.sflag [#allocation4], %s3520
          %s3522 = sand.u32 %s138, 1
          %s3523 = smul.addr %s3522, 8
          %s3524 = scalar_lea.vmem [#allocation8], %s3523
          %3525 = dma.done %s3521, 128
        $region64: #{tpu_custom_call.1} parent=59 // pred_fallthru
          _
        // Predicated region
        $region65: #{tpu_custom_call.1} parent=59 // pred_check
          %p3526 = pneg %p179
        $region66: #{tpu_custom_call.1} parent=59 // pred_check_branch
          %3528 = sbr.rel (%p3526) target = $region68
        $region67: #{tpu_custom_call.1} parent=59 // pred_region
          %s3529 = sand.u32 %s164, 1
          %s3530 = scalar_lea.sflag [#allocation10], %s3529
          %s3531 = sand.u32 %s164, 1
          %s3532 = smul.addr %s3531, 8
          %s3533 = scalar_lea.vmem [#allocation9], %s3532
          %3534 = dma.done %s3530, 128
        $region68: #{tpu_custom_call.1} parent=59 // pred_fallthru
          _
      $region60: #{tpu_custom_call.1} parent=5 // pred_fallthru
        _
    $region6: #{tpu_custom_call.1} parent=1 // loop_footer
      %s27 = sadd.s32 1, %s23
    $region7: #{tpu_custom_call.1} parent=1 // loop_footer_branch
      %22 = sbr.rel target = $region3
    $region8: #{tpu_custom_call.1} parent=1 // loop_exit
      _
    %3535 = vsyncpa [#allocation3], 1
    %s3536 = scalar_lea.sflag [#allocation3], 1
    %3537 = vsyncpa %s3536, 1
    %3538 = vsyncpa [#allocation6], 1
    %s3539 = scalar_lea.sflag [#allocation6], 1
    %3540 = vsyncpa %s3539, 1
    %3541 = vsyncpa [#allocation4], 1
    %s3542 = scalar_lea.sflag [#allocation4], 1
    %3543 = vsyncpa %s3542, 1
    %3544 = vsyncpa [#allocation10], 1
    %s3545 = scalar_lea.sflag [#allocation10], 1
    %3546 = vsyncpa %s3545, 1

</llo_original>
